<compile_context>
chip_gen: v7x
topology: tpu7x:2x2x1
jax: 0.10.0
libtpu: 0.0.40
codegen_flags: <defaults>
</compile_context>

<pallas_src>
import numpy as np
import jax
import jax.numpy as jnp
from jax import lax
from jax.experimental import pallas as pl
from jax.experimental.pallas import tpu as pltpu


# ----------------------------------------------------------------------------
# Parameter / interpolation-matrix setup (plain JAX / numpy glue)
# ----------------------------------------------------------------------------
def _bilinear_matrix(l_in, l_out):
    """Interpolation matrix matching nn.Upsample(mode='bilinear', align_corners=True)."""
    m = np.zeros((l_out, l_in), np.float32)
    if l_out == 1 or l_in == 1:
        m[:, 0] = 1.0
        return m
    scale = (l_in - 1) / (l_out - 1)
    for i in range(l_out):
        src = i * scale
        i0 = min(int(np.floor(src)), l_in - 1)
        i1 = min(i0 + 1, l_in - 1)
        f = src - i0
        m[i, i0] += 1.0 - f
        m[i, i1] += f
    return m


def init_params(key, in_channels, out_channels, h_in, w_in):
    mid = in_channels // 2
    keys = jax.random.split(key, 12)
    eps = 1e-5

    def bn_fold(kg, kb, km, kv, kbias, c):
        gamma = 1.0 + 0.1 * jax.random.normal(kg, (c,), jnp.float32)
        beta = 0.1 * jax.random.normal(kb, (c,), jnp.float32)
        mean = 0.1 * jax.random.normal(km, (c,), jnp.float32)
        var = 1.0 + 0.5 * jax.random.uniform(kv, (c,), jnp.float32)
        bias = 0.1 * jax.random.normal(kbias, (c,), jnp.float32)
        scale = gamma / jnp.sqrt(var + eps)
        shift = beta + (bias - mean) * scale
        return scale, shift

    w_conv1 = 0.1 * jax.random.normal(keys[0], (3, 3, in_channels, mid), jnp.float32)
    scale1, shift1 = bn_fold(keys[1], keys[2], keys[3], keys[4], keys[5], mid)
    w_conv2 = 0.1 * jax.random.normal(keys[6], (3, 3, mid, out_channels), jnp.float32)
    scale2, shift2 = bn_fold(keys[7], keys[8], keys[9], keys[10], keys[11], out_channels)

    my = _bilinear_matrix(h_in, 2 * h_in)          # (2H, H)
    mx = _bilinear_matrix(w_in, 2 * w_in)          # (2W, W)

    return {
        "w1": w_conv1, "scale1": scale1, "shift1": shift1,
        "w2": w_conv2, "scale2": scale2, "shift2": shift2,
        "my": jnp.asarray(my), "mx": jnp.asarray(mx),
    }


# ----------------------------------------------------------------------------
# Fused Pallas forward
# ----------------------------------------------------------------------------
def upscale_pcd_forward(x1, x2, params, phase):
    """Pallas forward of UpscalePCD (bilinear=True branch).

    x1: (N, in_ch//2, H, W) NCHW, x2: (N, in_ch//2, 2H, 2W) NCHW. Returns NCHW.
    """
    n, c1, h1, w1 = map(int, x1.shape)
    _, c2, h2, w2 = map(int, x2.shape)
    h1u, w1u = 2 * h1, 2 * w1
    cin = c1 + c2
    cmid = int(params["w1"].shape[-1])
    cout = int(params["w2"].shape[-1])

    diff_y = h2 - h1u
    diff_x = w2 - w1u
    py0 = diff_y // 2
    px0 = diff_x // 2

    hp, wp = h2 + 2, w2 + 2            # conv 'SAME' padded frame
    sflat = hp * wp                    # flattened padded spatial size (lane dim)
    g = wp + 1                         # margin: every 3x3 tap is a lane-offset window
    shifts = [(dh - 1) * wp + (dw - 1) for dh in range(3) for dw in range(3)]

    # conv weights regrouped per tap as (Cout, Cin) for (Cout,Cin)@(Cin,spatial)
    w1r = jnp.transpose(params["w1"].reshape(9, cin, cmid), (0, 2, 1))
    w2r = jnp.transpose(params["w2"].reshape(9, cmid, cout), (0, 2, 1))
    sc1 = params["scale1"].reshape(cmid, 1)
    sh1 = params["shift1"].reshape(cmid, 1)
    sc2 = params["scale2"].reshape(cout, 1)
    sh2 = params["shift2"].reshape(cout, 1)

    my = params["my"]                  # (2H, H)
    mxt = jnp.transpose(params["mx"])  # (W, 2W)
    cosp = jnp.cos(phase).astype(jnp.float32)
    sinp = jnp.sin(phase).astype(jnp.float32)

    mask_np = np.zeros((hp, wp), np.float32)
    mask_np[1:1 + h2, 1:1 + w2] = 1.0
    border_mask = jnp.asarray(mask_np.reshape(1, sflat))

    def kernel(x1_ref, x2_ref, my_ref, mxt_ref, cos_ref, sin_ref,
               w1_ref, sc1_ref, sh1_ref, w2_ref, sc2_ref, sh2_ref, mask_ref,
               o_ref, xin3, f1, f2):
        f32 = jnp.float32

        # -- assemble conv1 input frame (channel-major, zero halo + diff pad) --
        xin3[...] = jnp.zeros(xin3.shape, f32)
        xin3[0:c2, 1:1 + h2, 1:1 + w2] = x2_ref[0]

        # separable bilinear x2 upsample (align_corners=True):
        # width pass for all channels at once, height pass per channel.
        xa = x1_ref[0].reshape(c1 * h1, w1)                            # (C1*H, W)
        t = jnp.dot(xa, mxt_ref[...], preferred_element_type=f32)      # (C1*H, 2W)
        for c in range(c1):
            tc = t[c * h1:(c + 1) * h1, :]                             # (H, 2W)
            uc = jnp.dot(my_ref[...], tc, preferred_element_type=f32)  # (2H, 2W)
            # TODO(synk): `phase_block` is an external callable in the PyTorch
            # forward; a per-channel sinusoidal modulation stands in for it.
            uc = uc * cos_ref[c] + sin_ref[c]
            xin3[c2 + c, 1 + py0:1 + py0 + h1u, 1 + px0:1 + px0 + w1u] = uc

        # copy the padded frame into a margin-extended lane-major flat buffer:
        # each 3x3 tap then reads a contiguous lane-offset window (no strided
        # slice+reshape per tap).
        f1[...] = jnp.zeros(f1.shape, f32)
        for i in range(hp):
            f1[:, g + i * wp:g + i * wp + wp] = xin3[:, i, :]

        # ---------- conv1 (3x3, pad=1) + folded BN + ReLU, acc (Cmid, S) -----
        acc1 = jnp.zeros((cmid, sflat), f32)
        for k in range(9):
            xs = f1[:, g + shifts[k]:g + shifts[k] + sflat]
            acc1 = acc1 + jnp.dot(w1_ref[k], xs, preferred_element_type=f32)
        hmid = jnp.maximum(acc1 * sc1_ref[...] + sh1_ref[...], 0.0)
        hmid = hmid * mask_ref[...]          # zero the halo ring for conv2

        f2[...] = jnp.zeros(f2.shape, f32)
        f2[:, g:g + sflat] = hmid            # hidden stays in VMEM (no HBM trip)

        # ---------- conv2 (3x3, pad=1) + folded BN + ReLU --------------------
        acc2 = jnp.zeros((cout, sflat), f32)
        for k in range(9):
            xs = f2[:, g + shifts[k]:g + shifts[k] + sflat]
            acc2 = acc2 + jnp.dot(w2_ref[k], xs, preferred_element_type=f32)
        y = jnp.maximum(acc2 * sc2_ref[...] + sh2_ref[...], 0.0)

        # write the valid interior rows of the padded frame to the NCHW output
        for i in range(h2):
            start = (1 + i) * wp + 1
            o_ref[0, :, i, :] = y[:, start:start + w2]

    flops = n * (2 * (c1 * h1) * w1 * w1u           # width upsample matmul
                 + c1 * 2 * h1u * h1 * w1u          # height upsample matmuls
                 + 9 * 2 * cmid * cin * sflat       # conv1
                 + 9 * 2 * cout * cmid * sflat)     # conv2
    bytes_accessed = 4 * (int(x1.size) + int(x2.size) + n * cout * h2 * w2
                          + n * (9 * cmid * cin + 9 * cout * cmid
                                 + h1u * h1 + w1 * w1u + sflat))

    out = pl.pallas_call(
        kernel,
        out_shape=jax.ShapeDtypeStruct((n, cout, h2, w2), jnp.float32),
        grid=(n,),
        in_specs=[
            pl.BlockSpec((1, c1, h1, w1), lambda b: (b, 0, 0, 0)),
            pl.BlockSpec((1, c2, h2, w2), lambda b: (b, 0, 0, 0)),
            pl.BlockSpec((h1u, h1), lambda b: (0, 0)),
            pl.BlockSpec((w1, w1u), lambda b: (0, 0)),
            pl.BlockSpec(memory_space=pltpu.MemorySpace.SMEM),
            pl.BlockSpec(memory_space=pltpu.MemorySpace.SMEM),
            pl.BlockSpec((9, cmid, cin), lambda b: (0, 0, 0)),
            pl.BlockSpec((cmid, 1), lambda b: (0, 0)),
            pl.BlockSpec((cmid, 1), lambda b: (0, 0)),
            pl.BlockSpec((9, cout, cmid), lambda b: (0, 0, 0)),
            pl.BlockSpec((cout, 1), lambda b: (0, 0)),
            pl.BlockSpec((cout, 1), lambda b: (0, 0)),
            pl.BlockSpec((1, sflat), lambda b: (0, 0)),
        ],
        out_specs=pl.BlockSpec((1, cout, h2, w2), lambda b: (b, 0, 0, 0)),
        scratch_shapes=[
            pltpu.VMEM((cin, hp, wp), jnp.float32),          # padded concat frame
            pltpu.VMEM((cin, 2 * g + sflat), jnp.float32),   # conv1 shifted-window buf
            pltpu.VMEM((cmid, 2 * g + sflat), jnp.float32),  # conv2 shifted-window buf
        ],
        compiler_params=pltpu.CompilerParams(
            dimension_semantics=("parallel",),
            vmem_limit_bytes=32 * 1024 * 1024,
        ),
        cost_estimate=pl.CostEstimate(
            flops=int(flops), transcendentals=0,
            bytes_accessed=int(bytes_accessed)),
    )(x1, x2, my, mxt, cosp, sinp, w1r, sc1, sh1, w2r, sc2, sh2, border_mask)
    return out


# ----------------------------------------------------------------------------
# Pure-JAX reference (for correctness check)
# ----------------------------------------------------------------------------
def reference_forward(x1, x2, params, phase):
    my, mx = params["my"], params["mx"]
    t = jnp.einsum('ih,nchw->nciw', my, x1)
    u = jnp.einsum('jw,nciw->ncij', mx, t)
    u = u * jnp.cos(phase)[None, :, None, None] + jnp.sin(phase)[None, :, None, None]
    diff_y = x2.shape[2] - u.shape[2]
    diff_x = x2.shape[3] - u.shape[3]
    u = jnp.pad(u, ((0, 0), (0, 0),
                    (diff_y // 2, diff_y - diff_y // 2),
                    (diff_x // 2, diff_x - diff_x // 2)))
    x = jnp.concatenate([x2, u], axis=1)

    def conv_bn_relu(z, w, scale, shift):
        y = lax.conv_general_dilated(z, w, (1, 1), 'SAME',
                                     dimension_numbers=('NCHW', 'HWIO', 'NCHW'))
        y = y * scale[None, :, None, None] + shift[None, :, None, None]
        return jnp.maximum(y, 0.0)

    hdn = conv_bn_relu(x, params["w1"], params["scale1"], params["shift1"])
    return conv_bn_relu(hdn, params["w2"], params["scale2"], params["shift2"])


# ----------------------------------------------------------------------------
if __name__ == "__main__":
    key = jax.random.PRNGKey(0)
    k1, k2, k3, kp = jax.random.split(key, 4)

    in_channels, out_channels = 8, 4
    n, h_in, w_in = 2, 8, 8

    x1 = jax.random.normal(k1, (n, in_channels // 2, h_in, w_in), jnp.float32)
    x2 = jax.random.normal(k2, (n, in_channels // 2, 2 * h_in, 2 * w_in), jnp.float32)
    phase = jax.random.uniform(kp, (in_channels // 2,), jnp.float32,
                               minval=-np.pi, maxval=np.pi)
    params = init_params(k3, in_channels, out_channels, h_in, w_in)

    out = jax.jit(upscale_pcd_forward)(x1, x2, params, phase)
    out = jax.block_until_ready(out)

    ref = reference_forward(x1, x2, params, phase)
    np.testing.assert_allclose(np.asarray(out), np.asarray(ref), rtol=1e-4, atol=1e-4)
    print("KERNEL_OK")
</pallas_src>

<mosaic_0001>
module attributes {stable_mosaic.version = 11 : i64} {
  func.func @kernel(%arg0: i32, %arg1: memref<1x4x8x8xf32, #tpu.memory_space<vmem>>, %arg2: memref<1x4x16x16xf32, #tpu.memory_space<vmem>>, %arg3: memref<16x8xf32, #tpu.memory_space<vmem>>, %arg4: memref<8x16xf32, #tpu.memory_space<vmem>>, %arg5: memref<4xf32, #tpu.memory_space<smem>>, %arg6: memref<4xf32, #tpu.memory_space<smem>>, %arg7: memref<9x4x8xf32, #tpu.memory_space<vmem>>, %arg8: memref<4x1xf32, #tpu.memory_space<vmem>>, %arg9: memref<4x1xf32, #tpu.memory_space<vmem>>, %arg10: memref<9x4x4xf32, #tpu.memory_space<vmem>>, %arg11: memref<4x1xf32, #tpu.memory_space<vmem>>, %arg12: memref<4x1xf32, #tpu.memory_space<vmem>>, %arg13: memref<1x324xf32, #tpu.memory_space<vmem>>, %arg14: memref<1x4x16x16xf32, #tpu.memory_space<vmem>>, %arg15: memref<8x18x18xf32, #tpu.memory_space<vmem>>, %arg16: memref<8x362xf32, #tpu.memory_space<vmem>>, %arg17: memref<4x362xf32, #tpu.memory_space<vmem>>) attributes {dimension_semantics = [#tpu.dimension_semantics<parallel>], iteration_bounds = array<i64: 2>, scalar_prefetch = 0 : i64, scratch_operands = 3 : i64, tpu.core_type = #tpu.core_type<tc>, window_params = [{transform_indices = @transform_0, window_bounds = array<i64: 1, 4, 8, 8>}, {transform_indices = @transform_1, window_bounds = array<i64: 1, 4, 16, 16>}, {pipeline_mode = #tpu.pipeline_mode<synchronous>, transform_indices = @transform_2, window_bounds = array<i64: 16, 8>}, {pipeline_mode = #tpu.pipeline_mode<synchronous>, transform_indices = @transform_3, window_bounds = array<i64: 8, 16>}, {transform_indices = @transform_4, window_bounds = array<i64: 4>}, {transform_indices = @transform_5, window_bounds = array<i64: 4>}, {pipeline_mode = #tpu.pipeline_mode<synchronous>, transform_indices = @transform_6, window_bounds = array<i64: 9, 4, 8>}, {pipeline_mode = #tpu.pipeline_mode<synchronous>, transform_indices = @transform_7, window_bounds = array<i64: 4, 1>}, {pipeline_mode = #tpu.pipeline_mode<synchronous>, transform_indices = @transform_8, window_bounds = array<i64: 4, 1>}, {pipeline_mode = #tpu.pipeline_mode<synchronous>, transform_indices = @transform_9, window_bounds = array<i64: 9, 4, 4>}, {pipeline_mode = #tpu.pipeline_mode<synchronous>, transform_indices = @transform_10, window_bounds = array<i64: 4, 1>}, {pipeline_mode = #tpu.pipeline_mode<synchronous>, transform_indices = @transform_11, window_bounds = array<i64: 4, 1>}, {pipeline_mode = #tpu.pipeline_mode<synchronous>, transform_indices = @transform_12, window_bounds = array<i64: 1, 324>}, {transform_indices = @transform_13, window_bounds = array<i64: 1, 4, 16, 16>}]} {
    %cst = arith.constant 0.000000e+00 : f32
    %0 = vector.broadcast %cst : f32 to vector<8x18x18xf32>
    %c0 = arith.constant 0 : index
    %c0_0 = arith.constant 0 : index
    %c0_1 = arith.constant 0 : index
    %1 = vector.load %arg15[%c0, %c0_0, %c0_1] : memref<8x18x18xf32, #tpu.memory_space<vmem>>, vector<8x18x18xf32>
    tpu.vector_store %arg15[%c0, %c0_0, %c0_1], %0 {strides = array<i32>} : memref<8x18x18xf32, #tpu.memory_space<vmem>>, vector<8x18x18xf32>,
    %c0_2 = arith.constant 0 : index
    %c0_3 = arith.constant 0 : index
    %c0_4 = arith.constant 0 : index
    %c0_5 = arith.constant 0 : index
    %2 = vector.load %arg2[%c0_2, %c0_3, %c0_4, %c0_5] : memref<1x4x16x16xf32, #tpu.memory_space<vmem>>, vector<1x4x16x16xf32>
    %3 = vector.shape_cast %2 : vector<1x4x16x16xf32> to vector<4x16x16xf32>
    %c0_6 = arith.constant 0 : index
    %c1 = arith.constant 1 : index
    %c1_7 = arith.constant 1 : index
    %4 = vector.load %arg15[%c0_6, %c1, %c1_7] : memref<8x18x18xf32, #tpu.memory_space<vmem>>, vector<4x16x16xf32>
    tpu.vector_store %arg15[%c0_6, %c1, %c1_7], %3 {strides = array<i32>} : memref<8x18x18xf32, #tpu.memory_space<vmem>>, vector<4x16x16xf32>,
    %c0_8 = arith.constant 0 : index
    %c0_9 = arith.constant 0 : index
    %c0_10 = arith.constant 0 : index
    %c0_11 = arith.constant 0 : index
    %5 = vector.load %arg1[%c0_8, %c0_9, %c0_10, %c0_11] : memref<1x4x8x8xf32, #tpu.memory_space<vmem>>, vector<1x4x8x8xf32>
    %6 = vector.shape_cast %5 : vector<1x4x8x8xf32> to vector<4x8x8xf32>
    %7 = vector.shape_cast %6 : vector<4x8x8xf32> to vector<32x8xf32>
    %c0_12 = arith.constant 0 : index
    %c0_13 = arith.constant 0 : index
    %8 = vector.load %arg4[%c0_12, %c0_13] : memref<8x16xf32, #tpu.memory_space<vmem>>, vector<8x16xf32>
    %cst_14 = arith.constant dense<0.000000e+00> : vector<32x16xf32>
    %9 = tpu.matmul %7, %8, %cst_14 {dimension_numbers = #tpu.dot_dimension_numbers<[1], [0], [0], [1], [0, 0, 1, 1], [], []>} : vector<32x8xf32>, vector<8x16xf32>, vector<32x16xf32> -> vector<32x16xf32>
    %10 = vector.extract_strided_slice %9 {offsets = [0, 0], sizes = [8, 16], strides = [1, 1]} : vector<32x16xf32> to vector<8x16xf32>
    %c0_15 = arith.constant 0 : index
    %c0_16 = arith.constant 0 : index
    %11 = vector.load %arg3[%c0_15, %c0_16] : memref<16x8xf32, #tpu.memory_space<vmem>>, vector<16x8xf32>
    %cst_17 = arith.constant dense<0.000000e+00> : vector<16x16xf32>
    %12 = tpu.matmul %11, %10, %cst_17 {dimension_numbers = #tpu.dot_dimension_numbers<[1], [0], [0], [1], [0, 0, 1, 1], [], []>} : vector<16x8xf32>, vector<8x16xf32>, vector<16x16xf32> -> vector<16x16xf32>
    %c0_18 = arith.constant 0 : index
    %13 = memref.load %arg5[%c0_18] : memref<4xf32, #tpu.memory_space<smem>>
    %14 = vector.broadcast %13 : f32 to vector<16x16xf32>
    %15 = arith.mulf %12, %14 : vector<16x16xf32>
    %c0_19 = arith.constant 0 : index
    %16 = memref.load %arg6[%c0_19] : memref<4xf32, #tpu.memory_space<smem>>
    %17 = vector.broadcast %16 : f32 to vector<16x16xf32>
    %18 = arith.addf %15, %17 : vector<16x16xf32>
    %c4 = arith.constant 4 : index
    %c1_20 = arith.constant 1 : index
    %c1_21 = arith.constant 1 : index
    %19 = vector.load %arg15[%c4, %c1_20, %c1_21] : memref<8x18x18xf32, #tpu.memory_space<vmem>>, vector<1x16x16xf32>
    %20 = vector.shape_cast %19 : vector<1x16x16xf32> to vector<16x16xf32>
    %21 = vector.shape_cast %18 : vector<16x16xf32> to vector<1x16x16xf32>
    tpu.vector_store %arg15[%c4, %c1_20, %c1_21], %21 {strides = array<i32>} : memref<8x18x18xf32, #tpu.memory_space<vmem>>, vector<1x16x16xf32>,
    %22 = vector.extract_strided_slice %9 {offsets = [8, 0], sizes = [8, 16], strides = [1, 1]} : vector<32x16xf32> to vector<8x16xf32>
    %c0_22 = arith.constant 0 : index
    %c0_23 = arith.constant 0 : index
    %23 = vector.load %arg3[%c0_22, %c0_23] : memref<16x8xf32, #tpu.memory_space<vmem>>, vector<16x8xf32>
    %cst_24 = arith.constant dense<0.000000e+00> : vector<16x16xf32>
    %24 = tpu.matmul %23, %22, %cst_24 {dimension_numbers = #tpu.dot_dimension_numbers<[1], [0], [0], [1], [0, 0, 1, 1], [], []>} : vector<16x8xf32>, vector<8x16xf32>, vector<16x16xf32> -> vector<16x16xf32>
    %c1_25 = arith.constant 1 : index
    %25 = memref.load %arg5[%c1_25] : memref<4xf32, #tpu.memory_space<smem>>
    %26 = vector.broadcast %25 : f32 to vector<16x16xf32>
    %27 = arith.mulf %24, %26 : vector<16x16xf32>
    %c1_26 = arith.constant 1 : index
    %28 = memref.load %arg6[%c1_26] : memref<4xf32, #tpu.memory_space<smem>>
    %29 = vector.broadcast %28 : f32 to vector<16x16xf32>
    %30 = arith.addf %27, %29 : vector<16x16xf32>
    %c5 = arith.constant 5 : index
    %c1_27 = arith.constant 1 : index
    %c1_28 = arith.constant 1 : index
    %31 = vector.load %arg15[%c5, %c1_27, %c1_28] : memref<8x18x18xf32, #tpu.memory_space<vmem>>, vector<1x16x16xf32>
    %32 = vector.shape_cast %31 : vector<1x16x16xf32> to vector<16x16xf32>
    %33 = vector.shape_cast %30 : vector<16x16xf32> to vector<1x16x16xf32>
    tpu.vector_store %arg15[%c5, %c1_27, %c1_28], %33 {strides = array<i32>} : memref<8x18x18xf32, #tpu.memory_space<vmem>>, vector<1x16x16xf32>,
    %34 = vector.extract_strided_slice %9 {offsets = [16, 0], sizes = [8, 16], strides = [1, 1]} : vector<32x16xf32> to vector<8x16xf32>
    %c0_29 = arith.constant 0 : index
    %c0_30 = arith.constant 0 : index
    %35 = vector.load %arg3[%c0_29, %c0_30] : memref<16x8xf32, #tpu.memory_space<vmem>>, vector<16x8xf32>
    %cst_31 = arith.constant dense<0.000000e+00> : vector<16x16xf32>
    %36 = tpu.matmul %35, %34, %cst_31 {dimension_numbers = #tpu.dot_dimension_numbers<[1], [0], [0], [1], [0, 0, 1, 1], [], []>} : vector<16x8xf32>, vector<8x16xf32>, vector<16x16xf32> -> vector<16x16xf32>
    %c2 = arith.constant 2 : index
    %37 = memref.load %arg5[%c2] : memref<4xf32, #tpu.memory_space<smem>>
    %38 = vector.broadcast %37 : f32 to vector<16x16xf32>
    %39 = arith.mulf %36, %38 : vector<16x16xf32>
    %c2_32 = arith.constant 2 : index
    %40 = memref.load %arg6[%c2_32] : memref<4xf32, #tpu.memory_space<smem>>
    %41 = vector.broadcast %40 : f32 to vector<16x16xf32>
    %42 = arith.addf %39, %41 : vector<16x16xf32>
    %c6 = arith.constant 6 : index
    %c1_33 = arith.constant 1 : index
    %c1_34 = arith.constant 1 : index
    %43 = vector.load %arg15[%c6, %c1_33, %c1_34] : memref<8x18x18xf32, #tpu.memory_space<vmem>>, vector<1x16x16xf32>
    %44 = vector.shape_cast %43 : vector<1x16x16xf32> to vector<16x16xf32>
    %45 = vector.shape_cast %42 : vector<16x16xf32> to vector<1x16x16xf32>
    tpu.vector_store %arg15[%c6, %c1_33, %c1_34], %45 {strides = array<i32>} : memref<8x18x18xf32, #tpu.memory_space<vmem>>, vector<1x16x16xf32>,
    %46 = vector.extract_strided_slice %9 {offsets = [24, 0], sizes = [8, 16], strides = [1, 1]} : vector<32x16xf32> to vector<8x16xf32>
    %c0_35 = arith.constant 0 : index
    %c0_36 = arith.constant 0 : index
    %47 = vector.load %arg3[%c0_35, %c0_36] : memref<16x8xf32, #tpu.memory_space<vmem>>, vector<16x8xf32>
    %cst_37 = arith.constant dense<0.000000e+00> : vector<16x16xf32>
    %48 = tpu.matmul %47, %46, %cst_37 {dimension_numbers = #tpu.dot_dimension_numbers<[1], [0], [0], [1], [0, 0, 1, 1], [], []>} : vector<16x8xf32>, vector<8x16xf32>, vector<16x16xf32> -> vector<16x16xf32>
    %c3 = arith.constant 3 : index
    %49 = memref.load %arg5[%c3] : memref<4xf32, #tpu.memory_space<smem>>
    %50 = vector.broadcast %49 : f32 to vector<16x16xf32>
    %51 = arith.mulf %48, %50 : vector<16x16xf32>
    %c3_38 = arith.constant 3 : index
    %52 = memref.load %arg6[%c3_38] : memref<4xf32, #tpu.memory_space<smem>>
    %53 = vector.broadcast %52 : f32 to vector<16x16xf32>
    %54 = arith.addf %51, %53 : vector<16x16xf32>
    %c7 = arith.constant 7 : index
    %c1_39 = arith.constant 1 : index
    %c1_40 = arith.constant 1 : index
    %55 = vector.load %arg15[%c7, %c1_39, %c1_40] : memref<8x18x18xf32, #tpu.memory_space<vmem>>, vector<1x16x16xf32>
    %56 = vector.shape_cast %55 : vector<1x16x16xf32> to vector<16x16xf32>
    %57 = vector.shape_cast %54 : vector<16x16xf32> to vector<1x16x16xf32>
    tpu.vector_store %arg15[%c7, %c1_39, %c1_40], %57 {strides = array<i32>} : memref<8x18x18xf32, #tpu.memory_space<vmem>>, vector<1x16x16xf32>,
    %cst_41 = arith.constant 0.000000e+00 : f32
    %58 = vector.broadcast %cst_41 : f32 to vector<8x362xf32>
    %c0_42 = arith.constant 0 : index
    %c0_43 = arith.constant 0 : index
    %59 = vector.load %arg16[%c0_42, %c0_43] : memref<8x362xf32, #tpu.memory_space<vmem>>, vector<8x362xf32>
    tpu.vector_store %arg16[%c0_42, %c0_43], %58 {strides = array<i32>} : memref<8x362xf32, #tpu.memory_space<vmem>>, vector<8x362xf32>,
    %c0_44 = arith.constant 0 : index
    %c0_45 = arith.constant 0 : index
    %c0_46 = arith.constant 0 : index
    %60 = vector.load %arg15[%c0_44, %c0_45, %c0_46] : memref<8x18x18xf32, #tpu.memory_space<vmem>>, vector<8x1x18xf32>
    %61 = vector.shape_cast %60 : vector<8x1x18xf32> to vector<8x18xf32>
    %c0_47 = arith.constant 0 : index
    %c19 = arith.constant 19 : index
    %62 = vector.load %arg16[%c0_47, %c19] : memref<8x362xf32, #tpu.memory_space<vmem>>, vector<8x18xf32>
    tpu.vector_store %arg16[%c0_47, %c19], %61 {strides = array<i32>} : memref<8x362xf32, #tpu.memory_space<vmem>>, vector<8x18xf32>,
    %c0_48 = arith.constant 0 : index
    %c1_49 = arith.constant 1 : index
    %c0_50 = arith.constant 0 : index
    %63 = vector.load %arg15[%c0_48, %c1_49, %c0_50] : memref<8x18x18xf32, #tpu.memory_space<vmem>>, vector<8x1x18xf32>
    %64 = vector.shape_cast %63 : vector<8x1x18xf32> to vector<8x18xf32>
    %c0_51 = arith.constant 0 : index
    %c37 = arith.constant 37 : index
    %65 = vector.load %arg16[%c0_51, %c37] : memref<8x362xf32, #tpu.memory_space<vmem>>, vector<8x18xf32>
    tpu.vector_store %arg16[%c0_51, %c37], %64 {strides = array<i32>} : memref<8x362xf32, #tpu.memory_space<vmem>>, vector<8x18xf32>,
    %c0_52 = arith.constant 0 : index
    %c2_53 = arith.constant 2 : index
    %c0_54 = arith.constant 0 : index
    %66 = vector.load %arg15[%c0_52, %c2_53, %c0_54] : memref<8x18x18xf32, #tpu.memory_space<vmem>>, vector<8x1x18xf32>
    %67 = vector.shape_cast %66 : vector<8x1x18xf32> to vector<8x18xf32>
    %c0_55 = arith.constant 0 : index
    %c55 = arith.constant 55 : index
    %68 = vector.load %arg16[%c0_55, %c55] : memref<8x362xf32, #tpu.memory_space<vmem>>, vector<8x18xf32>
    tpu.vector_store %arg16[%c0_55, %c55], %67 {strides = array<i32>} : memref<8x362xf32, #tpu.memory_space<vmem>>, vector<8x18xf32>,
    %c0_56 = arith.constant 0 : index
    %c3_57 = arith.constant 3 : index
    %c0_58 = arith.constant 0 : index
    %69 = vector.load %arg15[%c0_56, %c3_57, %c0_58] : memref<8x18x18xf32, #tpu.memory_space<vmem>>, vector<8x1x18xf32>
    %70 = vector.shape_cast %69 : vector<8x1x18xf32> to vector<8x18xf32>
    %c0_59 = arith.constant 0 : index
    %c73 = arith.constant 73 : index
    %71 = vector.load %arg16[%c0_59, %c73] : memref<8x362xf32, #tpu.memory_space<vmem>>, vector<8x18xf32>
    tpu.vector_store %arg16[%c0_59, %c73], %70 {strides = array<i32>} : memref<8x362xf32, #tpu.memory_space<vmem>>, vector<8x18xf32>,
    %c0_60 = arith.constant 0 : index
    %c4_61 = arith.constant 4 : index
    %c0_62 = arith.constant 0 : index
    %72 = vector.load %arg15[%c0_60, %c4_61, %c0_62] : memref<8x18x18xf32, #tpu.memory_space<vmem>>, vector<8x1x18xf32>
    %73 = vector.shape_cast %72 : vector<8x1x18xf32> to vector<8x18xf32>
    %c0_63 = arith.constant 0 : index
    %c91 = arith.constant 91 : index
    %74 = vector.load %arg16[%c0_63, %c91] : memref<8x362xf32, #tpu.memory_space<vmem>>, vector<8x18xf32>
    tpu.vector_store %arg16[%c0_63, %c91], %73 {strides = array<i32>} : memref<8x362xf32, #tpu.memory_space<vmem>>, vector<8x18xf32>,
    %c0_64 = arith.constant 0 : index
    %c5_65 = arith.constant 5 : index
    %c0_66 = arith.constant 0 : index
    %75 = vector.load %arg15[%c0_64, %c5_65, %c0_66] : memref<8x18x18xf32, #tpu.memory_space<vmem>>, vector<8x1x18xf32>
    %76 = vector.shape_cast %75 : vector<8x1x18xf32> to vector<8x18xf32>
    %c0_67 = arith.constant 0 : index
    %c109 = arith.constant 109 : index
    %77 = vector.load %arg16[%c0_67, %c109] : memref<8x362xf32, #tpu.memory_space<vmem>>, vector<8x18xf32>
    tpu.vector_store %arg16[%c0_67, %c109], %76 {strides = array<i32>} : memref<8x362xf32, #tpu.memory_space<vmem>>, vector<8x18xf32>,
    %c0_68 = arith.constant 0 : index
    %c6_69 = arith.constant 6 : index
    %c0_70 = arith.constant 0 : index
    %78 = vector.load %arg15[%c0_68, %c6_69, %c0_70] : memref<8x18x18xf32, #tpu.memory_space<vmem>>, vector<8x1x18xf32>
    %79 = vector.shape_cast %78 : vector<8x1x18xf32> to vector<8x18xf32>
    %c0_71 = arith.constant 0 : index
    %c127 = arith.constant 127 : index
    %80 = vector.load %arg16[%c0_71, %c127] : memref<8x362xf32, #tpu.memory_space<vmem>>, vector<8x18xf32>
    tpu.vector_store %arg16[%c0_71, %c127], %79 {strides = array<i32>} : memref<8x362xf32, #tpu.memory_space<vmem>>, vector<8x18xf32>,
    %c0_72 = arith.constant 0 : index
    %c7_73 = arith.constant 7 : index
    %c0_74 = arith.constant 0 : index
    %81 = vector.load %arg15[%c0_72, %c7_73, %c0_74] : memref<8x18x18xf32, #tpu.memory_space<vmem>>, vector<8x1x18xf32>
    %82 = vector.shape_cast %81 : vector<8x1x18xf32> to vector<8x18xf32>
    %c0_75 = arith.constant 0 : index
    %c145 = arith.constant 145 : index
    %83 = vector.load %arg16[%c0_75, %c145] : memref<8x362xf32, #tpu.memory_space<vmem>>, vector<8x18xf32>
    tpu.vector_store %arg16[%c0_75, %c145], %82 {strides = array<i32>} : memref<8x362xf32, #tpu.memory_space<vmem>>, vector<8x18xf32>,
    %c0_76 = arith.constant 0 : index
    %c8 = arith.constant 8 : index
    %c0_77 = arith.constant 0 : index
    %84 = vector.load %arg15[%c0_76, %c8, %c0_77] : memref<8x18x18xf32, #tpu.memory_space<vmem>>, vector<8x1x18xf32>
    %85 = vector.shape_cast %84 : vector<8x1x18xf32> to vector<8x18xf32>
    %c0_78 = arith.constant 0 : index
    %c163 = arith.constant 163 : index
    %86 = vector.load %arg16[%c0_78, %c163] : memref<8x362xf32, #tpu.memory_space<vmem>>, vector<8x18xf32>
    tpu.vector_store %arg16[%c0_78, %c163], %85 {strides = array<i32>} : memref<8x362xf32, #tpu.memory_space<vmem>>, vector<8x18xf32>,
    %c0_79 = arith.constant 0 : index
    %c9 = arith.constant 9 : index
    %c0_80 = arith.constant 0 : index
    %87 = vector.load %arg15[%c0_79, %c9, %c0_80] : memref<8x18x18xf32, #tpu.memory_space<vmem>>, vector<8x1x18xf32>
    %88 = vector.shape_cast %87 : vector<8x1x18xf32> to vector<8x18xf32>
    %c0_81 = arith.constant 0 : index
    %c181 = arith.constant 181 : index
    %89 = vector.load %arg16[%c0_81, %c181] : memref<8x362xf32, #tpu.memory_space<vmem>>, vector<8x18xf32>
    tpu.vector_store %arg16[%c0_81, %c181], %88 {strides = array<i32>} : memref<8x362xf32, #tpu.memory_space<vmem>>, vector<8x18xf32>,
    %c0_82 = arith.constant 0 : index
    %c10 = arith.constant 10 : index
    %c0_83 = arith.constant 0 : index
    %90 = vector.load %arg15[%c0_82, %c10, %c0_83] : memref<8x18x18xf32, #tpu.memory_space<vmem>>, vector<8x1x18xf32>
    %91 = vector.shape_cast %90 : vector<8x1x18xf32> to vector<8x18xf32>
    %c0_84 = arith.constant 0 : index
    %c199 = arith.constant 199 : index
    %92 = vector.load %arg16[%c0_84, %c199] : memref<8x362xf32, #tpu.memory_space<vmem>>, vector<8x18xf32>
    tpu.vector_store %arg16[%c0_84, %c199], %91 {strides = array<i32>} : memref<8x362xf32, #tpu.memory_space<vmem>>, vector<8x18xf32>,
    %c0_85 = arith.constant 0 : index
    %c11 = arith.constant 11 : index
    %c0_86 = arith.constant 0 : index
    %93 = vector.load %arg15[%c0_85, %c11, %c0_86] : memref<8x18x18xf32, #tpu.memory_space<vmem>>, vector<8x1x18xf32>
    %94 = vector.shape_cast %93 : vector<8x1x18xf32> to vector<8x18xf32>
    %c0_87 = arith.constant 0 : index
    %c217 = arith.constant 217 : index
    %95 = vector.load %arg16[%c0_87, %c217] : memref<8x362xf32, #tpu.memory_space<vmem>>, vector<8x18xf32>
    tpu.vector_store %arg16[%c0_87, %c217], %94 {strides = array<i32>} : memref<8x362xf32, #tpu.memory_space<vmem>>, vector<8x18xf32>,
    %c0_88 = arith.constant 0 : index
    %c12 = arith.constant 12 : index
    %c0_89 = arith.constant 0 : index
    %96 = vector.load %arg15[%c0_88, %c12, %c0_89] : memref<8x18x18xf32, #tpu.memory_space<vmem>>, vector<8x1x18xf32>
    %97 = vector.shape_cast %96 : vector<8x1x18xf32> to vector<8x18xf32>
    %c0_90 = arith.constant 0 : index
    %c235 = arith.constant 235 : index
    %98 = vector.load %arg16[%c0_90, %c235] : memref<8x362xf32, #tpu.memory_space<vmem>>, vector<8x18xf32>
    tpu.vector_store %arg16[%c0_90, %c235], %97 {strides = array<i32>} : memref<8x362xf32, #tpu.memory_space<vmem>>, vector<8x18xf32>,
    %c0_91 = arith.constant 0 : index
    %c13 = arith.constant 13 : index
    %c0_92 = arith.constant 0 : index
    %99 = vector.load %arg15[%c0_91, %c13, %c0_92] : memref<8x18x18xf32, #tpu.memory_space<vmem>>, vector<8x1x18xf32>
    %100 = vector.shape_cast %99 : vector<8x1x18xf32> to vector<8x18xf32>
    %c0_93 = arith.constant 0 : index
    %c253 = arith.constant 253 : index
    %101 = vector.load %arg16[%c0_93, %c253] : memref<8x362xf32, #tpu.memory_space<vmem>>, vector<8x18xf32>
    tpu.vector_store %arg16[%c0_93, %c253], %100 {strides = array<i32>} : memref<8x362xf32, #tpu.memory_space<vmem>>, vector<8x18xf32>,
    %c0_94 = arith.constant 0 : index
    %c14 = arith.constant 14 : index
    %c0_95 = arith.constant 0 : index
    %102 = vector.load %arg15[%c0_94, %c14, %c0_95] : memref<8x18x18xf32, #tpu.memory_space<vmem>>, vector<8x1x18xf32>
    %103 = vector.shape_cast %102 : vector<8x1x18xf32> to vector<8x18xf32>
    %c0_96 = arith.constant 0 : index
    %c271 = arith.constant 271 : index
    %104 = vector.load %arg16[%c0_96, %c271] : memref<8x362xf32, #tpu.memory_space<vmem>>, vector<8x18xf32>
    tpu.vector_store %arg16[%c0_96, %c271], %103 {strides = array<i32>} : memref<8x362xf32, #tpu.memory_space<vmem>>, vector<8x18xf32>,
    %c0_97 = arith.constant 0 : index
    %c15 = arith.constant 15 : index
    %c0_98 = arith.constant 0 : index
    %105 = vector.load %arg15[%c0_97, %c15, %c0_98] : memref<8x18x18xf32, #tpu.memory_space<vmem>>, vector<8x1x18xf32>
    %106 = vector.shape_cast %105 : vector<8x1x18xf32> to vector<8x18xf32>
    %c0_99 = arith.constant 0 : index
    %c289 = arith.constant 289 : index
    %107 = vector.load %arg16[%c0_99, %c289] : memref<8x362xf32, #tpu.memory_space<vmem>>, vector<8x18xf32>
    tpu.vector_store %arg16[%c0_99, %c289], %106 {strides = array<i32>} : memref<8x362xf32, #tpu.memory_space<vmem>>, vector<8x18xf32>,
    %c0_100 = arith.constant 0 : index
    %c16 = arith.constant 16 : index
    %c0_101 = arith.constant 0 : index
    %108 = vector.load %arg15[%c0_100, %c16, %c0_101] : memref<8x18x18xf32, #tpu.memory_space<vmem>>, vector<8x1x18xf32>
    %109 = vector.shape_cast %108 : vector<8x1x18xf32> to vector<8x18xf32>
    %c0_102 = arith.constant 0 : index
    %c307 = arith.constant 307 : index
    %110 = vector.load %arg16[%c0_102, %c307] : memref<8x362xf32, #tpu.memory_space<vmem>>, vector<8x18xf32>
    tpu.vector_store %arg16[%c0_102, %c307], %109 {strides = array<i32>} : memref<8x362xf32, #tpu.memory_space<vmem>>, vector<8x18xf32>,
    %c0_103 = arith.constant 0 : index
    %c17 = arith.constant 17 : index
    %c0_104 = arith.constant 0 : index
    %111 = vector.load %arg15[%c0_103, %c17, %c0_104] : memref<8x18x18xf32, #tpu.memory_space<vmem>>, vector<8x1x18xf32>
    %112 = vector.shape_cast %111 : vector<8x1x18xf32> to vector<8x18xf32>
    %c0_105 = arith.constant 0 : index
    %c325 = arith.constant 325 : index
    %113 = vector.load %arg16[%c0_105, %c325] : memref<8x362xf32, #tpu.memory_space<vmem>>, vector<8x18xf32>
    tpu.vector_store %arg16[%c0_105, %c325], %112 {strides = array<i32>} : memref<8x362xf32, #tpu.memory_space<vmem>>, vector<8x18xf32>,
    %cst_106 = arith.constant 0.000000e+00 : f32
    %114 = vector.broadcast %cst_106 : f32 to vector<4x324xf32>
    %c0_107 = arith.constant 0 : index
    %c0_108 = arith.constant 0 : index
    %115 = vector.load %arg16[%c0_107, %c0_108] : memref<8x362xf32, #tpu.memory_space<vmem>>, vector<8x324xf32>
    %c0_109 = arith.constant 0 : index
    %c0_110 = arith.constant 0 : index
    %c0_111 = arith.constant 0 : index
    %116 = vector.load %arg7[%c0_109, %c0_110, %c0_111] : memref<9x4x8xf32, #tpu.memory_space<vmem>>, vector<1x4x8xf32>
    %117 = vector.shape_cast %116 : vector<1x4x8xf32> to vector<4x8xf32>
    %cst_112 = arith.constant dense<0.000000e+00> : vector<4x324xf32>
    %118 = tpu.matmul %117, %115, %cst_112 {dimension_numbers = #tpu.dot_dimension_numbers<[1], [0], [0], [1], [0, 0, 1, 1], [], []>} : vector<4x8xf32>, vector<8x324xf32>, vector<4x324xf32> -> vector<4x324xf32>
    %119 = arith.addf %114, %118 : vector<4x324xf32>
    %c0_113 = arith.constant 0 : index
    %c1_114 = arith.constant 1 : index
    %120 = vector.load %arg16[%c0_113, %c1_114] : memref<8x362xf32, #tpu.memory_space<vmem>>, vector<8x324xf32>
    %c1_115 = arith.constant 1 : index
    %c0_116 = arith.constant 0 : index
    %c0_117 = arith.constant 0 : index
    %121 = vector.load %arg7[%c1_115, %c0_116, %c0_117] : memref<9x4x8xf32, #tpu.memory_space<vmem>>, vector<1x4x8xf32>
    %122 = vector.shape_cast %121 : vector<1x4x8xf32> to vector<4x8xf32>
    %cst_118 = arith.constant dense<0.000000e+00> : vector<4x324xf32>
    %123 = tpu.matmul %122, %120, %cst_118 {dimension_numbers = #tpu.dot_dimension_numbers<[1], [0], [0], [1], [0, 0, 1, 1], [], []>} : vector<4x8xf32>, vector<8x324xf32>, vector<4x324xf32> -> vector<4x324xf32>
    %124 = arith.addf %119, %123 : vector<4x324xf32>
    %c0_119 = arith.constant 0 : index
    %c2_120 = arith.constant 2 : index
    %125 = vector.load %arg16[%c0_119, %c2_120] : memref<8x362xf32, #tpu.memory_space<vmem>>, vector<8x324xf32>
    %c2_121 = arith.constant 2 : index
    %c0_122 = arith.constant 0 : index
    %c0_123 = arith.constant 0 : index
    %126 = vector.load %arg7[%c2_121, %c0_122, %c0_123] : memref<9x4x8xf32, #tpu.memory_space<vmem>>, vector<1x4x8xf32>
    %127 = vector.shape_cast %126 : vector<1x4x8xf32> to vector<4x8xf32>
    %cst_124 = arith.constant dense<0.000000e+00> : vector<4x324xf32>
    %128 = tpu.matmul %127, %125, %cst_124 {dimension_numbers = #tpu.dot_dimension_numbers<[1], [0], [0], [1], [0, 0, 1, 1], [], []>} : vector<4x8xf32>, vector<8x324xf32>, vector<4x324xf32> -> vector<4x324xf32>
    %129 = arith.addf %124, %128 : vector<4x324xf32>
    %c0_125 = arith.constant 0 : index
    %c18 = arith.constant 18 : index
    %130 = vector.load %arg16[%c0_125, %c18] : memref<8x362xf32, #tpu.memory_space<vmem>>, vector<8x324xf32>
    %c3_126 = arith.constant 3 : index
    %c0_127 = arith.constant 0 : index
    %c0_128 = arith.constant 0 : index
    %131 = vector.load %arg7[%c3_126, %c0_127, %c0_128] : memref<9x4x8xf32, #tpu.memory_space<vmem>>, vector<1x4x8xf32>
    %132 = vector.shape_cast %131 : vector<1x4x8xf32> to vector<4x8xf32>
    %cst_129 = arith.constant dense<0.000000e+00> : vector<4x324xf32>
    %133 = tpu.matmul %132, %130, %cst_129 {dimension_numbers = #tpu.dot_dimension_numbers<[1], [0], [0], [1], [0, 0, 1, 1], [], []>} : vector<4x8xf32>, vector<8x324xf32>, vector<4x324xf32> -> vector<4x324xf32>
    %134 = arith.addf %129, %133 : vector<4x324xf32>
    %c0_130 = arith.constant 0 : index
    %c19_131 = arith.constant 19 : index
    %135 = vector.load %arg16[%c0_130, %c19_131] : memref<8x362xf32, #tpu.memory_space<vmem>>, vector<8x324xf32>
    %c4_132 = arith.constant 4 : index
    %c0_133 = arith.constant 0 : index
    %c0_134 = arith.constant 0 : index
    %136 = vector.load %arg7[%c4_132, %c0_133, %c0_134] : memref<9x4x8xf32, #tpu.memory_space<vmem>>, vector<1x4x8xf32>
    %137 = vector.shape_cast %136 : vector<1x4x8xf32> to vector<4x8xf32>
    %cst_135 = arith.constant dense<0.000000e+00> : vector<4x324xf32>
    %138 = tpu.matmul %137, %135, %cst_135 {dimension_numbers = #tpu.dot_dimension_numbers<[1], [0], [0], [1], [0, 0, 1, 1], [], []>} : vector<4x8xf32>, vector<8x324xf32>, vector<4x324xf32> -> vector<4x324xf32>
    %139 = arith.addf %134, %138 : vector<4x324xf32>
    %c0_136 = arith.constant 0 : index
    %c20 = arith.constant 20 : index
    %140 = vector.load %arg16[%c0_136, %c20] : memref<8x362xf32, #tpu.memory_space<vmem>>, vector<8x324xf32>
    %c5_137 = arith.constant 5 : index
    %c0_138 = arith.constant 0 : index
    %c0_139 = arith.constant 0 : index
    %141 = vector.load %arg7[%c5_137, %c0_138, %c0_139] : memref<9x4x8xf32, #tpu.memory_space<vmem>>, vector<1x4x8xf32>
    %142 = vector.shape_cast %141 : vector<1x4x8xf32> to vector<4x8xf32>
    %cst_140 = arith.constant dense<0.000000e+00> : vector<4x324xf32>
    %143 = tpu.matmul %142, %140, %cst_140 {dimension_numbers = #tpu.dot_dimension_numbers<[1], [0], [0], [1], [0, 0, 1, 1], [], []>} : vector<4x8xf32>, vector<8x324xf32>, vector<4x324xf32> -> vector<4x324xf32>
    %144 = arith.addf %139, %143 : vector<4x324xf32>
    %c0_141 = arith.constant 0 : index
    %c36 = arith.constant 36 : index
    %145 = vector.load %arg16[%c0_141, %c36] : memref<8x362xf32, #tpu.memory_space<vmem>>, vector<8x324xf32>
    %c6_142 = arith.constant 6 : index
    %c0_143 = arith.constant 0 : index
    %c0_144 = arith.constant 0 : index
    %146 = vector.load %arg7[%c6_142, %c0_143, %c0_144] : memref<9x4x8xf32, #tpu.memory_space<vmem>>, vector<1x4x8xf32>
    %147 = vector.shape_cast %146 : vector<1x4x8xf32> to vector<4x8xf32>
    %cst_145 = arith.constant dense<0.000000e+00> : vector<4x324xf32>
    %148 = tpu.matmul %147, %145, %cst_145 {dimension_numbers = #tpu.dot_dimension_numbers<[1], [0], [0], [1], [0, 0, 1, 1], [], []>} : vector<4x8xf32>, vector<8x324xf32>, vector<4x324xf32> -> vector<4x324xf32>
    %149 = arith.addf %144, %148 : vector<4x324xf32>
    %c0_146 = arith.constant 0 : index
    %c37_147 = arith.constant 37 : index
    %150 = vector.load %arg16[%c0_146, %c37_147] : memref<8x362xf32, #tpu.memory_space<vmem>>, vector<8x324xf32>
    %c7_148 = arith.constant 7 : index
    %c0_149 = arith.constant 0 : index
    %c0_150 = arith.constant 0 : index
    %151 = vector.load %arg7[%c7_148, %c0_149, %c0_150] : memref<9x4x8xf32, #tpu.memory_space<vmem>>, vector<1x4x8xf32>
    %152 = vector.shape_cast %151 : vector<1x4x8xf32> to vector<4x8xf32>
    %cst_151 = arith.constant dense<0.000000e+00> : vector<4x324xf32>
    %153 = tpu.matmul %152, %150, %cst_151 {dimension_numbers = #tpu.dot_dimension_numbers<[1], [0], [0], [1], [0, 0, 1, 1], [], []>} : vector<4x8xf32>, vector<8x324xf32>, vector<4x324xf32> -> vector<4x324xf32>
    %154 = arith.addf %149, %153 : vector<4x324xf32>
    %c0_152 = arith.constant 0 : index
    %c38 = arith.constant 38 : index
    %155 = vector.load %arg16[%c0_152, %c38] : memref<8x362xf32, #tpu.memory_space<vmem>>, vector<8x324xf32>
    %c8_153 = arith.constant 8 : index
    %c0_154 = arith.constant 0 : index
    %c0_155 = arith.constant 0 : index
    %156 = vector.load %arg7[%c8_153, %c0_154, %c0_155] : memref<9x4x8xf32, #tpu.memory_space<vmem>>, vector<1x4x8xf32>
    %157 = vector.shape_cast %156 : vector<1x4x8xf32> to vector<4x8xf32>
    %cst_156 = arith.constant dense<0.000000e+00> : vector<4x324xf32>
    %158 = tpu.matmul %157, %155, %cst_156 {dimension_numbers = #tpu.dot_dimension_numbers<[1], [0], [0], [1], [0, 0, 1, 1], [], []>} : vector<4x8xf32>, vector<8x324xf32>, vector<4x324xf32> -> vector<4x324xf32>
    %159 = arith.addf %154, %158 : vector<4x324xf32>
    %c0_157 = arith.constant 0 : index
    %c0_158 = arith.constant 0 : index
    %160 = vector.load %arg8[%c0_157, %c0_158] : memref<4x1xf32, #tpu.memory_space<vmem>>, vector<4x1xf32>
    %161 = vector.broadcast %160 : vector<4x1xf32> to vector<4x324xf32>
    %162 = arith.mulf %159, %161 : vector<4x324xf32>
    %c0_159 = arith.constant 0 : index
    %c0_160 = arith.constant 0 : index
    %163 = vector.load %arg9[%c0_159, %c0_160] : memref<4x1xf32, #tpu.memory_space<vmem>>, vector<4x1xf32>
    %164 = vector.broadcast %163 : vector<4x1xf32> to vector<4x324xf32>
    %165 = arith.addf %162, %164 : vector<4x324xf32>
    %cst_161 = arith.constant 0.000000e+00 : f32
    %166 = vector.broadcast %cst_161 : f32 to vector<4x324xf32>
    %167 = arith.maximumf %165, %166 : vector<4x324xf32>
    %c0_162 = arith.constant 0 : index
    %c0_163 = arith.constant 0 : index
    %168 = vector.load %arg13[%c0_162, %c0_163] : memref<1x324xf32, #tpu.memory_space<vmem>>, vector<1x324xf32>
    %169 = vector.broadcast %168 : vector<1x324xf32> to vector<4x324xf32>
    %170 = arith.mulf %167, %169 : vector<4x324xf32>
    %cst_164 = arith.constant 0.000000e+00 : f32
    %171 = vector.broadcast %cst_164 : f32 to vector<4x362xf32>
    %c0_165 = arith.constant 0 : index
    %c0_166 = arith.constant 0 : index
    %172 = vector.load %arg17[%c0_165, %c0_166] : memref<4x362xf32, #tpu.memory_space<vmem>>, vector<4x362xf32>
    tpu.vector_store %arg17[%c0_165, %c0_166], %171 {strides = array<i32>} : memref<4x362xf32, #tpu.memory_space<vmem>>, vector<4x362xf32>,
    %c0_167 = arith.constant 0 : index
    %c19_168 = arith.constant 19 : index
    %173 = vector.load %arg17[%c0_167, %c19_168] : memref<4x362xf32, #tpu.memory_space<vmem>>, vector<4x324xf32>
    tpu.vector_store %arg17[%c0_167, %c19_168], %170 {strides = array<i32>} : memref<4x362xf32, #tpu.memory_space<vmem>>, vector<4x324xf32>,
    %cst_169 = arith.constant 0.000000e+00 : f32
    %174 = vector.broadcast %cst_169 : f32 to vector<4x324xf32>
    %c0_170 = arith.constant 0 : index
    %c0_171 = arith.constant 0 : index
    %175 = vector.load %arg17[%c0_170, %c0_171] : memref<4x362xf32, #tpu.memory_space<vmem>>, vector<4x324xf32>
    %c0_172 = arith.constant 0 : index
    %c0_173 = arith.constant 0 : index
    %c0_174 = arith.constant 0 : index
    %176 = vector.load %arg10[%c0_172, %c0_173, %c0_174] : memref<9x4x4xf32, #tpu.memory_space<vmem>>, vector<1x4x4xf32>
    %177 = vector.shape_cast %176 : vector<1x4x4xf32> to vector<4x4xf32>
    %cst_175 = arith.constant dense<0.000000e+00> : vector<4x324xf32>
    %178 = tpu.matmul %177, %175, %cst_175 {dimension_numbers = #tpu.dot_dimension_numbers<[1], [0], [0], [1], [0, 0, 1, 1], [], []>} : vector<4x4xf32>, vector<4x324xf32>, vector<4x324xf32> -> vector<4x324xf32>
    %179 = arith.addf %174, %178 : vector<4x324xf32>
    %c0_176 = arith.constant 0 : index
    %c1_177 = arith.constant 1 : index
    %180 = vector.load %arg17[%c0_176, %c1_177] : memref<4x362xf32, #tpu.memory_space<vmem>>, vector<4x324xf32>
    %c1_178 = arith.constant 1 : index
    %c0_179 = arith.constant 0 : index
    %c0_180 = arith.constant 0 : index
    %181 = vector.load %arg10[%c1_178, %c0_179, %c0_180] : memref<9x4x4xf32, #tpu.memory_space<vmem>>, vector<1x4x4xf32>
    %182 = vector.shape_cast %181 : vector<1x4x4xf32> to vector<4x4xf32>
    %cst_181 = arith.constant dense<0.000000e+00> : vector<4x324xf32>
    %183 = tpu.matmul %182, %180, %cst_181 {dimension_numbers = #tpu.dot_dimension_numbers<[1], [0], [0], [1], [0, 0, 1, 1], [], []>} : vector<4x4xf32>, vector<4x324xf32>, vector<4x324xf32> -> vector<4x324xf32>
    %184 = arith.addf %179, %183 : vector<4x324xf32>
    %c0_182 = arith.constant 0 : index
    %c2_183 = arith.constant 2 : index
    %185 = vector.load %arg17[%c0_182, %c2_183] : memref<4x362xf32, #tpu.memory_space<vmem>>, vector<4x324xf32>
    %c2_184 = arith.constant 2 : index
    %c0_185 = arith.constant 0 : index
    %c0_186 = arith.constant 0 : index
    %186 = vector.load %arg10[%c2_184, %c0_185, %c0_186] : memref<9x4x4xf32, #tpu.memory_space<vmem>>, vector<1x4x4xf32>
    %187 = vector.shape_cast %186 : vector<1x4x4xf32> to vector<4x4xf32>
    %cst_187 = arith.constant dense<0.000000e+00> : vector<4x324xf32>
    %188 = tpu.matmul %187, %185, %cst_187 {dimension_numbers = #tpu.dot_dimension_numbers<[1], [0], [0], [1], [0, 0, 1, 1], [], []>} : vector<4x4xf32>, vector<4x324xf32>, vector<4x324xf32> -> vector<4x324xf32>
    %189 = arith.addf %184, %188 : vector<4x324xf32>
    %c0_188 = arith.constant 0 : index
    %c18_189 = arith.constant 18 : index
    %190 = vector.load %arg17[%c0_188, %c18_189] : memref<4x362xf32, #tpu.memory_space<vmem>>, vector<4x324xf32>
    %c3_190 = arith.constant 3 : index
    %c0_191 = arith.constant 0 : index
    %c0_192 = arith.constant 0 : index
    %191 = vector.load %arg10[%c3_190, %c0_191, %c0_192] : memref<9x4x4xf32, #tpu.memory_space<vmem>>, vector<1x4x4xf32>
    %192 = vector.shape_cast %191 : vector<1x4x4xf32> to vector<4x4xf32>
    %cst_193 = arith.constant dense<0.000000e+00> : vector<4x324xf32>
    %193 = tpu.matmul %192, %190, %cst_193 {dimension_numbers = #tpu.dot_dimension_numbers<[1], [0], [0], [1], [0, 0, 1, 1], [], []>} : vector<4x4xf32>, vector<4x324xf32>, vector<4x324xf32> -> vector<4x324xf32>
    %194 = arith.addf %189, %193 : vector<4x324xf32>
    %c0_194 = arith.constant 0 : index
    %c19_195 = arith.constant 19 : index
    %195 = vector.load %arg17[%c0_194, %c19_195] : memref<4x362xf32, #tpu.memory_space<vmem>>, vector<4x324xf32>
    %c4_196 = arith.constant 4 : index
    %c0_197 = arith.constant 0 : index
    %c0_198 = arith.constant 0 : index
    %196 = vector.load %arg10[%c4_196, %c0_197, %c0_198] : memref<9x4x4xf32, #tpu.memory_space<vmem>>, vector<1x4x4xf32>
    %197 = vector.shape_cast %196 : vector<1x4x4xf32> to vector<4x4xf32>
    %cst_199 = arith.constant dense<0.000000e+00> : vector<4x324xf32>
    %198 = tpu.matmul %197, %195, %cst_199 {dimension_numbers = #tpu.dot_dimension_numbers<[1], [0], [0], [1], [0, 0, 1, 1], [], []>} : vector<4x4xf32>, vector<4x324xf32>, vector<4x324xf32> -> vector<4x324xf32>
    %199 = arith.addf %194, %198 : vector<4x324xf32>
    %c0_200 = arith.constant 0 : index
    %c20_201 = arith.constant 20 : index
    %200 = vector.load %arg17[%c0_200, %c20_201] : memref<4x362xf32, #tpu.memory_space<vmem>>, vector<4x324xf32>
    %c5_202 = arith.constant 5 : index
    %c0_203 = arith.constant 0 : index
    %c0_204 = arith.constant 0 : index
    %201 = vector.load %arg10[%c5_202, %c0_203, %c0_204] : memref<9x4x4xf32, #tpu.memory_space<vmem>>, vector<1x4x4xf32>
    %202 = vector.shape_cast %201 : vector<1x4x4xf32> to vector<4x4xf32>
    %cst_205 = arith.constant dense<0.000000e+00> : vector<4x324xf32>
    %203 = tpu.matmul %202, %200, %cst_205 {dimension_numbers = #tpu.dot_dimension_numbers<[1], [0], [0], [1], [0, 0, 1, 1], [], []>} : vector<4x4xf32>, vector<4x324xf32>, vector<4x324xf32> -> vector<4x324xf32>
    %204 = arith.addf %199, %203 : vector<4x324xf32>
    %c0_206 = arith.constant 0 : index
    %c36_207 = arith.constant 36 : index
    %205 = vector.load %arg17[%c0_206, %c36_207] : memref<4x362xf32, #tpu.memory_space<vmem>>, vector<4x324xf32>
    %c6_208 = arith.constant 6 : index
    %c0_209 = arith.constant 0 : index
    %c0_210 = arith.constant 0 : index
    %206 = vector.load %arg10[%c6_208, %c0_209, %c0_210] : memref<9x4x4xf32, #tpu.memory_space<vmem>>, vector<1x4x4xf32>
    %207 = vector.shape_cast %206 : vector<1x4x4xf32> to vector<4x4xf32>
    %cst_211 = arith.constant dense<0.000000e+00> : vector<4x324xf32>
    %208 = tpu.matmul %207, %205, %cst_211 {dimension_numbers = #tpu.dot_dimension_numbers<[1], [0], [0], [1], [0, 0, 1, 1], [], []>} : vector<4x4xf32>, vector<4x324xf32>, vector<4x324xf32> -> vector<4x324xf32>
    %209 = arith.addf %204, %208 : vector<4x324xf32>
    %c0_212 = arith.constant 0 : index
    %c37_213 = arith.constant 37 : index
    %210 = vector.load %arg17[%c0_212, %c37_213] : memref<4x362xf32, #tpu.memory_space<vmem>>, vector<4x324xf32>
    %c7_214 = arith.constant 7 : index
    %c0_215 = arith.constant 0 : index
    %c0_216 = arith.constant 0 : index
    %211 = vector.load %arg10[%c7_214, %c0_215, %c0_216] : memref<9x4x4xf32, #tpu.memory_space<vmem>>, vector<1x4x4xf32>
    %212 = vector.shape_cast %211 : vector<1x4x4xf32> to vector<4x4xf32>
    %cst_217 = arith.constant dense<0.000000e+00> : vector<4x324xf32>
    %213 = tpu.matmul %212, %210, %cst_217 {dimension_numbers = #tpu.dot_dimension_numbers<[1], [0], [0], [1], [0, 0, 1, 1], [], []>} : vector<4x4xf32>, vector<4x324xf32>, vector<4x324xf32> -> vector<4x324xf32>
    %214 = arith.addf %209, %213 : vector<4x324xf32>
    %c0_218 = arith.constant 0 : index
    %c38_219 = arith.constant 38 : index
    %215 = vector.load %arg17[%c0_218, %c38_219] : memref<4x362xf32, #tpu.memory_space<vmem>>, vector<4x324xf32>
    %c8_220 = arith.constant 8 : index
    %c0_221 = arith.constant 0 : index
    %c0_222 = arith.constant 0 : index
    %216 = vector.load %arg10[%c8_220, %c0_221, %c0_222] : memref<9x4x4xf32, #tpu.memory_space<vmem>>, vector<1x4x4xf32>
    %217 = vector.shape_cast %216 : vector<1x4x4xf32> to vector<4x4xf32>
    %cst_223 = arith.constant dense<0.000000e+00> : vector<4x324xf32>
    %218 = tpu.matmul %217, %215, %cst_223 {dimension_numbers = #tpu.dot_dimension_numbers<[1], [0], [0], [1], [0, 0, 1, 1], [], []>} : vector<4x4xf32>, vector<4x324xf32>, vector<4x324xf32> -> vector<4x324xf32>
    %219 = arith.addf %214, %218 : vector<4x324xf32>
    %c0_224 = arith.constant 0 : index
    %c0_225 = arith.constant 0 : index
    %220 = vector.load %arg11[%c0_224, %c0_225] : memref<4x1xf32, #tpu.memory_space<vmem>>, vector<4x1xf32>
    %221 = vector.broadcast %220 : vector<4x1xf32> to vector<4x324xf32>
    %222 = arith.mulf %219, %221 : vector<4x324xf32>
    %c0_226 = arith.constant 0 : index
    %c0_227 = arith.constant 0 : index
    %223 = vector.load %arg12[%c0_226, %c0_227] : memref<4x1xf32, #tpu.memory_space<vmem>>, vector<4x1xf32>
    %224 = vector.broadcast %223 : vector<4x1xf32> to vector<4x324xf32>
    %225 = arith.addf %222, %224 : vector<4x324xf32>
    %cst_228 = arith.constant 0.000000e+00 : f32
    %226 = vector.broadcast %cst_228 : f32 to vector<4x324xf32>
    %227 = arith.maximumf %225, %226 : vector<4x324xf32>
    %228 = vector.extract_strided_slice %227 {offsets = [0, 19], sizes = [4, 16], strides = [1, 1]} : vector<4x324xf32> to vector<4x16xf32>
    %c0_229 = arith.constant 0 : index
    %c0_230 = arith.constant 0 : index
    %c0_231 = arith.constant 0 : index
    %c0_232 = arith.constant 0 : index
    %229 = vector.load %arg14[%c0_229, %c0_230, %c0_231, %c0_232] : memref<1x4x16x16xf32, #tpu.memory_space<vmem>>, vector<1x4x1x16xf32>
    %230 = vector.shape_cast %229 : vector<1x4x1x16xf32> to vector<4x16xf32>
    %231 = vector.shape_cast %228 : vector<4x16xf32> to vector<1x4x1x16xf32>
    tpu.vector_store %arg14[%c0_229, %c0_230, %c0_231, %c0_232], %231 {strides = array<i32>} : memref<1x4x16x16xf32, #tpu.memory_space<vmem>>, vector<1x4x1x16xf32>,
    %232 = vector.extract_strided_slice %227 {offsets = [0, 37], sizes = [4, 16], strides = [1, 1]} : vector<4x324xf32> to vector<4x16xf32>
    %c0_233 = arith.constant 0 : index
    %c0_234 = arith.constant 0 : index
    %c1_235 = arith.constant 1 : index
    %c0_236 = arith.constant 0 : index
    %233 = vector.load %arg14[%c0_233, %c0_234, %c1_235, %c0_236] : memref<1x4x16x16xf32, #tpu.memory_space<vmem>>, vector<1x4x1x16xf32>
    %234 = vector.shape_cast %233 : vector<1x4x1x16xf32> to vector<4x16xf32>
    %235 = vector.shape_cast %232 : vector<4x16xf32> to vector<1x4x1x16xf32>
    tpu.vector_store %arg14[%c0_233, %c0_234, %c1_235, %c0_236], %235 {strides = array<i32>} : memref<1x4x16x16xf32, #tpu.memory_space<vmem>>, vector<1x4x1x16xf32>,
    %236 = vector.extract_strided_slice %227 {offsets = [0, 55], sizes = [4, 16], strides = [1, 1]} : vector<4x324xf32> to vector<4x16xf32>
    %c0_237 = arith.constant 0 : index
    %c0_238 = arith.constant 0 : index
    %c2_239 = arith.constant 2 : index
    %c0_240 = arith.constant 0 : index
    %237 = vector.load %arg14[%c0_237, %c0_238, %c2_239, %c0_240] : memref<1x4x16x16xf32, #tpu.memory_space<vmem>>, vector<1x4x1x16xf32>
    %238 = vector.shape_cast %237 : vector<1x4x1x16xf32> to vector<4x16xf32>
    %239 = vector.shape_cast %236 : vector<4x16xf32> to vector<1x4x1x16xf32>
    tpu.vector_store %arg14[%c0_237, %c0_238, %c2_239, %c0_240], %239 {strides = array<i32>} : memref<1x4x16x16xf32, #tpu.memory_space<vmem>>, vector<1x4x1x16xf32>,
    %240 = vector.extract_strided_slice %227 {offsets = [0, 73], sizes = [4, 16], strides = [1, 1]} : vector<4x324xf32> to vector<4x16xf32>
    %c0_241 = arith.constant 0 : index
    %c0_242 = arith.constant 0 : index
    %c3_243 = arith.constant 3 : index
    %c0_244 = arith.constant 0 : index
    %241 = vector.load %arg14[%c0_241, %c0_242, %c3_243, %c0_244] : memref<1x4x16x16xf32, #tpu.memory_space<vmem>>, vector<1x4x1x16xf32>
    %242 = vector.shape_cast %241 : vector<1x4x1x16xf32> to vector<4x16xf32>
    %243 = vector.shape_cast %240 : vector<4x16xf32> to vector<1x4x1x16xf32>
    tpu.vector_store %arg14[%c0_241, %c0_242, %c3_243, %c0_244], %243 {strides = array<i32>} : memref<1x4x16x16xf32, #tpu.memory_space<vmem>>, vector<1x4x1x16xf32>,
    %244 = vector.extract_strided_slice %227 {offsets = [0, 91], sizes = [4, 16], strides = [1, 1]} : vector<4x324xf32> to vector<4x16xf32>
    %c0_245 = arith.constant 0 : index
    %c0_246 = arith.constant 0 : index
    %c4_247 = arith.constant 4 : index
    %c0_248 = arith.constant 0 : index
    %245 = vector.load %arg14[%c0_245, %c0_246, %c4_247, %c0_248] : memref<1x4x16x16xf32, #tpu.memory_space<vmem>>, vector<1x4x1x16xf32>
    %246 = vector.shape_cast %245 : vector<1x4x1x16xf32> to vector<4x16xf32>
    %247 = vector.shape_cast %244 : vector<4x16xf32> to vector<1x4x1x16xf32>
    tpu.vector_store %arg14[%c0_245, %c0_246, %c4_247, %c0_248], %247 {strides = array<i32>} : memref<1x4x16x16xf32, #tpu.memory_space<vmem>>, vector<1x4x1x16xf32>,
    %248 = vector.extract_strided_slice %227 {offsets = [0, 109], sizes = [4, 16], strides = [1, 1]} : vector<4x324xf32> to vector<4x16xf32>
    %c0_249 = arith.constant 0 : index
    %c0_250 = arith.constant 0 : index
    %c5_251 = arith.constant 5 : index
    %c0_252 = arith.constant 0 : index
    %249 = vector.load %arg14[%c0_249, %c0_250, %c5_251, %c0_252] : memref<1x4x16x16xf32, #tpu.memory_space<vmem>>, vector<1x4x1x16xf32>
    %250 = vector.shape_cast %249 : vector<1x4x1x16xf32> to vector<4x16xf32>
    %251 = vector.shape_cast %248 : vector<4x16xf32> to vector<1x4x1x16xf32>
    tpu.vector_store %arg14[%c0_249, %c0_250, %c5_251, %c0_252], %251 {strides = array<i32>} : memref<1x4x16x16xf32, #tpu.memory_space<vmem>>, vector<1x4x1x16xf32>,
    %252 = vector.extract_strided_slice %227 {offsets = [0, 127], sizes = [4, 16], strides = [1, 1]} : vector<4x324xf32> to vector<4x16xf32>
    %c0_253 = arith.constant 0 : index
    %c0_254 = arith.constant 0 : index
    %c6_255 = arith.constant 6 : index
    %c0_256 = arith.constant 0 : index
    %253 = vector.load %arg14[%c0_253, %c0_254, %c6_255, %c0_256] : memref<1x4x16x16xf32, #tpu.memory_space<vmem>>, vector<1x4x1x16xf32>
    %254 = vector.shape_cast %253 : vector<1x4x1x16xf32> to vector<4x16xf32>
    %255 = vector.shape_cast %252 : vector<4x16xf32> to vector<1x4x1x16xf32>
    tpu.vector_store %arg14[%c0_253, %c0_254, %c6_255, %c0_256], %255 {strides = array<i32>} : memref<1x4x16x16xf32, #tpu.memory_space<vmem>>, vector<1x4x1x16xf32>,
    %256 = vector.extract_strided_slice %227 {offsets = [0, 145], sizes = [4, 16], strides = [1, 1]} : vector<4x324xf32> to vector<4x16xf32>
    %c0_257 = arith.constant 0 : index
    %c0_258 = arith.constant 0 : index
    %c7_259 = arith.constant 7 : index
    %c0_260 = arith.constant 0 : index
    %257 = vector.load %arg14[%c0_257, %c0_258, %c7_259, %c0_260] : memref<1x4x16x16xf32, #tpu.memory_space<vmem>>, vector<1x4x1x16xf32>
    %258 = vector.shape_cast %257 : vector<1x4x1x16xf32> to vector<4x16xf32>
    %259 = vector.shape_cast %256 : vector<4x16xf32> to vector<1x4x1x16xf32>
    tpu.vector_store %arg14[%c0_257, %c0_258, %c7_259, %c0_260], %259 {strides = array<i32>} : memref<1x4x16x16xf32, #tpu.memory_space<vmem>>, vector<1x4x1x16xf32>,
    %260 = vector.extract_strided_slice %227 {offsets = [0, 163], sizes = [4, 16], strides = [1, 1]} : vector<4x324xf32> to vector<4x16xf32>
    %c0_261 = arith.constant 0 : index
    %c0_262 = arith.constant 0 : index
    %c8_263 = arith.constant 8 : index
    %c0_264 = arith.constant 0 : index
    %261 = vector.load %arg14[%c0_261, %c0_262, %c8_263, %c0_264] : memref<1x4x16x16xf32, #tpu.memory_space<vmem>>, vector<1x4x1x16xf32>
    %262 = vector.shape_cast %261 : vector<1x4x1x16xf32> to vector<4x16xf32>
    %263 = vector.shape_cast %260 : vector<4x16xf32> to vector<1x4x1x16xf32>
    tpu.vector_store %arg14[%c0_261, %c0_262, %c8_263, %c0_264], %263 {strides = array<i32>} : memref<1x4x16x16xf32, #tpu.memory_space<vmem>>, vector<1x4x1x16xf32>,
    %264 = vector.extract_strided_slice %227 {offsets = [0, 181], sizes = [4, 16], strides = [1, 1]} : vector<4x324xf32> to vector<4x16xf32>
    %c0_265 = arith.constant 0 : index
    %c0_266 = arith.constant 0 : index
    %c9_267 = arith.constant 9 : index
    %c0_268 = arith.constant 0 : index
    %265 = vector.load %arg14[%c0_265, %c0_266, %c9_267, %c0_268] : memref<1x4x16x16xf32, #tpu.memory_space<vmem>>, vector<1x4x1x16xf32>
    %266 = vector.shape_cast %265 : vector<1x4x1x16xf32> to vector<4x16xf32>
    %267 = vector.shape_cast %264 : vector<4x16xf32> to vector<1x4x1x16xf32>
    tpu.vector_store %arg14[%c0_265, %c0_266, %c9_267, %c0_268], %267 {strides = array<i32>} : memref<1x4x16x16xf32, #tpu.memory_space<vmem>>, vector<1x4x1x16xf32>,
    %268 = vector.extract_strided_slice %227 {offsets = [0, 199], sizes = [4, 16], strides = [1, 1]} : vector<4x324xf32> to vector<4x16xf32>
    %c0_269 = arith.constant 0 : index
    %c0_270 = arith.constant 0 : index
    %c10_271 = arith.constant 10 : index
    %c0_272 = arith.constant 0 : index
    %269 = vector.load %arg14[%c0_269, %c0_270, %c10_271, %c0_272] : memref<1x4x16x16xf32, #tpu.memory_space<vmem>>, vector<1x4x1x16xf32>
    %270 = vector.shape_cast %269 : vector<1x4x1x16xf32> to vector<4x16xf32>
    %271 = vector.shape_cast %268 : vector<4x16xf32> to vector<1x4x1x16xf32>
    tpu.vector_store %arg14[%c0_269, %c0_270, %c10_271, %c0_272], %271 {strides = array<i32>} : memref<1x4x16x16xf32, #tpu.memory_space<vmem>>, vector<1x4x1x16xf32>,
    %272 = vector.extract_strided_slice %227 {offsets = [0, 217], sizes = [4, 16], strides = [1, 1]} : vector<4x324xf32> to vector<4x16xf32>
    %c0_273 = arith.constant 0 : index
    %c0_274 = arith.constant 0 : index
    %c11_275 = arith.constant 11 : index
    %c0_276 = arith.constant 0 : index
    %273 = vector.load %arg14[%c0_273, %c0_274, %c11_275, %c0_276] : memref<1x4x16x16xf32, #tpu.memory_space<vmem>>, vector<1x4x1x16xf32>
    %274 = vector.shape_cast %273 : vector<1x4x1x16xf32> to vector<4x16xf32>
    %275 = vector.shape_cast %272 : vector<4x16xf32> to vector<1x4x1x16xf32>
    tpu.vector_store %arg14[%c0_273, %c0_274, %c11_275, %c0_276], %275 {strides = array<i32>} : memref<1x4x16x16xf32, #tpu.memory_space<vmem>>, vector<1x4x1x16xf32>,
    %276 = vector.extract_strided_slice %227 {offsets = [0, 235], sizes = [4, 16], strides = [1, 1]} : vector<4x324xf32> to vector<4x16xf32>
    %c0_277 = arith.constant 0 : index
    %c0_278 = arith.constant 0 : index
    %c12_279 = arith.constant 12 : index
    %c0_280 = arith.constant 0 : index
    %277 = vector.load %arg14[%c0_277, %c0_278, %c12_279, %c0_280] : memref<1x4x16x16xf32, #tpu.memory_space<vmem>>, vector<1x4x1x16xf32>
    %278 = vector.shape_cast %277 : vector<1x4x1x16xf32> to vector<4x16xf32>
    %279 = vector.shape_cast %276 : vector<4x16xf32> to vector<1x4x1x16xf32>
    tpu.vector_store %arg14[%c0_277, %c0_278, %c12_279, %c0_280], %279 {strides = array<i32>} : memref<1x4x16x16xf32, #tpu.memory_space<vmem>>, vector<1x4x1x16xf32>,
    %280 = vector.extract_strided_slice %227 {offsets = [0, 253], sizes = [4, 16], strides = [1, 1]} : vector<4x324xf32> to vector<4x16xf32>
    %c0_281 = arith.constant 0 : index
    %c0_282 = arith.constant 0 : index
    %c13_283 = arith.constant 13 : index
    %c0_284 = arith.constant 0 : index
    %281 = vector.load %arg14[%c0_281, %c0_282, %c13_283, %c0_284] : memref<1x4x16x16xf32, #tpu.memory_space<vmem>>, vector<1x4x1x16xf32>
    %282 = vector.shape_cast %281 : vector<1x4x1x16xf32> to vector<4x16xf32>
    %283 = vector.shape_cast %280 : vector<4x16xf32> to vector<1x4x1x16xf32>
    tpu.vector_store %arg14[%c0_281, %c0_282, %c13_283, %c0_284], %283 {strides = array<i32>} : memref<1x4x16x16xf32, #tpu.memory_space<vmem>>, vector<1x4x1x16xf32>,
    %284 = vector.extract_strided_slice %227 {offsets = [0, 271], sizes = [4, 16], strides = [1, 1]} : vector<4x324xf32> to vector<4x16xf32>
    %c0_285 = arith.constant 0 : index
    %c0_286 = arith.constant 0 : index
    %c14_287 = arith.constant 14 : index
    %c0_288 = arith.constant 0 : index
    %285 = vector.load %arg14[%c0_285, %c0_286, %c14_287, %c0_288] : memref<1x4x16x16xf32, #tpu.memory_space<vmem>>, vector<1x4x1x16xf32>
    %286 = vector.shape_cast %285 : vector<1x4x1x16xf32> to vector<4x16xf32>
    %287 = vector.shape_cast %284 : vector<4x16xf32> to vector<1x4x1x16xf32>
    tpu.vector_store %arg14[%c0_285, %c0_286, %c14_287, %c0_288], %287 {strides = array<i32>} : memref<1x4x16x16xf32, #tpu.memory_space<vmem>>, vector<1x4x1x16xf32>,
    %288 = vector.extract_strided_slice %227 {offsets = [0, 289], sizes = [4, 16], strides = [1, 1]} : vector<4x324xf32> to vector<4x16xf32>
    %c0_289 = arith.constant 0 : index
    %c0_290 = arith.constant 0 : index
    %c15_291 = arith.constant 15 : index
    %c0_292 = arith.constant 0 : index
    %289 = vector.load %arg14[%c0_289, %c0_290, %c15_291, %c0_292] : memref<1x4x16x16xf32, #tpu.memory_space<vmem>>, vector<1x4x1x16xf32>
    %290 = vector.shape_cast %289 : vector<1x4x1x16xf32> to vector<4x16xf32>
    %291 = vector.shape_cast %288 : vector<4x16xf32> to vector<1x4x1x16xf32>
    tpu.vector_store %arg14[%c0_289, %c0_290, %c15_291, %c0_292], %291 {strides = array<i32>} : memref<1x4x16x16xf32, #tpu.memory_space<vmem>>, vector<1x4x1x16xf32>,
    return
  }
  func.func @transform_0(%arg0: i32) -> (i32, i32, i32, i32) {
    %c0_i32 = arith.constant 0 : i32
    %c0_i32_0 = arith.constant 0 : i32
    %c0_i32_1 = arith.constant 0 : i32
    %c0_i32_2 = arith.constant 0 : i32
    return %arg0, %c0_i32, %c0_i32_0, %c0_i32_1 : i32, i32, i32, i32
  }
  func.func @transform_1(%arg0: i32) -> (i32, i32, i32, i32) {
    %c0_i32 = arith.constant 0 : i32
    %c0_i32_0 = arith.constant 0 : i32
    %c0_i32_1 = arith.constant 0 : i32
    %c0_i32_2 = arith.constant 0 : i32
    return %arg0, %c0_i32, %c0_i32_0, %c0_i32_1 : i32, i32, i32, i32
  }
  func.func @transform_2(%arg0: i32) -> (i32, i32) {
    %c0_i32 = arith.constant 0 : i32
    %c0_i32_0 = arith.constant 0 : i32
    %c0_i32_1 = arith.constant 0 : i32
    return %c0_i32, %c0_i32_0 : i32, i32
  }
  func.func @transform_3(%arg0: i32) -> (i32, i32) {
    %c0_i32 = arith.constant 0 : i32
    %c0_i32_0 = arith.constant 0 : i32
    %c0_i32_1 = arith.constant 0 : i32
    return %c0_i32, %c0_i32_0 : i32, i32
  }
  func.func @transform_4(%arg0: i32) -> i32 {
    %c0_i32 = arith.constant 0 : i32
    %c0_i32_0 = arith.constant 0 : i32
    return %c0_i32 : i32
  }
  func.func @transform_5(%arg0: i32) -> i32 {
    %c0_i32 = arith.constant 0 : i32
    %c0_i32_0 = arith.constant 0 : i32
    return %c0_i32 : i32
  }
  func.func @transform_6(%arg0: i32) -> (i32, i32, i32) {
    %c0_i32 = arith.constant 0 : i32
    %c0_i32_0 = arith.constant 0 : i32
    %c0_i32_1 = arith.constant 0 : i32
    %c0_i32_2 = arith.constant 0 : i32
    return %c0_i32, %c0_i32_0, %c0_i32_1 : i32, i32, i32
  }
  func.func @transform_7(%arg0: i32) -> (i32, i32) {
    %c0_i32 = arith.constant 0 : i32
    %c0_i32_0 = arith.constant 0 : i32
    %c0_i32_1 = arith.constant 0 : i32
    return %c0_i32, %c0_i32_0 : i32, i32
  }
  func.func @transform_8(%arg0: i32) -> (i32, i32) {
    %c0_i32 = arith.constant 0 : i32
    %c0_i32_0 = arith.constant 0 : i32
    %c0_i32_1 = arith.constant 0 : i32
    return %c0_i32, %c0_i32_0 : i32, i32
  }
  func.func @transform_9(%arg0: i32) -> (i32, i32, i32) {
    %c0_i32 = arith.constant 0 : i32
    %c0_i32_0 = arith.constant 0 : i32
    %c0_i32_1 = arith.constant 0 : i32
    %c0_i32_2 = arith.constant 0 : i32
    return %c0_i32, %c0_i32_0, %c0_i32_1 : i32, i32, i32
  }
  func.func @transform_10(%arg0: i32) -> (i32, i32) {
    %c0_i32 = arith.constant 0 : i32
    %c0_i32_0 = arith.constant 0 : i32
    %c0_i32_1 = arith.constant 0 : i32
    return %c0_i32, %c0_i32_0 : i32, i32
  }
  func.func @transform_11(%arg0: i32) -> (i32, i32) {
    %c0_i32 = arith.constant 0 : i32
    %c0_i32_0 = arith.constant 0 : i32
    %c0_i32_1 = arith.constant 0 : i32
    return %c0_i32, %c0_i32_0 : i32, i32
  }
  func.func @transform_12(%arg0: i32) -> (i32, i32) {
    %c0_i32 = arith.constant 0 : i32
    %c0_i32_0 = arith.constant 0 : i32
    %c0_i32_1 = arith.constant 0 : i32
    return %c0_i32, %c0_i32_0 : i32, i32
  }
  func.func @transform_13(%arg0: i32) -> (i32, i32, i32, i32) {
    %c0_i32 = arith.constant 0 : i32
    %c0_i32_0 = arith.constant 0 : i32
    %c0_i32_1 = arith.constant 0 : i32
    %c0_i32_2 = arith.constant 0 : i32
    return %arg0, %c0_i32, %c0_i32_0, %c0_i32_1 : i32, i32, i32, i32
  }
}

</mosaic_0001>

<llo_original>
// kernel: upscale_pcd_forward.1
$region0: #{upscale_pcd_forward.1}
  #allocation0 [shape = 'u32[]', space=smem, size = 0x4, offset = 0x4, fixed_abs, tag = 'smem constant byte address 0x4 - core index']
  #allocation1 [shape = 'u32[144,128]{1,0:T(1,128)}', space=vmem, size = 0x12000, scoped, tag = 'internal scratch']
  #allocation2 [shape = 'f32[8,18,18]{2,1,0:T(8,128)}', space=vmem, size = 0x18000, scoped, tag = 'scratch operand']
  #allocation3 [shape = 'f32[8,362]{1,0:T(8,128)}', space=vmem, size = 0x3000, scoped, tag = 'scratch operand']
  #allocation4 [shape = 'f32[4,362]{1,0:T(4,128)}', space=vmem, size = 0x1800, scoped, tag = 'scratch operand']
  %s0 = inlined_call_operand.hbm [shape: f32[2,4,8,8], index: 0, kind: input, shape index: {}]
  %s1 = inlined_call_operand.vmem [shape: f32[2,4,16,16], index: 1, kind: input, shape index: {}]
  %s2 = inlined_call_operand.vmem [shape: f32[16,8], index: 2, kind: input, shape index: {}]
  %s3 = inlined_call_operand.hbm [shape: f32[8,16], index: 3, kind: input, shape index: {}]
  %s4 = inlined_call_operand.vmem [shape: f32[4], index: 4, kind: input, shape index: {}]
  %s5 = inlined_call_operand.vmem [shape: f32[4], index: 5, kind: input, shape index: {}]
  %s6 = inlined_call_operand.vmem [shape: f32[9,4,8], index: 6, kind: input, shape index: {}]
  %s7 = inlined_call_operand.vmem [shape: f32[4,1], index: 7, kind: input, shape index: {}]
  %s8 = inlined_call_operand.vmem [shape: f32[4,1], index: 8, kind: input, shape index: {}]
  %s9 = inlined_call_operand.vmem [shape: f32[9,4,4], index: 9, kind: input, shape index: {}]
  %s10 = inlined_call_operand.vmem [shape: f32[4,1], index: 10, kind: input, shape index: {}]
  %s11 = inlined_call_operand.vmem [shape: f32[4,1], index: 11, kind: input, shape index: {}]
  %s12 = inlined_call_operand.vmem [shape: f32[1,324], index: 12, kind: input, shape index: {}]
  %s13 = inlined_call_operand.hbm [shape: f32[2,4,16,16], index: 13, kind: output, shape index: {}]
  %s14 = sld [smem:[#allocation0]]
  $region101: #{upscale_pcd_forward.1} parent=0
    _
  %s16 = ssub.s32 1, %s14
  %s17 = scalar_select 0, %s16, %s14
  $region1: #{upscale_pcd_forward.1} parent=0
    #allocation5 [shape = 'u8[32768]{0}', space=vmem, size = 0x8000, scoped, tag = 'input window, operand 0']
    #allocation6 [shape = 's32[2]{0}', space=sflag, size = 0x8, scoped, tag = 'scoped memory for upscale_pcd_forward.1']
    #allocation7 [shape = 's32[2]{0}', space=sflag, size = 0x8, scoped, tag = 'scoped memory for upscale_pcd_forward.1']
    #allocation8 [shape = 's32[2]{0}', space=sflag, size = 0x8, scoped, tag = 'scoped memory for upscale_pcd_forward.1']
    #allocation9 [shape = 'u8[4096]{0}', space=vmem, size = 0x1000, scoped, tag = 'input window, operand 3, single buffered']
    #allocation10 [shape = 's32[1]{0}', space=sflag, size = 0x4, scoped, tag = 'scoped memory for upscale_pcd_forward.1']
    #allocation11 [shape = 'u8[512]{0}', space=smem, size = 0x200, scoped, tag = 'input window, operand 4, single buffered']
    #allocation12 [shape = 'u8[512]{0}', space=smem, size = 0x200, scoped, tag = 'input window, operand 5, single buffered']
    #allocation13 [shape = 's32[1]{0}', space=sflag, size = 0x4, scoped, tag = 'scoped memory for upscale_pcd_forward.1']
    #allocation14 [shape = 'u8[65536]{0}', space=vmem, size = 0x10000, scoped, tag = 'output window, operand 0']
    %18 = vsyncpa [#allocation6], 0
    %s19 = scalar_lea.sflag [#allocation6], 1
    %20 = vsyncpa %s19, 0
    %21 = vsyncpa [#allocation10], 0
    %22 = vsyncpa [#allocation8], 0
    %23 = vsyncpa [#allocation13], 0
    %24 = vsyncpa [#allocation7], 0
    %s25 = scalar_lea.sflag [#allocation7], 1
    %26 = vsyncpa %s25, 0
    loop: start=0, step=1, limit=4
    $region2: #{upscale_pcd_forward.1} parent=1 // loop_pre_header
      _
    $region3: #{upscale_pcd_forward.1} parent=1 // loop_header
      %s28 = sphi 0, %s32
      %p29 = scmp.ge.s32.totalorder %s28, 4
      %s38 = sphi 0, %s40
      %s41 = sphi 0, %s38
      %s42 = sphi 0, %s41
      %s58 = sphi 0, %s42
      %s64 = sphi 0, %s66
      %s67 = sphi 0, %s64
      %s68 = sphi 0, %s67
      %s84 = sphi 0, %s68
      %s88 = sphi 0, %s88
      %s90 = sphi 0, %s88
      %s91 = sphi 0, %s90
      %s105 = sphi 0, %s91
      %s109 = sphi 0, %s109
      %s111 = sphi 0, %s109
      %s112 = sphi 0, %s111
      %s126 = sphi 0, %s112
      %s130 = sphi 0, %s130
      %s132 = sphi 0, %s130
      %s133 = sphi 0, %s132
      %s147 = sphi 0, %s133
      %s151 = sphi 0, %s151
      %s153 = sphi 0, %s151
      %s154 = sphi 0, %s153
      %s168 = sphi 0, %s154
      %s172 = sphi 0, %s172
      %s174 = sphi 0, %s172
      %s175 = sphi 0, %s174
      %s189 = sphi 0, %s175
      %s193 = sphi 0, %s193
      %s195 = sphi 0, %s193
      %s196 = sphi 0, %s195
      %s210 = sphi 0, %s196
      %s214 = sphi 0, %s214
      %s216 = sphi 0, %s214
      %s217 = sphi 0, %s216
      %s231 = sphi 0, %s217
      %s235 = sphi 0, %s235
      %s237 = sphi 0, %s235
      %s238 = sphi 0, %s237
      %s252 = sphi 0, %s238
      %s256 = sphi 0, %s256
      %s258 = sphi 0, %s256
      %s259 = sphi 0, %s258
      %s273 = sphi 0, %s259
      %s277 = sphi 0, %s277
      %s279 = sphi 0, %s277
      %s280 = sphi 0, %s279
      %s294 = sphi 0, %s280
      %s298 = sphi 0, %s298
      %s300 = sphi 0, %s298
      %s301 = sphi 0, %s300
      %s315 = sphi 0, %s301
      %s321 = sphi 0, %s323
      %s324 = sphi 0, %s321
      %s325 = sphi 0, %s324
      %s341 = sphi 0, %s325
    $region4: #{upscale_pcd_forward.1} parent=1 // loop_header_branch
      %31 = sbr.rel (%p29) target = $region8
    $region5: #{upscale_pcd_forward.1} parent=1 // loop_body
      %s33 = ssub.s32 %s28, 1
      %s34 = ssub.s32 %s28, 2
      %s35 = sadd.s32 %s28, 1
      %s36 = ssub.s32 %s28, %s35
      %p37 = scmp.eq.s32.totalorder %s36, 0
      %s39 = sadd.s32 %s38, 1
      %s40 = scalar_select %p37, %s38, %s39
      %p43 = pneg %p37
      %p44 = scmp.eq.s32.totalorder %s28, 1
      %p45 = por %p43, %p44
      %p46 = scmp.ne.s32.totalorder %s38, %s41
      %p47 = scmp.eq.s32.totalorder %s28, 0
      %p48 = por %p46, %p47
      %p49 = scmp.ne.s32.totalorder %s38, %s41
      %p50 = scmp.eq.s32.totalorder %s33, 1
      %p51 = por %p49, %p50
      %p52 = scmp.ne.s32.totalorder %s41, %s42
      %p53 = scmp.eq.s32.totalorder %s33, 0
      %p54 = por %p52, %p53
      %p55 = scmp.ne.s32.totalorder %s41, %s42
      %p56 = scmp.eq.s32.totalorder %s34, 1
      %p57 = por %p55, %p56
      %p59 = scmp.ne.s32.totalorder %s42, %s58
      %p60 = scmp.eq.s32.totalorder %s34, 0
      %p61 = por %p59, %p60
      %s62 = ssub.s32 %s28, %s35
      %p63 = scmp.eq.s32.totalorder %s62, 0
      %s65 = sadd.s32 %s64, 1
      %s66 = scalar_select %p63, %s64, %s65
      %p69 = pneg %p63
      %p70 = scmp.eq.s32.totalorder %s28, 1
      %p71 = por %p69, %p70
      %p72 = scmp.ne.s32.totalorder %s64, %s67
      %p73 = scmp.eq.s32.totalorder %s28, 0
      %p74 = por %p72, %p73
      %p75 = scmp.ne.s32.totalorder %s64, %s67
      %p76 = scmp.eq.s32.totalorder %s33, 1
      %p77 = por %p75, %p76
      %p78 = scmp.ne.s32.totalorder %s67, %s68
      %p79 = scmp.eq.s32.totalorder %s33, 0
      %p80 = por %p78, %p79
      %p81 = scmp.ne.s32.totalorder %s67, %s68
      %p82 = scmp.eq.s32.totalorder %s34, 1
      %p83 = por %p81, %p82
      %p85 = scmp.ne.s32.totalorder %s68, %s84
      %p86 = scmp.eq.s32.totalorder %s34, 0
      %p87 = por %p85, %p86
      %s89 = sadd.s32 %s88, 1
      %p92 = scmp.eq.s32.totalorder %s28, 1
      %p93 = scmp.ne.s32.totalorder %s88, %s90
      %p94 = scmp.eq.s32.totalorder %s28, 0
      %p95 = por %p93, %p94
      %p96 = scmp.ne.s32.totalorder %s88, %s90
      %p97 = scmp.eq.s32.totalorder %s33, 1
      %p98 = por %p96, %p97
      %p99 = scmp.ne.s32.totalorder %s90, %s91
      %p100 = scmp.eq.s32.totalorder %s33, 0
      %p101 = por %p99, %p100
      %p102 = scmp.ne.s32.totalorder %s90, %s91
      %p103 = scmp.eq.s32.totalorder %s34, 1
      %p104 = por %p102, %p103
      %p106 = scmp.ne.s32.totalorder %s91, %s105
      %p107 = scmp.eq.s32.totalorder %s34, 0
      %p108 = por %p106, %p107
      %s110 = sadd.s32 %s109, 1
      %p113 = scmp.eq.s32.totalorder %s28, 1
      %p114 = scmp.ne.s32.totalorder %s109, %s111
      %p115 = scmp.eq.s32.totalorder %s28, 0
      %p116 = por %p114, %p115
      %p117 = scmp.ne.s32.totalorder %s109, %s111
      %p118 = scmp.eq.s32.totalorder %s33, 1
      %p119 = por %p117, %p118
      %p120 = scmp.ne.s32.totalorder %s111, %s112
      %p121 = scmp.eq.s32.totalorder %s33, 0
      %p122 = por %p120, %p121
      %p123 = scmp.ne.s32.totalorder %s111, %s112
      %p124 = scmp.eq.s32.totalorder %s34, 1
      %p125 = por %p123, %p124
      %p127 = scmp.ne.s32.totalorder %s112, %s126
      %p128 = scmp.eq.s32.totalorder %s34, 0
      %p129 = por %p127, %p128
      %s131 = sadd.s32 %s130, 1
      %p134 = scmp.eq.s32.totalorder %s28, 1
      %p135 = scmp.ne.s32.totalorder %s130, %s132
      %p136 = scmp.eq.s32.totalorder %s28, 0
      %p137 = por %p135, %p136
      %p138 = scmp.ne.s32.totalorder %s130, %s132
      %p139 = scmp.eq.s32.totalorder %s33, 1
      %p140 = por %p138, %p139
      %p141 = scmp.ne.s32.totalorder %s132, %s133
      %p142 = scmp.eq.s32.totalorder %s33, 0
      %p143 = por %p141, %p142
      %p144 = scmp.ne.s32.totalorder %s132, %s133
      %p145 = scmp.eq.s32.totalorder %s34, 1
      %p146 = por %p144, %p145
      %p148 = scmp.ne.s32.totalorder %s133, %s147
      %p149 = scmp.eq.s32.totalorder %s34, 0
      %p150 = por %p148, %p149
      %s152 = sadd.s32 %s151, 1
      %p155 = scmp.eq.s32.totalorder %s28, 1
      %p156 = scmp.ne.s32.totalorder %s151, %s153
      %p157 = scmp.eq.s32.totalorder %s28, 0
      %p158 = por %p156, %p157
      %p159 = scmp.ne.s32.totalorder %s151, %s153
      %p160 = scmp.eq.s32.totalorder %s33, 1
      %p161 = por %p159, %p160
      %p162 = scmp.ne.s32.totalorder %s153, %s154
      %p163 = scmp.eq.s32.totalorder %s33, 0
      %p164 = por %p162, %p163
      %p165 = scmp.ne.s32.totalorder %s153, %s154
      %p166 = scmp.eq.s32.totalorder %s34, 1
      %p167 = por %p165, %p166
      %p169 = scmp.ne.s32.totalorder %s154, %s168
      %p170 = scmp.eq.s32.totalorder %s34, 0
      %p171 = por %p169, %p170
      %s173 = sadd.s32 %s172, 1
      %p176 = scmp.eq.s32.totalorder %s28, 1
      %p177 = scmp.ne.s32.totalorder %s172, %s174
      %p178 = scmp.eq.s32.totalorder %s28, 0
      %p179 = por %p177, %p178
      %p180 = scmp.ne.s32.totalorder %s172, %s174
      %p181 = scmp.eq.s32.totalorder %s33, 1
      %p182 = por %p180, %p181
      %p183 = scmp.ne.s32.totalorder %s174, %s175
      %p184 = scmp.eq.s32.totalorder %s33, 0
      %p185 = por %p183, %p184
      %p186 = scmp.ne.s32.totalorder %s174, %s175
      %p187 = scmp.eq.s32.totalorder %s34, 1
      %p188 = por %p186, %p187
      %p190 = scmp.ne.s32.totalorder %s175, %s189
      %p191 = scmp.eq.s32.totalorder %s34, 0
      %p192 = por %p190, %p191
      %s194 = sadd.s32 %s193, 1
      %p197 = scmp.eq.s32.totalorder %s28, 1
      %p198 = scmp.ne.s32.totalorder %s193, %s195
      %p199 = scmp.eq.s32.totalorder %s28, 0
      %p200 = por %p198, %p199
      %p201 = scmp.ne.s32.totalorder %s193, %s195
      %p202 = scmp.eq.s32.totalorder %s33, 1
      %p203 = por %p201, %p202
      %p204 = scmp.ne.s32.totalorder %s195, %s196
      %p205 = scmp.eq.s32.totalorder %s33, 0
      %p206 = por %p204, %p205
      %p207 = scmp.ne.s32.totalorder %s195, %s196
      %p208 = scmp.eq.s32.totalorder %s34, 1
      %p209 = por %p207, %p208
      %p211 = scmp.ne.s32.totalorder %s196, %s210
      %p212 = scmp.eq.s32.totalorder %s34, 0
      %p213 = por %p211, %p212
      %s215 = sadd.s32 %s214, 1
      %p218 = scmp.eq.s32.totalorder %s28, 1
      %p219 = scmp.ne.s32.totalorder %s214, %s216
      %p220 = scmp.eq.s32.totalorder %s28, 0
      %p221 = por %p219, %p220
      %p222 = scmp.ne.s32.totalorder %s214, %s216
      %p223 = scmp.eq.s32.totalorder %s33, 1
      %p224 = por %p222, %p223
      %p225 = scmp.ne.s32.totalorder %s216, %s217
      %p226 = scmp.eq.s32.totalorder %s33, 0
      %p227 = por %p225, %p226
      %p228 = scmp.ne.s32.totalorder %s216, %s217
      %p229 = scmp.eq.s32.totalorder %s34, 1
      %p230 = por %p228, %p229
      %p232 = scmp.ne.s32.totalorder %s217, %s231
      %p233 = scmp.eq.s32.totalorder %s34, 0
      %p234 = por %p232, %p233
      %s236 = sadd.s32 %s235, 1
      %p239 = scmp.eq.s32.totalorder %s28, 1
      %p240 = scmp.ne.s32.totalorder %s235, %s237
      %p241 = scmp.eq.s32.totalorder %s28, 0
      %p242 = por %p240, %p241
      %p243 = scmp.ne.s32.totalorder %s235, %s237
      %p244 = scmp.eq.s32.totalorder %s33, 1
      %p245 = por %p243, %p244
      %p246 = scmp.ne.s32.totalorder %s237, %s238
      %p247 = scmp.eq.s32.totalorder %s33, 0
      %p248 = por %p246, %p247
      %p249 = scmp.ne.s32.totalorder %s237, %s238
      %p250 = scmp.eq.s32.totalorder %s34, 1
      %p251 = por %p249, %p250
      %p253 = scmp.ne.s32.totalorder %s238, %s252
      %p254 = scmp.eq.s32.totalorder %s34, 0
      %p255 = por %p253, %p254
      %s257 = sadd.s32 %s256, 1
      %p260 = scmp.eq.s32.totalorder %s28, 1
      %p261 = scmp.ne.s32.totalorder %s256, %s258
      %p262 = scmp.eq.s32.totalorder %s28, 0
      %p263 = por %p261, %p262
      %p264 = scmp.ne.s32.totalorder %s256, %s258
      %p265 = scmp.eq.s32.totalorder %s33, 1
      %p266 = por %p264, %p265
      %p267 = scmp.ne.s32.totalorder %s258, %s259
      %p268 = scmp.eq.s32.totalorder %s33, 0
      %p269 = por %p267, %p268
      %p270 = scmp.ne.s32.totalorder %s258, %s259
      %p271 = scmp.eq.s32.totalorder %s34, 1
      %p272 = por %p270, %p271
      %p274 = scmp.ne.s32.totalorder %s259, %s273
      %p275 = scmp.eq.s32.totalorder %s34, 0
      %p276 = por %p274, %p275
      %s278 = sadd.s32 %s277, 1
      %p281 = scmp.eq.s32.totalorder %s28, 1
      %p282 = scmp.ne.s32.totalorder %s277, %s279
      %p283 = scmp.eq.s32.totalorder %s28, 0
      %p284 = por %p282, %p283
      %p285 = scmp.ne.s32.totalorder %s277, %s279
      %p286 = scmp.eq.s32.totalorder %s33, 1
      %p287 = por %p285, %p286
      %p288 = scmp.ne.s32.totalorder %s279, %s280
      %p289 = scmp.eq.s32.totalorder %s33, 0
      %p290 = por %p288, %p289
      %p291 = scmp.ne.s32.totalorder %s279, %s280
      %p292 = scmp.eq.s32.totalorder %s34, 1
      %p293 = por %p291, %p292
      %p295 = scmp.ne.s32.totalorder %s280, %s294
      %p296 = scmp.eq.s32.totalorder %s34, 0
      %p297 = por %p295, %p296
      %s299 = sadd.s32 %s298, 1
      %p302 = scmp.eq.s32.totalorder %s28, 1
      %p303 = scmp.ne.s32.totalorder %s298, %s300
      %p304 = scmp.eq.s32.totalorder %s28, 0
      %p305 = por %p303, %p304
      %p306 = scmp.ne.s32.totalorder %s298, %s300
      %p307 = scmp.eq.s32.totalorder %s33, 1
      %p308 = por %p306, %p307
      %p309 = scmp.ne.s32.totalorder %s300, %s301
      %p310 = scmp.eq.s32.totalorder %s33, 0
      %p311 = por %p309, %p310
      %p312 = scmp.ne.s32.totalorder %s300, %s301
      %p313 = scmp.eq.s32.totalorder %s34, 1
      %p314 = por %p312, %p313
      %p316 = scmp.ne.s32.totalorder %s301, %s315
      %p317 = scmp.eq.s32.totalorder %s34, 0
      %p318 = por %p316, %p317
      %s319 = ssub.s32 %s28, %s35
      %p320 = scmp.eq.s32.totalorder %s319, 0
      %s322 = sadd.s32 %s321, 1
      %s323 = scalar_select %p320, %s321, %s322
      %p326 = pneg %p320
      %p327 = scmp.eq.s32.totalorder %s28, 1
      %p328 = por %p326, %p327
      %p329 = scmp.ne.s32.totalorder %s321, %s324
      %p330 = scmp.eq.s32.totalorder %s28, 0
      %p331 = por %p329, %p330
      %p332 = scmp.ne.s32.totalorder %s321, %s324
      %p333 = scmp.eq.s32.totalorder %s33, 1
      %p334 = por %p332, %p333
      %p335 = scmp.ne.s32.totalorder %s324, %s325
      %p336 = scmp.eq.s32.totalorder %s33, 0
      %p337 = por %p335, %p336
      %p338 = scmp.ne.s32.totalorder %s324, %s325
      %p339 = scmp.eq.s32.totalorder %s34, 1
      %p340 = por %p338, %p339
      %p342 = scmp.ne.s32.totalorder %s325, %s341
      %p343 = scmp.eq.s32.totalorder %s34, 0
      %p344 = por %p342, %p343
      %p345 = scmp.le.s32.totalorder 1, %s28
      %p346 = scmp.lt.s32.totalorder %s28, 3
      %p347 = pnand %p345, %p346
      %p348 = pneg %p347
      // Predicated region
      $region9: #{upscale_pcd_forward.1} parent=5 // pred_check
        _
      $region10: #{upscale_pcd_forward.1} parent=5 // pred_check_branch
        %350 = sbr.rel (%p347) target = $region12
      $region11: #{upscale_pcd_forward.1} parent=5 // pred_region
        %s351 = ssub.s32 %s28, 1
        // Predicated region
        $region13: #{upscale_pcd_forward.1} parent=11 // pred_check
          %p352 = pneg %p101
        $region14: #{upscale_pcd_forward.1} parent=11 // pred_check_branch
          %354 = sbr.rel (%p352) target = $region16
        $region15: #{upscale_pcd_forward.1} parent=11 // pred_region
          _
        $region16: #{upscale_pcd_forward.1} parent=11 // pred_fallthru
          _
        // Predicated region
        $region17: #{upscale_pcd_forward.1} parent=11 // pred_check
          %p355 = pneg %p122
        $region18: #{upscale_pcd_forward.1} parent=11 // pred_check_branch
          %357 = sbr.rel (%p355) target = $region20
        $region19: #{upscale_pcd_forward.1} parent=11 // pred_region
          %s359 = ssub.s32 128, 128
          %360 = vsyncadd [#allocation10], %s359
          %s362 = sshll.u32 [#allocation9], 4
          %s363 = int_to_ptr.vmem [resolvable:$true] %s362
          %365 = dma.hbm_to_vmem [thread:$0]  %s3, 128, %s363, [#allocation10]
        $region20: #{upscale_pcd_forward.1} parent=11 // pred_fallthru
          _
        // Predicated region
        $region21: #{upscale_pcd_forward.1} parent=11 // pred_check
          %p366 = pneg %p143
        $region22: #{upscale_pcd_forward.1} parent=11 // pred_check_branch
          %368 = sbr.rel (%p366) target = $region24
        $region23: #{upscale_pcd_forward.1} parent=11 // pred_region
          %s370 = ssub.s32 16, 16
          %371 = vsyncadd [#allocation8], %s370
          %s373 = sshll.u32 %s4, 4
          %s374 = int_to_ptr.vmem [resolvable:$true] %s373
          %376 = dma.vmem_to_smem %s374, 16, [#allocation11], [#allocation8]
        $region24: #{upscale_pcd_forward.1} parent=11 // pred_fallthru
          _
        // Predicated region
        $region25: #{upscale_pcd_forward.1} parent=11 // pred_check
          %p377 = pneg %p164
        $region26: #{upscale_pcd_forward.1} parent=11 // pred_check_branch
          %379 = sbr.rel (%p377) target = $region28
        $region27: #{upscale_pcd_forward.1} parent=11 // pred_region
          %s381 = ssub.s32 16, 16
          %382 = vsyncadd [#allocation13], %s381
          %s384 = sshll.u32 %s5, 4
          %s385 = int_to_ptr.vmem [resolvable:$true] %s384
          %387 = dma.vmem_to_smem %s385, 16, [#allocation12], [#allocation13]
        $region28: #{upscale_pcd_forward.1} parent=11 // pred_fallthru
          _
        // Predicated region
        $region29: #{upscale_pcd_forward.1} parent=11 // pred_check
          %p388 = pneg %p185
        $region30: #{upscale_pcd_forward.1} parent=11 // pred_check_branch
          %390 = sbr.rel (%p388) target = $region32
        $region31: #{upscale_pcd_forward.1} parent=11 // pred_region
          _
        $region32: #{upscale_pcd_forward.1} parent=11 // pred_fallthru
          _
        // Predicated region
        $region33: #{upscale_pcd_forward.1} parent=11 // pred_check
          %p391 = pneg %p206
        $region34: #{upscale_pcd_forward.1} parent=11 // pred_check_branch
          %393 = sbr.rel (%p391) target = $region36
        $region35: #{upscale_pcd_forward.1} parent=11 // pred_region
          _
        $region36: #{upscale_pcd_forward.1} parent=11 // pred_fallthru
          _
        // Predicated region
        $region37: #{upscale_pcd_forward.1} parent=11 // pred_check
          %p394 = pneg %p227
        $region38: #{upscale_pcd_forward.1} parent=11 // pred_check_branch
          %396 = sbr.rel (%p394) target = $region40
        $region39: #{upscale_pcd_forward.1} parent=11 // pred_region
          _
        $region40: #{upscale_pcd_forward.1} parent=11 // pred_fallthru
          _
        // Predicated region
        $region41: #{upscale_pcd_forward.1} parent=11 // pred_check
          %p397 = pneg %p248
        $region42: #{upscale_pcd_forward.1} parent=11 // pred_check_branch
          %399 = sbr.rel (%p397) target = $region44
        $region43: #{upscale_pcd_forward.1} parent=11 // pred_region
          _
        $region44: #{upscale_pcd_forward.1} parent=11 // pred_fallthru
          _
        // Predicated region
        $region45: #{upscale_pcd_forward.1} parent=11 // pred_check
          %p400 = pneg %p269
        $region46: #{upscale_pcd_forward.1} parent=11 // pred_check_branch
          %402 = sbr.rel (%p400) target = $region48
        $region47: #{upscale_pcd_forward.1} parent=11 // pred_region
          _
        $region48: #{upscale_pcd_forward.1} parent=11 // pred_fallthru
          _
        // Predicated region
        $region49: #{upscale_pcd_forward.1} parent=11 // pred_check
          %p403 = pneg %p290
        $region50: #{upscale_pcd_forward.1} parent=11 // pred_check_branch
          %405 = sbr.rel (%p403) target = $region52
        $region51: #{upscale_pcd_forward.1} parent=11 // pred_region
          _
        $region52: #{upscale_pcd_forward.1} parent=11 // pred_fallthru
          _
        // Predicated region
        $region53: #{upscale_pcd_forward.1} parent=11 // pred_check
          %p406 = pneg %p311
        $region54: #{upscale_pcd_forward.1} parent=11 // pred_check_branch
          %408 = sbr.rel (%p406) target = $region56
        $region55: #{upscale_pcd_forward.1} parent=11 // pred_region
          _
        $region56: #{upscale_pcd_forward.1} parent=11 // pred_fallthru
          _
      $region12: #{upscale_pcd_forward.1} parent=5 // pred_fallthru
        _
      %p409 = scmp.lt.s32.totalorder %s28, 2
      // Predicated region
      $region57: #{upscale_pcd_forward.1} parent=5 // pred_check
        %p410 = pneg %p409
      $region58: #{upscale_pcd_forward.1} parent=5 // pred_check_branch
        %412 = sbr.rel (%p410) target = $region60
      $region59: #{upscale_pcd_forward.1} parent=5 // pred_region
        // Predicated region
        $region61: #{upscale_pcd_forward.1} parent=59 // pred_check
          %p413 = pneg %p48
        $region62: #{upscale_pcd_forward.1} parent=59 // pred_check_branch
          %415 = sbr.rel (%p413) target = $region64
        $region63: #{upscale_pcd_forward.1} parent=59 // pred_region
          %s416 = sand.u32 %s38, 1
          %s417 = scalar_lea.sflag [#allocation6], %s416
          %s418 = sand.u32 %s38, 1
          %s419 = smul.addr %s418, 32
          %s420 = scalar_lea.vmem [#allocation5], %s419
          %s422 = ssub.s32 512, 512
          %423 = vsyncadd %s417, %s422
          %s424 = smul.addr %s28, 4
          %s425 = smul.addr %s424, 128
          %s426 = scalar_lea.hbm %s0, %s425
          %s427 = sshll.u32 %s420, 4
          %s428 = int_to_ptr.vmem [resolvable:$true] %s427
          %433 = dma.hbm_to_vmem [thread:$0]  %s426, 512, %s428, %s417, 128, 128, 8
        $region64: #{upscale_pcd_forward.1} parent=59 // pred_fallthru
          _
        // Predicated region
        $region65: #{upscale_pcd_forward.1} parent=59 // pred_check
          %p434 = pneg %p74
        $region66: #{upscale_pcd_forward.1} parent=59 // pred_check_branch
          %436 = sbr.rel (%p434) target = $region68
        $region67: #{upscale_pcd_forward.1} parent=59 // pred_region
          %p437 = scmp.lt.s32.totalorder %s28, 1
          %s438 = scalar_select %p437, %s28, 1
          %s439 = smul.addr %s438, 8
          %s440 = smul.addr %s439, 8
          %s441 = scalar_lea.vmem %s1, %s440
        $region68: #{upscale_pcd_forward.1} parent=59 // pred_fallthru
          _
      $region60: #{upscale_pcd_forward.1} parent=5 // pred_fallthru
        _
      %p442 = scmp.le.s32.totalorder 1, %s28
      %p443 = scmp.lt.s32.totalorder %s28, 3
      %p444 = pnand %p442, %p443
      %p445 = pneg %p444
      // Predicated region
      $region69: #{upscale_pcd_forward.1} parent=5 // pred_check
        _
      $region70: #{upscale_pcd_forward.1} parent=5 // pred_check_branch
        %447 = sbr.rel (%p444) target = $region72
      $region71: #{upscale_pcd_forward.1} parent=5 // pred_region
        %s448 = ssub.s32 %s28, 1
        %s449 = sand.u32 %s41, 1
        %s450 = scalar_lea.sflag [#allocation6], %s449
        %s451 = sand.u32 %s41, 1
        %s452 = smul.addr %s451, 32
        %s453 = scalar_lea.vmem [#allocation5], %s452
        // Predicated region
        $region73: #{upscale_pcd_forward.1} parent=71 // pred_check
          %p454 = pneg %p54
        $region74: #{upscale_pcd_forward.1} parent=71 // pred_check_branch
          %456 = sbr.rel (%p454) target = $region76
        $region75: #{upscale_pcd_forward.1} parent=71 // pred_region
          %457 = dma.done %s450, 512
        $region76: #{upscale_pcd_forward.1} parent=71 // pred_fallthru
          _
        // Predicated region
        $region77: #{upscale_pcd_forward.1} parent=71 // pred_check
          %p458 = pneg %p122
        $region78: #{upscale_pcd_forward.1} parent=71 // pred_check_branch
          %460 = sbr.rel (%p458) target = $region80
        $region79: #{upscale_pcd_forward.1} parent=71 // pred_region
          %461 = dma.done [#allocation10], 128
        $region80: #{upscale_pcd_forward.1} parent=71 // pred_fallthru
          _
        // Predicated region
        $region81: #{upscale_pcd_forward.1} parent=71 // pred_check
          %p462 = pneg %p143
        $region82: #{upscale_pcd_forward.1} parent=71 // pred_check_branch
          %464 = sbr.rel (%p462) target = $region84
        $region83: #{upscale_pcd_forward.1} parent=71 // pred_region
          %465 = dma.done [#allocation8], 16
        $region84: #{upscale_pcd_forward.1} parent=71 // pred_fallthru
          _
        // Predicated region
        $region85: #{upscale_pcd_forward.1} parent=71 // pred_check
          %p466 = pneg %p164
        $region86: #{upscale_pcd_forward.1} parent=71 // pred_check_branch
          %468 = sbr.rel (%p466) target = $region88
        $region87: #{upscale_pcd_forward.1} parent=71 // pred_region
          %469 = dma.done [#allocation13], 16
        $region88: #{upscale_pcd_forward.1} parent=71 // pred_fallthru
          _
        %470 = sfence
        %s471 = sand.u32 %s41, 1
        %s472 = scalar_lea.sflag [#allocation6], %s471
        %s473 = sand.u32 %s41, 1
        %s474 = smul.addr %s473, 32
        %s475 = scalar_lea.vmem [#allocation5], %s474
        %p476 = pneg %p54
        %p477 = pneg %p51
        %p478 = scmp.lt.s32.totalorder %s33, 1
        %s479 = scalar_select %p478, %s33, 1
        %s480 = smul.addr %s479, 8
        %s481 = smul.addr %s480, 8
        %s482 = scalar_lea.vmem %s1, %s481
        %p483 = pneg %p80
        %p484 = pneg %p77
        %p485 = pneg %p101
        %p486 = pneg %p98
        %p487 = pneg %p122
        %p488 = pneg %p119
        %p489 = pneg %p143
        %p490 = pneg %p140
        %p491 = pneg %p164
        %p492 = pneg %p161
        %p493 = pneg %p185
        %p494 = pneg %p182
        %p495 = pneg %p206
        %p496 = pneg %p203
        %p497 = pneg %p227
        %p498 = pneg %p224
        %p499 = pneg %p248
        %p500 = pneg %p245
        %p501 = pneg %p269
        %p502 = pneg %p266
        %p503 = pneg %p290
        %p504 = pneg %p287
        %p505 = pneg %p311
        %p506 = pneg %p308
        %p507 = pneg %p337
        %p508 = pneg %p334
        %s509 = sand.u32 %s324, 1
        %s510 = scalar_lea.sflag [#allocation7], %s509
        %s511 = sand.u32 %s324, 1
        %s512 = smul.addr %s511, 64
        %s513 = scalar_lea.vmem [#allocation14], %s512
        %p514 = scmp.lt.s32.totalorder %s33, 1
        %s515 = scalar_select %p514, %s33, 1
        %s516 = smul.addr %s515, 8
        %s517 = smul.addr %s516, 8
        %s518 = scalar_lea.vmem %s1, %s517
        %vm519 = vcmask 146432
        %520 = vst.msk [vmem:[#allocation2] sm:$0xff] %vm519, 0.0
        %521 = vst.msk [vmem:[#allocation2 + $0x8] sm:$0xff] %vm519, 0.0
        %vm522 = vcmask 140288
        %523 = vst.msk [vmem:[#allocation2 + $0x10] sm:$0x3] %vm522, 0.0
        %524 = vst.msk [vmem:[#allocation2 + $0x18] sm:$0xff] %vm519, 0.0
        %525 = vst.msk [vmem:[#allocation2 + $0x20] sm:$0xff] %vm519, 0.0
        %526 = vst.msk [vmem:[#allocation2 + $0x28] sm:$0x3] %vm522, 0.0
        %527 = vst.msk [vmem:[#allocation2 + $0x30] sm:$0xff] %vm519, 0.0
        %528 = vst.msk [vmem:[#allocation2 + $0x38] sm:$0xff] %vm519, 0.0
        %529 = vst.msk [vmem:[#allocation2 + $0x40] sm:$0x3] %vm522, 0.0
        %530 = vst.msk [vmem:[#allocation2 + $0x48] sm:$0xff] %vm519, 0.0
        %531 = vst.msk [vmem:[#allocation2 + $0x50] sm:$0xff] %vm519, 0.0
        %532 = vst.msk [vmem:[#allocation2 + $0x58] sm:$0x3] %vm522, 0.0
        %533 = vst.msk [vmem:[#allocation2 + $0x60] sm:$0xff] %vm519, 0.0
        %534 = vst.msk [vmem:[#allocation2 + $0x68] sm:$0xff] %vm519, 0.0
        %535 = vst.msk [vmem:[#allocation2 + $0x70] sm:$0x3] %vm522, 0.0
        %536 = vst.msk [vmem:[#allocation2 + $0x78] sm:$0xff] %vm519, 0.0
        %537 = vst.msk [vmem:[#allocation2 + $0x80] sm:$0xff] %vm519, 0.0
        %538 = vst.msk [vmem:[#allocation2 + $0x88] sm:$0x3] %vm522, 0.0
        %539 = vst.msk [vmem:[#allocation2 + $0x90] sm:$0xff] %vm519, 0.0
        %540 = vst.msk [vmem:[#allocation2 + $0x98] sm:$0xff] %vm519, 0.0
        %541 = vst.msk [vmem:[#allocation2 + $0xa0] sm:$0x3] %vm522, 0.0
        %542 = vst.msk [vmem:[#allocation2 + $0xa8] sm:$0xff] %vm519, 0.0
        %543 = vst.msk [vmem:[#allocation2 + $0xb0] sm:$0xff] %vm519, 0.0
        %544 = vst.msk [vmem:[#allocation2 + $0xb8] sm:$0x3] %vm522, 0.0
        %v545 = vld [vmem:[%s518] sm:$0xff]
        %v546 = vld [vmem:[%s518 + $0x8] sm:$0xff]
        %v547 = vld [vmem:[%s518 + $0x10] sm:$0xff]
        %v548 = vld [vmem:[%s518 + $0x18] sm:$0xff]
        %v549 = vld [vmem:[%s518 + $0x20] sm:$0xff]
        %v550 = vld [vmem:[%s518 + $0x28] sm:$0xff]
        %v551 = vld [vmem:[%s518 + $0x30] sm:$0xff]
        %v552 = vld [vmem:[%s518 + $0x38] sm:$0xff]
        %561 = vrot.lane.b32.xlu0 %v545, 1
        %v562 = vpop.permute.xlu0 %561
        %563 = vrot.lane.b32.xlu0 %v546, 1
        %v564 = vpop.permute.xlu0 %563
        %565 = vrot.lane.b32.xlu0 %v547, 1
        %v566 = vpop.permute.xlu0 %565
        %567 = vrot.lane.b32.xlu0 %v548, 1
        %v568 = vpop.permute.xlu0 %567
        %569 = vrot.lane.b32.xlu0 %v549, 1
        %v570 = vpop.permute.xlu0 %569
        %571 = vrot.lane.b32.xlu0 %v550, 1
        %v572 = vpop.permute.xlu0 %571
        %573 = vrot.lane.b32.xlu0 %v551, 1
        %v574 = vpop.permute.xlu0 %573
        %575 = vrot.lane.b32.xlu0 %v552, 1
        %v576 = vpop.permute.xlu0 %575
        %vm585 = vcmask 138248
        %586 = vst.msk [vmem:[#allocation2 + $0x1] sm:$0xff] %vm585, %v562
        %587 = vst.msk [vmem:[#allocation2 + $0x9] sm:$0xff] %vm585, %v564
        %588 = vst.msk [vmem:[#allocation2 + $0x19] sm:$0xff] %vm585, %v566
        %589 = vst.msk [vmem:[#allocation2 + $0x21] sm:$0xff] %vm585, %v568
        %590 = vst.msk [vmem:[#allocation2 + $0x31] sm:$0xff] %vm585, %v570
        %591 = vst.msk [vmem:[#allocation2 + $0x39] sm:$0xff] %vm585, %v572
        %592 = vst.msk [vmem:[#allocation2 + $0x49] sm:$0xff] %vm585, %v574
        %593 = vst.msk [vmem:[#allocation2 + $0x51] sm:$0xff] %vm585, %v576
        %v594 = vld [vmem:[%s453] sm:$0xff]
        %v595 = vld [vmem:[%s453 + $0x8] sm:$0xff]
        %v596 = vld [vmem:[%s453 + $0x10] sm:$0xff]
        %v597 = vld [vmem:[%s453 + $0x18] sm:$0xff]
        %v598 = vld [vmem:[#allocation9] sm:$0xff]
        %vm599 = vcmask 64512
        %v601 = vsel %vm599, %v594, 0
        %v604 = vsel %vm599, %v595, 0
        %v607 = vsel %vm599, %v596, 0
        %v610 = vsel %vm599, %v597, 0
        %612 = vmatprep.subr.mxu0 0.0
        %613 = vmatpush1.msra.mxu0 %v598
        %614 = vmatprep.subr.mxu0 0.0
        %615 = vmatpush1.msra.mxu0 0.0
        %616 = vmatprep.subr.mxu0 0.0
        %617 = vmatpush1.msra.mxu0 0.0
        %618 = vmatprep.subr.mxu0 0.0
        %619 = vmatpush1.msra.mxu0 0.0
        %620 = vmatprep.subr.mxu0 0.0
        %621 = vmatpush1.msra.mxu0 0.0
        %622 = vmatprep.subr.mxu0 0.0
        %623 = vmatpush1.msra.mxu0 0.0
        %624 = vmatprep.subr.mxu0 0.0
        %625 = vmatpush1.msra.mxu0 0.0
        %626 = vmatprep.subr.mxu0 0.0
        %627 = vmatpush1.msra.mxu0 0.0
        %628 = vmatprep.subr.mxu0 0.0
        %629 = vmatpush1.msra.mxu0 0.0
        %630 = vmatprep.subr.mxu0 0.0
        %631 = vmatpush1.msra.mxu0 0.0
        %632 = vmatprep.subr.mxu0 0.0
        %633 = vmatpush1.msra.mxu0 0.0
        %634 = vmatprep.subr.mxu0 0.0
        %635 = vmatpush1.msra.mxu0 0.0
        %636 = vmatprep.subr.mxu0 0.0
        %637 = vmatpush1.msra.mxu0 0.0
        %638 = vmatprep.subr.mxu0 0.0
        %639 = vmatpush1.msra.mxu0 0.0
        %640 = vmatprep.subr.mxu0 0.0
        %641 = vmatpush1.msra.mxu0 0.0
        %642 = vmatprep.subr.mxu0 0.0
        %643 = vmatpush1.msra.mxu0 0.0
        %644 = vmatprep.subr.mxu0 0.0
        %645 = vmatpush1.msra.mxu0 0.0
        %646 = vmatprep.subr.mxu0 0.0
        %647 = vmatpush1.msra.mxu0 0.0
        %648 = vmatprep.subr.mxu0 0.0
        %649 = vmatpush1.msra.mxu0 0.0
        %650 = vmatprep.subr.mxu0 0.0
        %651 = vmatpush1.msra.mxu0 0.0
        %652 = vmatprep.subr.mxu0 0.0
        %653 = vmatpush1.msra.mxu0 0.0
        %654 = vmatprep.subr.mxu0 0.0
        %655 = vmatpush1.msra.mxu0 0.0
        %656 = vmatprep.subr.mxu0 0.0
        %657 = vmatpush1.msra.mxu0 0.0
        %658 = vmatprep.subr.mxu0 0.0
        %659 = vmatpush1.msra.mxu0 0.0
        %660 = vmatprep.subr.mxu0 0.0
        %661 = vmatpush1.msra.mxu0 0.0
        %662 = vmatprep.subr.mxu0 0.0
        %663 = vmatpush1.msra.mxu0 0.0
        %664 = vmatprep.subr.mxu0 0.0
        %665 = vmatpush1.msra.mxu0 0.0
        %666 = vmatprep.subr.mxu0 0.0
        %667 = vmatpush1.msra.mxu0 0.0
        %668 = vmatprep.subr.mxu0 0.0
        %669 = vmatpush1.msra.mxu0 0.0
        %670 = vmatprep.subr.mxu0 0.0
        %671 = vmatpush1.msra.mxu0 0.0
        %672 = vmatprep.subr.mxu0 0.0
        %673 = vmatpush1.msra.mxu0 0.0
        %674 = vmatprep.subr.mxu0 0.0
        %675 = vmatpush1.msra.mxu0 0.0
        %676 = vmatprep.mubr.f32.mxu0 0.0
        %677 = vmatmul.mubr.f32.gmra.mrb[0].mxu0 %v601
        %v678 = vpop.f32.mrb[0].mxu0
        %v679 = vadd.f32 0.0, %v678
        %v680 = vpop.f32.mrb[0].mxu0
        %681 = vmatprep.mubr.f32.mxu0 0.0
        %682 = vmatmul.mubr.f32.gmra.mrb[0].mxu0 %v604
        %v683 = vpop.f32.mrb[0].mxu0
        %v684 = vadd.f32 0.0, %v683
        %v685 = vpop.f32.mrb[0].mxu0
        %686 = vmatprep.mubr.f32.mxu0 0.0
        %687 = vmatmul.mubr.f32.gmra.mrb[0].mxu0 %v607
        %v688 = vpop.f32.mrb[0].mxu0
        %v689 = vadd.f32 0.0, %v688
        %v690 = vpop.f32.mrb[0].mxu0
        %691 = vmatprep.mubr.f32.mxu0 0.0
        %692 = vmatmul.mubr.f32.gmra.mrb[0].mxu0 %v610
        %v693 = vpop.f32.mrb[0].mxu0
        %v694 = vadd.f32 0.0, %v693
        %v695 = vpop.f32.mrb[0].mxu0
        %696 = vdwg.mxu0
        %v697 = vld [vmem:[%s2] sm:$0xff]
        %v698 = vld [vmem:[%s2 + $0x8] sm:$0xff]
        %v700 = vsel %vm599, %v697, 0
        %v703 = vsel %vm599, %v698, 0
        %705 = vmatprep.subr.mxu0 0.0
        %706 = vmatpush1.msra.mxu0 %v679
        %707 = vmatprep.subr.mxu0 0.0
        %708 = vmatpush1.msra.mxu0 0.0
        %709 = vmatprep.subr.mxu0 0.0
        %710 = vmatpush1.msra.mxu0 0.0
        %711 = vmatprep.subr.mxu0 0.0
        %712 = vmatpush1.msra.mxu0 0.0
        %713 = vmatprep.subr.mxu0 0.0
        %714 = vmatpush1.msra.mxu0 0.0
        %715 = vmatprep.subr.mxu0 0.0
        %716 = vmatpush1.msra.mxu0 0.0
        %717 = vmatprep.subr.mxu0 0.0
        %718 = vmatpush1.msra.mxu0 0.0
        %719 = vmatprep.subr.mxu0 0.0
        %720 = vmatpush1.msra.mxu0 0.0
        %721 = vmatprep.subr.mxu0 0.0
        %722 = vmatpush1.msra.mxu0 0.0
        %723 = vmatprep.subr.mxu0 0.0
        %724 = vmatpush1.msra.mxu0 0.0
        %725 = vmatprep.subr.mxu0 0.0
        %726 = vmatpush1.msra.mxu0 0.0
        %727 = vmatprep.subr.mxu0 0.0
        %728 = vmatpush1.msra.mxu0 0.0
        %729 = vmatprep.subr.mxu0 0.0
        %730 = vmatpush1.msra.mxu0 0.0
        %731 = vmatprep.subr.mxu0 0.0
        %732 = vmatpush1.msra.mxu0 0.0
        %733 = vmatprep.subr.mxu0 0.0
        %734 = vmatpush1.msra.mxu0 0.0
        %735 = vmatprep.subr.mxu0 0.0
        %736 = vmatpush1.msra.mxu0 0.0
        %737 = vmatprep.subr.mxu0 0.0
        %738 = vmatpush1.msra.mxu0 0.0
        %739 = vmatprep.subr.mxu0 0.0
        %740 = vmatpush1.msra.mxu0 0.0
        %741 = vmatprep.subr.mxu0 0.0
        %742 = vmatpush1.msra.mxu0 0.0
        %743 = vmatprep.subr.mxu0 0.0
        %744 = vmatpush1.msra.mxu0 0.0
        %745 = vmatprep.subr.mxu0 0.0
        %746 = vmatpush1.msra.mxu0 0.0
        %747 = vmatprep.subr.mxu0 0.0
        %748 = vmatpush1.msra.mxu0 0.0
        %749 = vmatprep.subr.mxu0 0.0
        %750 = vmatpush1.msra.mxu0 0.0
        %751 = vmatprep.subr.mxu0 0.0
        %752 = vmatpush1.msra.mxu0 0.0
        %753 = vmatprep.subr.mxu0 0.0
        %754 = vmatpush1.msra.mxu0 0.0
        %755 = vmatprep.subr.mxu0 0.0
        %756 = vmatpush1.msra.mxu0 0.0
        %757 = vmatprep.subr.mxu0 0.0
        %758 = vmatpush1.msra.mxu0 0.0
        %759 = vmatprep.subr.mxu0 0.0
        %760 = vmatpush1.msra.mxu0 0.0
        %761 = vmatprep.subr.mxu0 0.0
        %762 = vmatpush1.msra.mxu0 0.0
        %763 = vmatprep.subr.mxu0 0.0
        %764 = vmatpush1.msra.mxu0 0.0
        %765 = vmatprep.subr.mxu0 0.0
        %766 = vmatpush1.msra.mxu0 0.0
        %767 = vmatprep.subr.mxu0 0.0
        %768 = vmatpush1.msra.mxu0 0.0
        %769 = vmatprep.mubr.f32.mxu0 0.0
        %770 = vmatmul.mubr.f32.gmra.mrb[0].mxu0 %v700
        %v771 = vpop.f32.mrb[0].mxu0
        %v772 = vadd.f32 0.0, %v771
        %v773 = vpop.f32.mrb[0].mxu0
        %774 = vmatprep.mubr.f32.mxu0 0.0
        %775 = vmatmul.mubr.f32.gmra.mrb[0].mxu0 %v703
        %v776 = vpop.f32.mrb[0].mxu0
        %v777 = vadd.f32 0.0, %v776
        %v778 = vpop.f32.mrb[0].mxu0
        %779 = vdwg.mxu0
        %s780 = sld [smem:[#allocation11]]
        %v781 = vstv %s780
        %v782 = vmul.f32 %v772, %v781
        %v783 = vmul.f32 %v777, %v781
        %s784 = sld [smem:[#allocation12]]
        %v785 = vstv %s784
        %v786 = vadd.f32 %v782, %v785
        %v787 = vadd.f32 %v783, %v785
        %790 = vrot.lane.b32.xlu0 %v786, 1
        %v791 = vpop.permute.xlu0 %790
        %792 = vrot.lane.b32.xlu0 %v787, 1
        %v793 = vpop.permute.xlu0 %792
        %s796 = scalar_lea.vmem [#allocation2], 96
        %797 = vst.msk [vmem:[%s796 + $0x1] sm:$0xff] %vm585, %v791
        %798 = vst.msk [vmem:[%s796 + $0x9] sm:$0xff] %vm585, %v793
        %v799 = vld [vmem:[%s2] sm:$0xff]
        %v800 = vld [vmem:[%s2 + $0x8] sm:$0xff]
        %v802 = vsel %vm599, %v799, 0
        %v805 = vsel %vm599, %v800, 0
        %807 = vmatprep.subr.mxu0 0.0
        %808 = vmatpush1.msra.mxu0 %v684
        %809 = vmatprep.subr.mxu0 0.0
        %810 = vmatpush1.msra.mxu0 0.0
        %811 = vmatprep.subr.mxu0 0.0
        %812 = vmatpush1.msra.mxu0 0.0
        %813 = vmatprep.subr.mxu0 0.0
        %814 = vmatpush1.msra.mxu0 0.0
        %815 = vmatprep.subr.mxu0 0.0
        %816 = vmatpush1.msra.mxu0 0.0
        %817 = vmatprep.subr.mxu0 0.0
        %818 = vmatpush1.msra.mxu0 0.0
        %819 = vmatprep.subr.mxu0 0.0
        %820 = vmatpush1.msra.mxu0 0.0
        %821 = vmatprep.subr.mxu0 0.0
        %822 = vmatpush1.msra.mxu0 0.0
        %823 = vmatprep.subr.mxu0 0.0
        %824 = vmatpush1.msra.mxu0 0.0
        %825 = vmatprep.subr.mxu0 0.0
        %826 = vmatpush1.msra.mxu0 0.0
        %827 = vmatprep.subr.mxu0 0.0
        %828 = vmatpush1.msra.mxu0 0.0
        %829 = vmatprep.subr.mxu0 0.0
        %830 = vmatpush1.msra.mxu0 0.0
        %831 = vmatprep.subr.mxu0 0.0
        %832 = vmatpush1.msra.mxu0 0.0
        %833 = vmatprep.subr.mxu0 0.0
        %834 = vmatpush1.msra.mxu0 0.0
        %835 = vmatprep.subr.mxu0 0.0
        %836 = vmatpush1.msra.mxu0 0.0
        %837 = vmatprep.subr.mxu0 0.0
        %838 = vmatpush1.msra.mxu0 0.0
        %839 = vmatprep.subr.mxu0 0.0
        %840 = vmatpush1.msra.mxu0 0.0
        %841 = vmatprep.subr.mxu0 0.0
        %842 = vmatpush1.msra.mxu0 0.0
        %843 = vmatprep.subr.mxu0 0.0
        %844 = vmatpush1.msra.mxu0 0.0
        %845 = vmatprep.subr.mxu0 0.0
        %846 = vmatpush1.msra.mxu0 0.0
        %847 = vmatprep.subr.mxu0 0.0
        %848 = vmatpush1.msra.mxu0 0.0
        %849 = vmatprep.subr.mxu0 0.0
        %850 = vmatpush1.msra.mxu0 0.0
        %851 = vmatprep.subr.mxu0 0.0
        %852 = vmatpush1.msra.mxu0 0.0
        %853 = vmatprep.subr.mxu0 0.0
        %854 = vmatpush1.msra.mxu0 0.0
        %855 = vmatprep.subr.mxu0 0.0
        %856 = vmatpush1.msra.mxu0 0.0
        %857 = vmatprep.subr.mxu0 0.0
        %858 = vmatpush1.msra.mxu0 0.0
        %859 = vmatprep.subr.mxu0 0.0
        %860 = vmatpush1.msra.mxu0 0.0
        %861 = vmatprep.subr.mxu0 0.0
        %862 = vmatpush1.msra.mxu0 0.0
        %863 = vmatprep.subr.mxu0 0.0
        %864 = vmatpush1.msra.mxu0 0.0
        %865 = vmatprep.subr.mxu0 0.0
        %866 = vmatpush1.msra.mxu0 0.0
        %867 = vmatprep.subr.mxu0 0.0
        %868 = vmatpush1.msra.mxu0 0.0
        %869 = vmatprep.subr.mxu0 0.0
        %870 = vmatpush1.msra.mxu0 0.0
        %871 = vmatprep.mubr.f32.mxu0 0.0
        %872 = vmatmul.mubr.f32.gmra.mrb[0].mxu0 %v802
        %v873 = vpop.f32.mrb[0].mxu0
        %v874 = vadd.f32 0.0, %v873
        %v875 = vpop.f32.mrb[0].mxu0
        %876 = vmatprep.mubr.f32.mxu0 0.0
        %877 = vmatmul.mubr.f32.gmra.mrb[0].mxu0 %v805
        %v878 = vpop.f32.mrb[0].mxu0
        %v879 = vadd.f32 0.0, %v878
        %v880 = vpop.f32.mrb[0].mxu0
        %881 = vdwg.mxu0
        %s882 = sld [smem:[#allocation11 + $0x1]]
        %v883 = vstv %s882
        %v884 = vmul.f32 %v874, %v883
        %v885 = vmul.f32 %v879, %v883
        %s886 = sld [smem:[#allocation12 + $0x1]]
        %v887 = vstv %s886
        %v888 = vadd.f32 %v884, %v887
        %v889 = vadd.f32 %v885, %v887
        %892 = vrot.lane.b32.xlu0 %v888, 1
        %v893 = vpop.permute.xlu0 %892
        %894 = vrot.lane.b32.xlu0 %v889, 1
        %v895 = vpop.permute.xlu0 %894
        %s898 = scalar_lea.vmem [#allocation2], 120
        %899 = vst.msk [vmem:[%s898 + $0x1] sm:$0xff] %vm585, %v893
        %900 = vst.msk [vmem:[%s898 + $0x9] sm:$0xff] %vm585, %v895
        %v901 = vld [vmem:[%s2] sm:$0xff]
        %v902 = vld [vmem:[%s2 + $0x8] sm:$0xff]
        %v904 = vsel %vm599, %v901, 0
        %v907 = vsel %vm599, %v902, 0
        %909 = vmatprep.subr.mxu0 0.0
        %910 = vmatpush1.msra.mxu0 %v689
        %911 = vmatprep.subr.mxu0 0.0
        %912 = vmatpush1.msra.mxu0 0.0
        %913 = vmatprep.subr.mxu0 0.0
        %914 = vmatpush1.msra.mxu0 0.0
        %915 = vmatprep.subr.mxu0 0.0
        %916 = vmatpush1.msra.mxu0 0.0
        %917 = vmatprep.subr.mxu0 0.0
        %918 = vmatpush1.msra.mxu0 0.0
        %919 = vmatprep.subr.mxu0 0.0
        %920 = vmatpush1.msra.mxu0 0.0
        %921 = vmatprep.subr.mxu0 0.0
        %922 = vmatpush1.msra.mxu0 0.0
        %923 = vmatprep.subr.mxu0 0.0
        %924 = vmatpush1.msra.mxu0 0.0
        %925 = vmatprep.subr.mxu0 0.0
        %926 = vmatpush1.msra.mxu0 0.0
        %927 = vmatprep.subr.mxu0 0.0
        %928 = vmatpush1.msra.mxu0 0.0
        %929 = vmatprep.subr.mxu0 0.0
        %930 = vmatpush1.msra.mxu0 0.0
        %931 = vmatprep.subr.mxu0 0.0
        %932 = vmatpush1.msra.mxu0 0.0
        %933 = vmatprep.subr.mxu0 0.0
        %934 = vmatpush1.msra.mxu0 0.0
        %935 = vmatprep.subr.mxu0 0.0
        %936 = vmatpush1.msra.mxu0 0.0
        %937 = vmatprep.subr.mxu0 0.0
        %938 = vmatpush1.msra.mxu0 0.0
        %939 = vmatprep.subr.mxu0 0.0
        %940 = vmatpush1.msra.mxu0 0.0
        %941 = vmatprep.subr.mxu0 0.0
        %942 = vmatpush1.msra.mxu0 0.0
        %943 = vmatprep.subr.mxu0 0.0
        %944 = vmatpush1.msra.mxu0 0.0
        %945 = vmatprep.subr.mxu0 0.0
        %946 = vmatpush1.msra.mxu0 0.0
        %947 = vmatprep.subr.mxu0 0.0
        %948 = vmatpush1.msra.mxu0 0.0
        %949 = vmatprep.subr.mxu0 0.0
        %950 = vmatpush1.msra.mxu0 0.0
        %951 = vmatprep.subr.mxu0 0.0
        %952 = vmatpush1.msra.mxu0 0.0
        %953 = vmatprep.subr.mxu0 0.0
        %954 = vmatpush1.msra.mxu0 0.0
        %955 = vmatprep.subr.mxu0 0.0
        %956 = vmatpush1.msra.mxu0 0.0
        %957 = vmatprep.subr.mxu0 0.0
        %958 = vmatpush1.msra.mxu0 0.0
        %959 = vmatprep.subr.mxu0 0.0
        %960 = vmatpush1.msra.mxu0 0.0
        %961 = vmatprep.subr.mxu0 0.0
        %962 = vmatpush1.msra.mxu0 0.0
        %963 = vmatprep.subr.mxu0 0.0
        %964 = vmatpush1.msra.mxu0 0.0
        %965 = vmatprep.subr.mxu0 0.0
        %966 = vmatpush1.msra.mxu0 0.0
        %967 = vmatprep.subr.mxu0 0.0
        %968 = vmatpush1.msra.mxu0 0.0
        %969 = vmatprep.subr.mxu0 0.0
        %970 = vmatpush1.msra.mxu0 0.0
        %971 = vmatprep.subr.mxu0 0.0
        %972 = vmatpush1.msra.mxu0 0.0
        %973 = vmatprep.mubr.f32.mxu0 0.0
        %974 = vmatmul.mubr.f32.gmra.mrb[0].mxu0 %v904
        %v975 = vpop.f32.mrb[0].mxu0
        %v976 = vadd.f32 0.0, %v975
        %v977 = vpop.f32.mrb[0].mxu0
        %978 = vmatprep.mubr.f32.mxu0 0.0
        %979 = vmatmul.mubr.f32.gmra.mrb[0].mxu0 %v907
        %v980 = vpop.f32.mrb[0].mxu0
        %v981 = vadd.f32 0.0, %v980
        %v982 = vpop.f32.mrb[0].mxu0
        %983 = vdwg.mxu0
        %s984 = sld [smem:[#allocation11 + $0x2]]
        %v985 = vstv %s984
        %v986 = vmul.f32 %v976, %v985
        %v987 = vmul.f32 %v981, %v985
        %s988 = sld [smem:[#allocation12 + $0x2]]
        %v989 = vstv %s988
        %v990 = vadd.f32 %v986, %v989
        %v991 = vadd.f32 %v987, %v989
        %994 = vrot.lane.b32.xlu0 %v990, 1
        %v995 = vpop.permute.xlu0 %994
        %996 = vrot.lane.b32.xlu0 %v991, 1
        %v997 = vpop.permute.xlu0 %996
        %s1000 = scalar_lea.vmem [#allocation2], 144
        %1001 = vst.msk [vmem:[%s1000 + $0x1] sm:$0xff] %vm585, %v995
        %1002 = vst.msk [vmem:[%s1000 + $0x9] sm:$0xff] %vm585, %v997
        %v1003 = vld [vmem:[%s2] sm:$0xff]
        %v1004 = vld [vmem:[%s2 + $0x8] sm:$0xff]
        %v1006 = vsel %vm599, %v1003, 0
        %v1009 = vsel %vm599, %v1004, 0
        %1011 = vmatprep.subr.mxu0 0.0
        %1012 = vmatpush1.msra.mxu0 %v694
        %1013 = vmatprep.subr.mxu0 0.0
        %1014 = vmatpush1.msra.mxu0 0.0
        %1015 = vmatprep.subr.mxu0 0.0
        %1016 = vmatpush1.msra.mxu0 0.0
        %1017 = vmatprep.subr.mxu0 0.0
        %1018 = vmatpush1.msra.mxu0 0.0
        %1019 = vmatprep.subr.mxu0 0.0
        %1020 = vmatpush1.msra.mxu0 0.0
        %1021 = vmatprep.subr.mxu0 0.0
        %1022 = vmatpush1.msra.mxu0 0.0
        %1023 = vmatprep.subr.mxu0 0.0
        %1024 = vmatpush1.msra.mxu0 0.0
        %1025 = vmatprep.subr.mxu0 0.0
        %1026 = vmatpush1.msra.mxu0 0.0
        %1027 = vmatprep.subr.mxu0 0.0
        %1028 = vmatpush1.msra.mxu0 0.0
        %1029 = vmatprep.subr.mxu0 0.0
        %1030 = vmatpush1.msra.mxu0 0.0
        %1031 = vmatprep.subr.mxu0 0.0
        %1032 = vmatpush1.msra.mxu0 0.0
        %1033 = vmatprep.subr.mxu0 0.0
        %1034 = vmatpush1.msra.mxu0 0.0
        %1035 = vmatprep.subr.mxu0 0.0
        %1036 = vmatpush1.msra.mxu0 0.0
        %1037 = vmatprep.subr.mxu0 0.0
        %1038 = vmatpush1.msra.mxu0 0.0
        %1039 = vmatprep.subr.mxu0 0.0
        %1040 = vmatpush1.msra.mxu0 0.0
        %1041 = vmatprep.subr.mxu0 0.0
        %1042 = vmatpush1.msra.mxu0 0.0
        %1043 = vmatprep.subr.mxu0 0.0
        %1044 = vmatpush1.msra.mxu0 0.0
        %1045 = vmatprep.subr.mxu0 0.0
        %1046 = vmatpush1.msra.mxu0 0.0
        %1047 = vmatprep.subr.mxu0 0.0
        %1048 = vmatpush1.msra.mxu0 0.0
        %1049 = vmatprep.subr.mxu0 0.0
        %1050 = vmatpush1.msra.mxu0 0.0
        %1051 = vmatprep.subr.mxu0 0.0
        %1052 = vmatpush1.msra.mxu0 0.0
        %1053 = vmatprep.subr.mxu0 0.0
        %1054 = vmatpush1.msra.mxu0 0.0
        %1055 = vmatprep.subr.mxu0 0.0
        %1056 = vmatpush1.msra.mxu0 0.0
        %1057 = vmatprep.subr.mxu0 0.0
        %1058 = vmatpush1.msra.mxu0 0.0
        %1059 = vmatprep.subr.mxu0 0.0
        %1060 = vmatpush1.msra.mxu0 0.0
        %1061 = vmatprep.subr.mxu0 0.0
        %1062 = vmatpush1.msra.mxu0 0.0
        %1063 = vmatprep.subr.mxu0 0.0
        %1064 = vmatpush1.msra.mxu0 0.0
        %1065 = vmatprep.subr.mxu0 0.0
        %1066 = vmatpush1.msra.mxu0 0.0
        %1067 = vmatprep.subr.mxu0 0.0
        %1068 = vmatpush1.msra.mxu0 0.0
        %1069 = vmatprep.subr.mxu0 0.0
        %1070 = vmatpush1.msra.mxu0 0.0
        %1071 = vmatprep.subr.mxu0 0.0
        %1072 = vmatpush1.msra.mxu0 0.0
        %1073 = vmatprep.subr.mxu0 0.0
        %1074 = vmatpush1.msra.mxu0 0.0
        %1075 = vmatprep.mubr.f32.mxu0 0.0
        %1076 = vmatmul.mubr.f32.gmra.mrb[0].mxu0 %v1006
        %v1077 = vpop.f32.mrb[0].mxu0
        %v1078 = vadd.f32 0.0, %v1077
        %v1079 = vpop.f32.mrb[0].mxu0
        %1080 = vmatprep.mubr.f32.mxu0 0.0
        %1081 = vmatmul.mubr.f32.gmra.mrb[0].mxu0 %v1009
        %v1082 = vpop.f32.mrb[0].mxu0
        %v1083 = vadd.f32 0.0, %v1082
        %v1084 = vpop.f32.mrb[0].mxu0
        %1085 = vdwg.mxu0
        %s1086 = sld [smem:[#allocation11 + $0x3]]
        %v1087 = vstv %s1086
        %v1088 = vmul.f32 %v1078, %v1087
        %v1089 = vmul.f32 %v1083, %v1087
        %s1090 = sld [smem:[#allocation12 + $0x3]]
        %v1091 = vstv %s1090
        %v1092 = vadd.f32 %v1088, %v1091
        %v1093 = vadd.f32 %v1089, %v1091
        %1096 = vrot.lane.b32.xlu0 %v1092, 1
        %v1097 = vpop.permute.xlu0 %1096
        %1098 = vrot.lane.b32.xlu0 %v1093, 1
        %v1099 = vpop.permute.xlu0 %1098
        %s1102 = scalar_lea.vmem [#allocation2], 168
        %1103 = vst.msk [vmem:[%s1102 + $0x1] sm:$0xff] %vm585, %v1097
        %1104 = vst.msk [vmem:[%s1102 + $0x9] sm:$0xff] %vm585, %v1099
        %1105 = vst [vmem:[#allocation3] sm:$0xff] 0.0
        %1106 = vst [vmem:[#allocation3 + $0x8] sm:$0xff] 0.0
        %vm1107 = vcmask 867328
        %1108 = vst.msk [vmem:[#allocation3 + $0x10] sm:$0xff] %vm1107, 0.0
        %v1109 = vld [vmem:[#allocation2] sm:$0x1]
        %v1110 = vld [vmem:[#allocation2 + $0x18] sm:$0x1]
        %v1111 = vld [vmem:[#allocation2 + $0x30] sm:$0x1]
        %v1112 = vld [vmem:[#allocation2 + $0x48] sm:$0x1]
        %v1113 = vld [vmem:[#allocation2 + $0x60] sm:$0x1]
        %v1114 = vld [vmem:[#allocation2 + $0x78] sm:$0x1]
        %v1115 = vld [vmem:[#allocation2 + $0x90] sm:$0x1]
        %v1116 = vld [vmem:[#allocation2 + $0xa8] sm:$0x1]
        %v1125 = vrot.slane %v1110, 7
        %vm1126 = vcmask 1041409
        %v1127 = vsel %vm1126, %v1125, %v1109
        %v1128 = vrot.slane %v1111, 6
        %vm1129 = vcmask 1042434
        %v1130 = vsel %vm1129, %v1128, %v1127
        %v1131 = vrot.slane %v1112, 5
        %vm1132 = vcmask 1043459
        %v1133 = vsel %vm1132, %v1131, %v1130
        %v1134 = vrot.slane %v1113, 4
        %vm1135 = vcmask 1044484
        %v1136 = vsel %vm1135, %v1134, %v1133
        %v1137 = vrot.slane %v1114, 3
        %vm1138 = vcmask 1045509
        %v1139 = vsel %vm1138, %v1137, %v1136
        %v1140 = vrot.slane %v1115, 2
        %vm1141 = vcmask 1046534
        %v1142 = vsel %vm1141, %v1140, %v1139
        %v1143 = vrot.slane %v1116, 1
        %vm1144 = vcmask 1047559
        %v1145 = vsel %vm1144, %v1143, %v1142
        %1146 = vrot.lane.b32.xlu0 %v1145, 19
        %v1147 = vpop.permute.xlu0 %1146
        %vm1149 = vcmask 302232
        %1150 = vst.msk [vmem:[#allocation3] sm:$0xff] %vm1149, %v1147
        %v1151 = vld [vmem:[#allocation2 + $0x1] sm:$0x1]
        %v1152 = vld [vmem:[#allocation2 + $0x19] sm:$0x1]
        %v1153 = vld [vmem:[#allocation2 + $0x31] sm:$0x1]
        %v1154 = vld [vmem:[#allocation2 + $0x49] sm:$0x1]
        %v1155 = vld [vmem:[#allocation2 + $0x61] sm:$0x1]
        %v1156 = vld [vmem:[#allocation2 + $0x79] sm:$0x1]
        %v1157 = vld [vmem:[#allocation2 + $0x91] sm:$0x1]
        %v1158 = vld [vmem:[#allocation2 + $0xa9] sm:$0x1]
        %v1167 = vrot.slane %v1152, 7
        %v1168 = vsel %vm1126, %v1167, %v1151
        %v1169 = vrot.slane %v1153, 6
        %v1170 = vsel %vm1129, %v1169, %v1168
        %v1171 = vrot.slane %v1154, 5
        %v1172 = vsel %vm1132, %v1171, %v1170
        %v1173 = vrot.slane %v1155, 4
        %v1174 = vsel %vm1135, %v1173, %v1172
        %v1175 = vrot.slane %v1156, 3
        %v1176 = vsel %vm1138, %v1175, %v1174
        %v1177 = vrot.slane %v1157, 2
        %v1178 = vsel %vm1141, %v1177, %v1176
        %v1179 = vrot.slane %v1158, 1
        %v1180 = vsel %vm1144, %v1179, %v1178
        %1181 = vrot.lane.b32.xlu0 %v1180, 37
        %v1182 = vpop.permute.xlu0 %1181
        %vm1184 = vcmask 449832
        %1185 = vst.msk [vmem:[#allocation3] sm:$0xff] %vm1184, %v1182
        %v1186 = vld [vmem:[#allocation2 + $0x2] sm:$0x1]
        %v1187 = vld [vmem:[#allocation2 + $0x1a] sm:$0x1]
        %v1188 = vld [vmem:[#allocation2 + $0x32] sm:$0x1]
        %v1189 = vld [vmem:[#allocation2 + $0x4a] sm:$0x1]
        %v1190 = vld [vmem:[#allocation2 + $0x62] sm:$0x1]
        %v1191 = vld [vmem:[#allocation2 + $0x7a] sm:$0x1]
        %v1192 = vld [vmem:[#allocation2 + $0x92] sm:$0x1]
        %v1193 = vld [vmem:[#allocation2 + $0xaa] sm:$0x1]
        %v1202 = vrot.slane %v1187, 7
        %v1203 = vsel %vm1126, %v1202, %v1186
        %v1204 = vrot.slane %v1188, 6
        %v1205 = vsel %vm1129, %v1204, %v1203
        %v1206 = vrot.slane %v1189, 5
        %v1207 = vsel %vm1132, %v1206, %v1205
        %v1208 = vrot.slane %v1190, 4
        %v1209 = vsel %vm1135, %v1208, %v1207
        %v1210 = vrot.slane %v1191, 3
        %v1211 = vsel %vm1138, %v1210, %v1209
        %v1212 = vrot.slane %v1192, 2
        %v1213 = vsel %vm1141, %v1212, %v1211
        %v1214 = vrot.slane %v1193, 1
        %v1215 = vsel %vm1144, %v1214, %v1213
        %1216 = vrot.lane.b32.xlu0 %v1215, 55
        %v1217 = vpop.permute.xlu0 %1216
        %vm1219 = vcmask 597432
        %1220 = vst.msk [vmem:[#allocation3] sm:$0xff] %vm1219, %v1217
        %v1221 = vld [vmem:[#allocation2 + $0x3] sm:$0x1]
        %v1222 = vld [vmem:[#allocation2 + $0x1b] sm:$0x1]
        %v1223 = vld [vmem:[#allocation2 + $0x33] sm:$0x1]
        %v1224 = vld [vmem:[#allocation2 + $0x4b] sm:$0x1]
        %v1225 = vld [vmem:[#allocation2 + $0x63] sm:$0x1]
        %v1226 = vld [vmem:[#allocation2 + $0x7b] sm:$0x1]
        %v1227 = vld [vmem:[#allocation2 + $0x93] sm:$0x1]
        %v1228 = vld [vmem:[#allocation2 + $0xab] sm:$0x1]
        %v1237 = vrot.slane %v1222, 7
        %v1238 = vsel %vm1126, %v1237, %v1221
        %v1239 = vrot.slane %v1223, 6
        %v1240 = vsel %vm1129, %v1239, %v1238
        %v1241 = vrot.slane %v1224, 5
        %v1242 = vsel %vm1132, %v1241, %v1240
        %v1243 = vrot.slane %v1225, 4
        %v1244 = vsel %vm1135, %v1243, %v1242
        %v1245 = vrot.slane %v1226, 3
        %v1246 = vsel %vm1138, %v1245, %v1244
        %v1247 = vrot.slane %v1227, 2
        %v1248 = vsel %vm1141, %v1247, %v1246
        %v1249 = vrot.slane %v1228, 1
        %v1250 = vsel %vm1144, %v1249, %v1248
        %1251 = vrot.lane.b32.xlu0 %v1250, 73
        %v1252 = vpop.permute.xlu0 %1251
        %vm1254 = vcmask 745032
        %1255 = vst.msk [vmem:[#allocation3] sm:$0xff] %vm1254, %v1252
        %v1256 = vld [vmem:[#allocation2 + $0x4] sm:$0x1]
        %v1257 = vld [vmem:[#allocation2 + $0x1c] sm:$0x1]
        %v1258 = vld [vmem:[#allocation2 + $0x34] sm:$0x1]
        %v1259 = vld [vmem:[#allocation2 + $0x4c] sm:$0x1]
        %v1260 = vld [vmem:[#allocation2 + $0x64] sm:$0x1]
        %v1261 = vld [vmem:[#allocation2 + $0x7c] sm:$0x1]
        %v1262 = vld [vmem:[#allocation2 + $0x94] sm:$0x1]
        %v1263 = vld [vmem:[#allocation2 + $0xac] sm:$0x1]
        %v1272 = vrot.slane %v1257, 7
        %v1273 = vsel %vm1126, %v1272, %v1256
        %v1274 = vrot.slane %v1258, 6
        %v1275 = vsel %vm1129, %v1274, %v1273
        %v1276 = vrot.slane %v1259, 5
        %v1277 = vsel %vm1132, %v1276, %v1275
        %v1278 = vrot.slane %v1260, 4
        %v1279 = vsel %vm1135, %v1278, %v1277
        %v1280 = vrot.slane %v1261, 3
        %v1281 = vsel %vm1138, %v1280, %v1279
        %v1282 = vrot.slane %v1262, 2
        %v1283 = vsel %vm1141, %v1282, %v1281
        %v1284 = vrot.slane %v1263, 1
        %v1285 = vsel %vm1144, %v1284, %v1283
        %1286 = vrot.lane.b32.xlu0 %v1285, 91
        %v1287 = vpop.permute.xlu0 %1286
        %vm1289 = vcmask 892632
        %1290 = vst.msk [vmem:[#allocation3] sm:$0xff] %vm1289, %v1287
        %v1291 = vld [vmem:[#allocation2 + $0x5] sm:$0x1]
        %v1292 = vld [vmem:[#allocation2 + $0x1d] sm:$0x1]
        %v1293 = vld [vmem:[#allocation2 + $0x35] sm:$0x1]
        %v1294 = vld [vmem:[#allocation2 + $0x4d] sm:$0x1]
        %v1295 = vld [vmem:[#allocation2 + $0x65] sm:$0x1]
        %v1296 = vld [vmem:[#allocation2 + $0x7d] sm:$0x1]
        %v1297 = vld [vmem:[#allocation2 + $0x95] sm:$0x1]
        %v1298 = vld [vmem:[#allocation2 + $0xad] sm:$0x1]
        %v1307 = vrot.slane %v1292, 7
        %v1308 = vsel %vm1126, %v1307, %v1291
        %v1309 = vrot.slane %v1293, 6
        %v1310 = vsel %vm1129, %v1309, %v1308
        %v1311 = vrot.slane %v1294, 5
        %v1312 = vsel %vm1132, %v1311, %v1310
        %v1313 = vrot.slane %v1295, 4
        %v1314 = vsel %vm1135, %v1313, %v1312
        %v1315 = vrot.slane %v1296, 3
        %v1316 = vsel %vm1138, %v1315, %v1314
        %v1317 = vrot.slane %v1297, 2
        %v1318 = vsel %vm1141, %v1317, %v1316
        %v1319 = vrot.slane %v1298, 1
        %v1320 = vsel %vm1144, %v1319, %v1318
        %1321 = vrot.lane.b32.xlu0 %v1320, 109
        %v1322 = vpop.permute.xlu0 %1321
        %vm1324 = vcmask 1040232
        %1325 = vst.msk [vmem:[#allocation3] sm:$0xff] %vm1324, %v1322
        %v1326 = vld [vmem:[#allocation2 + $0x6] sm:$0x1]
        %v1327 = vld [vmem:[#allocation2 + $0x1e] sm:$0x1]
        %v1328 = vld [vmem:[#allocation2 + $0x36] sm:$0x1]
        %v1329 = vld [vmem:[#allocation2 + $0x4e] sm:$0x1]
        %v1330 = vld [vmem:[#allocation2 + $0x66] sm:$0x1]
        %v1331 = vld [vmem:[#allocation2 + $0x7e] sm:$0x1]
        %v1332 = vld [vmem:[#allocation2 + $0x96] sm:$0x1]
        %v1333 = vld [vmem:[#allocation2 + $0xae] sm:$0x1]
        %v1342 = vrot.slane %v1327, 7
        %v1343 = vsel %vm1126, %v1342, %v1326
        %v1344 = vrot.slane %v1328, 6
        %v1345 = vsel %vm1129, %v1344, %v1343
        %v1346 = vrot.slane %v1329, 5
        %v1347 = vsel %vm1132, %v1346, %v1345
        %v1348 = vrot.slane %v1330, 4
        %v1349 = vsel %vm1135, %v1348, %v1347
        %v1350 = vrot.slane %v1331, 3
        %v1351 = vsel %vm1138, %v1350, %v1349
        %v1352 = vrot.slane %v1332, 2
        %v1353 = vsel %vm1141, %v1352, %v1351
        %v1354 = vrot.slane %v1333, 1
        %v1355 = vsel %vm1144, %v1354, %v1353
        %1356 = vrot.lane.b32.xlu0 %v1355, 127
        %v1357 = vpop.permute.xlu0 %1356
        %vm1359 = vcmask 1048568
        %1360 = vst.msk [vmem:[#allocation3] sm:$0xff] %vm1359, %v1357
        %vm1361 = vcmask 138240
        %1362 = vst.msk [vmem:[#allocation3 + $0x8] sm:$0xff] %vm1361, %v1357
        %v1363 = vld [vmem:[#allocation2 + $0x7] sm:$0x1]
        %v1364 = vld [vmem:[#allocation2 + $0x1f] sm:$0x1]
        %v1365 = vld [vmem:[#allocation2 + $0x37] sm:$0x1]
        %v1366 = vld [vmem:[#allocation2 + $0x4f] sm:$0x1]
        %v1367 = vld [vmem:[#allocation2 + $0x67] sm:$0x1]
        %v1368 = vld [vmem:[#allocation2 + $0x7f] sm:$0x1]
        %v1369 = vld [vmem:[#allocation2 + $0x97] sm:$0x1]
        %v1370 = vld [vmem:[#allocation2 + $0xaf] sm:$0x1]
        %v1379 = vrot.slane %v1364, 7
        %v1380 = vsel %vm1126, %v1379, %v1363
        %v1381 = vrot.slane %v1365, 6
        %v1382 = vsel %vm1129, %v1381, %v1380
        %v1383 = vrot.slane %v1366, 5
        %v1384 = vsel %vm1132, %v1383, %v1382
        %v1385 = vrot.slane %v1367, 4
        %v1386 = vsel %vm1135, %v1385, %v1384
        %v1387 = vrot.slane %v1368, 3
        %v1388 = vsel %vm1138, %v1387, %v1386
        %v1389 = vrot.slane %v1369, 2
        %v1390 = vsel %vm1141, %v1389, %v1388
        %v1391 = vrot.slane %v1370, 1
        %v1392 = vsel %vm1144, %v1391, %v1390
        %1393 = vrot.lane.b32.xlu0 %v1392, 17
        %v1394 = vpop.permute.xlu0 %1393
        %vm1396 = vcmask 285832
        %1397 = vst.msk [vmem:[#allocation3 + $0x8] sm:$0xff] %vm1396, %v1394
        %v1398 = vld [vmem:[#allocation2 + $0x8] sm:$0x1]
        %v1399 = vld [vmem:[#allocation2 + $0x20] sm:$0x1]
        %v1400 = vld [vmem:[#allocation2 + $0x38] sm:$0x1]
        %v1401 = vld [vmem:[#allocation2 + $0x50] sm:$0x1]
        %v1402 = vld [vmem:[#allocation2 + $0x68] sm:$0x1]
        %v1403 = vld [vmem:[#allocation2 + $0x80] sm:$0x1]
        %v1404 = vld [vmem:[#allocation2 + $0x98] sm:$0x1]
        %v1405 = vld [vmem:[#allocation2 + $0xb0] sm:$0x1]
        %v1414 = vrot.slane %v1399, 7
        %v1415 = vsel %vm1126, %v1414, %v1398
        %v1416 = vrot.slane %v1400, 6
        %v1417 = vsel %vm1129, %v1416, %v1415
        %v1418 = vrot.slane %v1401, 5
        %v1419 = vsel %vm1132, %v1418, %v1417
        %v1420 = vrot.slane %v1402, 4
        %v1421 = vsel %vm1135, %v1420, %v1419
        %v1422 = vrot.slane %v1403, 3
        %v1423 = vsel %vm1138, %v1422, %v1421
        %v1424 = vrot.slane %v1404, 2
        %v1425 = vsel %vm1141, %v1424, %v1423
        %v1426 = vrot.slane %v1405, 1
        %v1427 = vsel %vm1144, %v1426, %v1425
        %1428 = vrot.lane.b32.xlu0 %v1427, 35
        %v1429 = vpop.permute.xlu0 %1428
        %vm1431 = vcmask 433432
        %1432 = vst.msk [vmem:[#allocation3 + $0x8] sm:$0xff] %vm1431, %v1429
        %v1433 = vld [vmem:[#allocation2 + $0x9] sm:$0x1]
        %v1434 = vld [vmem:[#allocation2 + $0x21] sm:$0x1]
        %v1435 = vld [vmem:[#allocation2 + $0x39] sm:$0x1]
        %v1436 = vld [vmem:[#allocation2 + $0x51] sm:$0x1]
        %v1437 = vld [vmem:[#allocation2 + $0x69] sm:$0x1]
        %v1438 = vld [vmem:[#allocation2 + $0x81] sm:$0x1]
        %v1439 = vld [vmem:[#allocation2 + $0x99] sm:$0x1]
        %v1440 = vld [vmem:[#allocation2 + $0xb1] sm:$0x1]
        %v1449 = vrot.slane %v1434, 7
        %v1450 = vsel %vm1126, %v1449, %v1433
        %v1451 = vrot.slane %v1435, 6
        %v1452 = vsel %vm1129, %v1451, %v1450
        %v1453 = vrot.slane %v1436, 5
        %v1454 = vsel %vm1132, %v1453, %v1452
        %v1455 = vrot.slane %v1437, 4
        %v1456 = vsel %vm1135, %v1455, %v1454
        %v1457 = vrot.slane %v1438, 3
        %v1458 = vsel %vm1138, %v1457, %v1456
        %v1459 = vrot.slane %v1439, 2
        %v1460 = vsel %vm1141, %v1459, %v1458
        %v1461 = vrot.slane %v1440, 1
        %v1462 = vsel %vm1144, %v1461, %v1460
        %1463 = vrot.lane.b32.xlu0 %v1462, 53
        %v1464 = vpop.permute.xlu0 %1463
        %vm1466 = vcmask 581032
        %1467 = vst.msk [vmem:[#allocation3 + $0x8] sm:$0xff] %vm1466, %v1464
        %v1468 = vld [vmem:[#allocation2 + $0xa] sm:$0x1]
        %v1469 = vld [vmem:[#allocation2 + $0x22] sm:$0x1]
        %v1470 = vld [vmem:[#allocation2 + $0x3a] sm:$0x1]
        %v1471 = vld [vmem:[#allocation2 + $0x52] sm:$0x1]
        %v1472 = vld [vmem:[#allocation2 + $0x6a] sm:$0x1]
        %v1473 = vld [vmem:[#allocation2 + $0x82] sm:$0x1]
        %v1474 = vld [vmem:[#allocation2 + $0x9a] sm:$0x1]
        %v1475 = vld [vmem:[#allocation2 + $0xb2] sm:$0x1]
        %v1484 = vrot.slane %v1469, 7
        %v1485 = vsel %vm1126, %v1484, %v1468
        %v1486 = vrot.slane %v1470, 6
        %v1487 = vsel %vm1129, %v1486, %v1485
        %v1488 = vrot.slane %v1471, 5
        %v1489 = vsel %vm1132, %v1488, %v1487
        %v1490 = vrot.slane %v1472, 4
        %v1491 = vsel %vm1135, %v1490, %v1489
        %v1492 = vrot.slane %v1473, 3
        %v1493 = vsel %vm1138, %v1492, %v1491
        %v1494 = vrot.slane %v1474, 2
        %v1495 = vsel %vm1141, %v1494, %v1493
        %v1496 = vrot.slane %v1475, 1
        %v1497 = vsel %vm1144, %v1496, %v1495
        %1498 = vrot.lane.b32.xlu0 %v1497, 71
        %v1499 = vpop.permute.xlu0 %1498
        %vm1501 = vcmask 728632
        %1502 = vst.msk [vmem:[#allocation3 + $0x8] sm:$0xff] %vm1501, %v1499
        %v1503 = vld [vmem:[#allocation2 + $0xb] sm:$0x1]
        %v1504 = vld [vmem:[#allocation2 + $0x23] sm:$0x1]
        %v1505 = vld [vmem:[#allocation2 + $0x3b] sm:$0x1]
        %v1506 = vld [vmem:[#allocation2 + $0x53] sm:$0x1]
        %v1507 = vld [vmem:[#allocation2 + $0x6b] sm:$0x1]
        %v1508 = vld [vmem:[#allocation2 + $0x83] sm:$0x1]
        %v1509 = vld [vmem:[#allocation2 + $0x9b] sm:$0x1]
        %v1510 = vld [vmem:[#allocation2 + $0xb3] sm:$0x1]
        %v1519 = vrot.slane %v1504, 7
        %v1520 = vsel %vm1126, %v1519, %v1503
        %v1521 = vrot.slane %v1505, 6
        %v1522 = vsel %vm1129, %v1521, %v1520
        %v1523 = vrot.slane %v1506, 5
        %v1524 = vsel %vm1132, %v1523, %v1522
        %v1525 = vrot.slane %v1507, 4
        %v1526 = vsel %vm1135, %v1525, %v1524
        %v1527 = vrot.slane %v1508, 3
        %v1528 = vsel %vm1138, %v1527, %v1526
        %v1529 = vrot.slane %v1509, 2
        %v1530 = vsel %vm1141, %v1529, %v1528
        %v1531 = vrot.slane %v1510, 1
        %v1532 = vsel %vm1144, %v1531, %v1530
        %1533 = vrot.lane.b32.xlu0 %v1532, 89
        %v1534 = vpop.permute.xlu0 %1533
        %vm1536 = vcmask 876232
        %1537 = vst.msk [vmem:[#allocation3 + $0x8] sm:$0xff] %vm1536, %v1534
        %v1538 = vld [vmem:[#allocation2 + $0xc] sm:$0x1]
        %v1539 = vld [vmem:[#allocation2 + $0x24] sm:$0x1]
        %v1540 = vld [vmem:[#allocation2 + $0x3c] sm:$0x1]
        %v1541 = vld [vmem:[#allocation2 + $0x54] sm:$0x1]
        %v1542 = vld [vmem:[#allocation2 + $0x6c] sm:$0x1]
        %v1543 = vld [vmem:[#allocation2 + $0x84] sm:$0x1]
        %v1544 = vld [vmem:[#allocation2 + $0x9c] sm:$0x1]
        %v1545 = vld [vmem:[#allocation2 + $0xb4] sm:$0x1]
        %v1554 = vrot.slane %v1539, 7
        %v1555 = vsel %vm1126, %v1554, %v1538
        %v1556 = vrot.slane %v1540, 6
        %v1557 = vsel %vm1129, %v1556, %v1555
        %v1558 = vrot.slane %v1541, 5
        %v1559 = vsel %vm1132, %v1558, %v1557
        %v1560 = vrot.slane %v1542, 4
        %v1561 = vsel %vm1135, %v1560, %v1559
        %v1562 = vrot.slane %v1543, 3
        %v1563 = vsel %vm1138, %v1562, %v1561
        %v1564 = vrot.slane %v1544, 2
        %v1565 = vsel %vm1141, %v1564, %v1563
        %v1566 = vrot.slane %v1545, 1
        %v1567 = vsel %vm1144, %v1566, %v1565
        %1568 = vrot.lane.b32.xlu0 %v1567, 107
        %v1569 = vpop.permute.xlu0 %1568
        %vm1571 = vcmask 1023832
        %1572 = vst.msk [vmem:[#allocation3 + $0x8] sm:$0xff] %vm1571, %v1569
        %v1573 = vld [vmem:[#allocation2 + $0xd] sm:$0x1]
        %v1574 = vld [vmem:[#allocation2 + $0x25] sm:$0x1]
        %v1575 = vld [vmem:[#allocation2 + $0x3d] sm:$0x1]
        %v1576 = vld [vmem:[#allocation2 + $0x55] sm:$0x1]
        %v1577 = vld [vmem:[#allocation2 + $0x6d] sm:$0x1]
        %v1578 = vld [vmem:[#allocation2 + $0x85] sm:$0x1]
        %v1579 = vld [vmem:[#allocation2 + $0x9d] sm:$0x1]
        %v1580 = vld [vmem:[#allocation2 + $0xb5] sm:$0x1]
        %v1589 = vrot.slane %v1574, 7
        %v1590 = vsel %vm1126, %v1589, %v1573
        %v1591 = vrot.slane %v1575, 6
        %v1592 = vsel %vm1129, %v1591, %v1590
        %v1593 = vrot.slane %v1576, 5
        %v1594 = vsel %vm1132, %v1593, %v1592
        %v1595 = vrot.slane %v1577, 4
        %v1596 = vsel %vm1135, %v1595, %v1594
        %v1597 = vrot.slane %v1578, 3
        %v1598 = vsel %vm1138, %v1597, %v1596
        %v1599 = vrot.slane %v1579, 2
        %v1600 = vsel %vm1141, %v1599, %v1598
        %v1601 = vrot.slane %v1580, 1
        %v1602 = vsel %vm1144, %v1601, %v1600
        %1603 = vrot.lane.b32.xlu0 %v1602, 125
        %v1604 = vpop.permute.xlu0 %1603
        %vm1606 = vcmask 1048552
        %1607 = vst.msk [vmem:[#allocation3 + $0x8] sm:$0xff] %vm1606, %v1604
        %vm1608 = vcmask 121856
        %1609 = vst.msk [vmem:[#allocation3 + $0x10] sm:$0xff] %vm1608, %v1604
        %v1610 = vld [vmem:[#allocation2 + $0xe] sm:$0x1]
        %v1611 = vld [vmem:[#allocation2 + $0x26] sm:$0x1]
        %v1612 = vld [vmem:[#allocation2 + $0x3e] sm:$0x1]
        %v1613 = vld [vmem:[#allocation2 + $0x56] sm:$0x1]
        %v1614 = vld [vmem:[#allocation2 + $0x6e] sm:$0x1]
        %v1615 = vld [vmem:[#allocation2 + $0x86] sm:$0x1]
        %v1616 = vld [vmem:[#allocation2 + $0x9e] sm:$0x1]
        %v1617 = vld [vmem:[#allocation2 + $0xb6] sm:$0x1]
        %v1626 = vrot.slane %v1611, 7
        %v1627 = vsel %vm1126, %v1626, %v1610
        %v1628 = vrot.slane %v1612, 6
        %v1629 = vsel %vm1129, %v1628, %v1627
        %v1630 = vrot.slane %v1613, 5
        %v1631 = vsel %vm1132, %v1630, %v1629
        %v1632 = vrot.slane %v1614, 4
        %v1633 = vsel %vm1135, %v1632, %v1631
        %v1634 = vrot.slane %v1615, 3
        %v1635 = vsel %vm1138, %v1634, %v1633
        %v1636 = vrot.slane %v1616, 2
        %v1637 = vsel %vm1141, %v1636, %v1635
        %v1638 = vrot.slane %v1617, 1
        %v1639 = vsel %vm1144, %v1638, %v1637
        %1640 = vrot.lane.b32.xlu0 %v1639, 15
        %v1641 = vpop.permute.xlu0 %1640
        %vm1643 = vcmask 269432
        %1644 = vst.msk [vmem:[#allocation3 + $0x10] sm:$0xff] %vm1643, %v1641
        %v1645 = vld [vmem:[#allocation2 + $0xf] sm:$0x1]
        %v1646 = vld [vmem:[#allocation2 + $0x27] sm:$0x1]
        %v1647 = vld [vmem:[#allocation2 + $0x3f] sm:$0x1]
        %v1648 = vld [vmem:[#allocation2 + $0x57] sm:$0x1]
        %v1649 = vld [vmem:[#allocation2 + $0x6f] sm:$0x1]
        %v1650 = vld [vmem:[#allocation2 + $0x87] sm:$0x1]
        %v1651 = vld [vmem:[#allocation2 + $0x9f] sm:$0x1]
        %v1652 = vld [vmem:[#allocation2 + $0xb7] sm:$0x1]
        %v1661 = vrot.slane %v1646, 7
        %v1662 = vsel %vm1126, %v1661, %v1645
        %v1663 = vrot.slane %v1647, 6
        %v1664 = vsel %vm1129, %v1663, %v1662
        %v1665 = vrot.slane %v1648, 5
        %v1666 = vsel %vm1132, %v1665, %v1664
        %v1667 = vrot.slane %v1649, 4
        %v1668 = vsel %vm1135, %v1667, %v1666
        %v1669 = vrot.slane %v1650, 3
        %v1670 = vsel %vm1138, %v1669, %v1668
        %v1671 = vrot.slane %v1651, 2
        %v1672 = vsel %vm1141, %v1671, %v1670
        %v1673 = vrot.slane %v1652, 1
        %v1674 = vsel %vm1144, %v1673, %v1672
        %1675 = vrot.lane.b32.xlu0 %v1674, 33
        %v1676 = vpop.permute.xlu0 %1675
        %vm1678 = vcmask 417032
        %1679 = vst.msk [vmem:[#allocation3 + $0x10] sm:$0xff] %vm1678, %v1676
        %v1680 = vld [vmem:[#allocation2 + $0x10] sm:$0x1]
        %v1681 = vld [vmem:[#allocation2 + $0x28] sm:$0x1]
        %v1682 = vld [vmem:[#allocation2 + $0x40] sm:$0x1]
        %v1683 = vld [vmem:[#allocation2 + $0x58] sm:$0x1]
        %v1684 = vld [vmem:[#allocation2 + $0x70] sm:$0x1]
        %v1685 = vld [vmem:[#allocation2 + $0x88] sm:$0x1]
        %v1686 = vld [vmem:[#allocation2 + $0xa0] sm:$0x1]
        %v1687 = vld [vmem:[#allocation2 + $0xb8] sm:$0x1]
        %v1696 = vrot.slane %v1681, 7
        %v1697 = vsel %vm1126, %v1696, %v1680
        %v1698 = vrot.slane %v1682, 6
        %v1699 = vsel %vm1129, %v1698, %v1697
        %v1700 = vrot.slane %v1683, 5
        %v1701 = vsel %vm1132, %v1700, %v1699
        %v1702 = vrot.slane %v1684, 4
        %v1703 = vsel %vm1135, %v1702, %v1701
        %v1704 = vrot.slane %v1685, 3
        %v1705 = vsel %vm1138, %v1704, %v1703
        %v1706 = vrot.slane %v1686, 2
        %v1707 = vsel %vm1141, %v1706, %v1705
        %v1708 = vrot.slane %v1687, 1
        %v1709 = vsel %vm1144, %v1708, %v1707
        %1710 = vrot.lane.b32.xlu0 %v1709, 51
        %v1711 = vpop.permute.xlu0 %1710
        %vm1713 = vcmask 564632
        %1714 = vst.msk [vmem:[#allocation3 + $0x10] sm:$0xff] %vm1713, %v1711
        %v1715 = vld [vmem:[#allocation2 + $0x11] sm:$0x1]
        %v1716 = vld [vmem:[#allocation2 + $0x29] sm:$0x1]
        %v1717 = vld [vmem:[#allocation2 + $0x41] sm:$0x1]
        %v1718 = vld [vmem:[#allocation2 + $0x59] sm:$0x1]
        %v1719 = vld [vmem:[#allocation2 + $0x71] sm:$0x1]
        %v1720 = vld [vmem:[#allocation2 + $0x89] sm:$0x1]
        %v1721 = vld [vmem:[#allocation2 + $0xa1] sm:$0x1]
        %v1722 = vld [vmem:[#allocation2 + $0xb9] sm:$0x1]
        %v1731 = vrot.slane %v1716, 7
        %v1732 = vsel %vm1126, %v1731, %v1715
        %v1733 = vrot.slane %v1717, 6
        %v1734 = vsel %vm1129, %v1733, %v1732
        %v1735 = vrot.slane %v1718, 5
        %v1736 = vsel %vm1132, %v1735, %v1734
        %v1737 = vrot.slane %v1719, 4
        %v1738 = vsel %vm1135, %v1737, %v1736
        %v1739 = vrot.slane %v1720, 3
        %v1740 = vsel %vm1138, %v1739, %v1738
        %v1741 = vrot.slane %v1721, 2
        %v1742 = vsel %vm1141, %v1741, %v1740
        %v1743 = vrot.slane %v1722, 1
        %v1744 = vsel %vm1144, %v1743, %v1742
        %1745 = vrot.lane.b32.xlu0 %v1744, 69
        %v1746 = vpop.permute.xlu0 %1745
        %vm1748 = vcmask 712232
        %1749 = vst.msk [vmem:[#allocation3 + $0x10] sm:$0xff] %vm1748, %v1746
        %v1750 = vld [vmem:[#allocation3] sm:$0xff]
        %v1751 = vld [vmem:[#allocation3 + $0x8] sm:$0xff]
        %v1752 = vld [vmem:[#allocation3 + $0x10] sm:$0xff]
        %v1753 = vld [vmem:[%s6] sm:$0xf]
        %s1754 = scalar_lea.vmem %s6, 4
        %v1755 = vld [vmem:[%s1754] sm:$0xf]
        %1759 = vrot.lane.b32.xlu0 %v1750, 127
        %v1760 = vpop.permute.xlu0 %1759
        %1761 = vrot.lane.b32.xlu0 %v1751, 127
        %v1762 = vpop.permute.xlu0 %1761
        %1763 = vrot.lane.b32.xlu0 %v1752, 127
        %v1764 = vpop.permute.xlu0 %1763
        %vm1765 = vcmask 1039360
        %v1766 = vsel %vm1765, %v1760, %v1762
        %v1767 = vsel %vm1765, %v1762, %v1764
        %v1772 = vsel %vm599, %v1755, 0
        %1774 = vmatprep.subr.mxu0 %v1767
        %1775 = vmatpush1.msra.mxu0 %v1766
        %1776 = vmatprep.subr.mxu0 0.0
        %1777 = vmatpush1.msra.mxu0 0.0
        %1778 = vmatprep.subr.mxu0 0.0
        %1779 = vmatpush1.msra.mxu0 0.0
        %1780 = vmatprep.subr.mxu0 0.0
        %1781 = vmatpush1.msra.mxu0 0.0
        %1782 = vmatprep.subr.mxu0 0.0
        %1783 = vmatpush1.msra.mxu0 0.0
        %1784 = vmatprep.subr.mxu0 0.0
        %1785 = vmatpush1.msra.mxu0 0.0
        %1786 = vmatprep.subr.mxu0 0.0
        %1787 = vmatpush1.msra.mxu0 0.0
        %1788 = vmatprep.subr.mxu0 0.0
        %1789 = vmatpush1.msra.mxu0 0.0
        %1790 = vmatprep.subr.mxu0 0.0
        %1791 = vmatpush1.msra.mxu0 0.0
        %1792 = vmatprep.subr.mxu0 0.0
        %1793 = vmatpush1.msra.mxu0 0.0
        %1794 = vmatprep.subr.mxu0 0.0
        %1795 = vmatpush1.msra.mxu0 0.0
        %1796 = vmatprep.subr.mxu0 0.0
        %1797 = vmatpush1.msra.mxu0 0.0
        %1798 = vmatprep.subr.mxu0 0.0
        %1799 = vmatpush1.msra.mxu0 0.0
        %1800 = vmatprep.subr.mxu0 0.0
        %1801 = vmatpush1.msra.mxu0 0.0
        %1802 = vmatprep.subr.mxu0 0.0
        %1803 = vmatpush1.msra.mxu0 0.0
        %1804 = vmatprep.subr.mxu0 0.0
        %1805 = vmatpush1.msra.mxu0 0.0
        %1806 = vmatprep.subr.mxu0 0.0
        %1807 = vmatpush1.msra.mxu0 0.0
        %1808 = vmatprep.subr.mxu0 0.0
        %1809 = vmatpush1.msra.mxu0 0.0
        %1810 = vmatprep.subr.mxu0 0.0
        %1811 = vmatpush1.msra.mxu0 0.0
        %1812 = vmatprep.subr.mxu0 0.0
        %1813 = vmatpush1.msra.mxu0 0.0
        %1814 = vmatprep.subr.mxu0 0.0
        %1815 = vmatpush1.msra.mxu0 0.0
        %1816 = vmatprep.subr.mxu0 0.0
        %1817 = vmatpush1.msra.mxu0 0.0
        %1818 = vmatprep.subr.mxu0 0.0
        %1819 = vmatpush1.msra.mxu0 0.0
        %1820 = vmatprep.subr.mxu0 0.0
        %1821 = vmatpush1.msra.mxu0 0.0
        %1822 = vmatprep.subr.mxu0 0.0
        %1823 = vmatpush1.msra.mxu0 0.0
        %1824 = vmatprep.subr.mxu0 0.0
        %1825 = vmatpush1.msra.mxu0 0.0
        %1826 = vmatprep.subr.mxu0 0.0
        %1827 = vmatpush1.msra.mxu0 0.0
        %1828 = vmatprep.subr.mxu0 0.0
        %1829 = vmatpush1.msra.mxu0 0.0
        %1830 = vmatprep.subr.mxu0 0.0
        %1831 = vmatpush1.msra.mxu0 0.0
        %1832 = vmatprep.subr.mxu0 0.0
        %1833 = vmatpush1.msra.mxu0 0.0
        %1834 = vmatprep.subr.mxu0 0.0
        %1835 = vmatpush1.msra.mxu0 0.0
        %1836 = vmatprep.subr.mxu0 0.0
        %1837 = vmatpush1.msra.mxu0 0.0
        %1838 = vmatprep.mubr.f32.mxu0 0.0
        %1839 = vmatmul.mubr.f32.gmra.mrb[0].mxu0 %v1772
        %v1840 = vpop.f32.mrb[0].mxu0
        %v1841 = vadd.f32 0.0, %v1840
        %v1842 = vpop.f32.mrb[0].mxu0
        %v1843 = vadd.f32 0.0, %v1842
        %1844 = vdwg.mxu0
        %1845 = vmatprep.subr.mxu0 0.0
        %1846 = vmatpush1.msra.mxu0 %v1764
        %1847 = vmatprep.subr.mxu0 0.0
        %1848 = vmatpush1.msra.mxu0 0.0
        %1849 = vmatprep.subr.mxu0 0.0
        %1850 = vmatpush1.msra.mxu0 0.0
        %1851 = vmatprep.subr.mxu0 0.0
        %1852 = vmatpush1.msra.mxu0 0.0
        %1853 = vmatprep.subr.mxu0 0.0
        %1854 = vmatpush1.msra.mxu0 0.0
        %1855 = vmatprep.subr.mxu0 0.0
        %1856 = vmatpush1.msra.mxu0 0.0
        %1857 = vmatprep.subr.mxu0 0.0
        %1858 = vmatpush1.msra.mxu0 0.0
        %1859 = vmatprep.subr.mxu0 0.0
        %1860 = vmatpush1.msra.mxu0 0.0
        %1861 = vmatprep.subr.mxu0 0.0
        %1862 = vmatpush1.msra.mxu0 0.0
        %1863 = vmatprep.subr.mxu0 0.0
        %1864 = vmatpush1.msra.mxu0 0.0
        %1865 = vmatprep.subr.mxu0 0.0
        %1866 = vmatpush1.msra.mxu0 0.0
        %1867 = vmatprep.subr.mxu0 0.0
        %1868 = vmatpush1.msra.mxu0 0.0
        %1869 = vmatprep.subr.mxu0 0.0
        %1870 = vmatpush1.msra.mxu0 0.0
        %1871 = vmatprep.subr.mxu0 0.0
        %1872 = vmatpush1.msra.mxu0 0.0
        %1873 = vmatprep.subr.mxu0 0.0
        %1874 = vmatpush1.msra.mxu0 0.0
        %1875 = vmatprep.subr.mxu0 0.0
        %1876 = vmatpush1.msra.mxu0 0.0
        %1877 = vmatprep.subr.mxu0 0.0
        %1878 = vmatpush1.msra.mxu0 0.0
        %1879 = vmatprep.subr.mxu0 0.0
        %1880 = vmatpush1.msra.mxu0 0.0
        %1881 = vmatprep.subr.mxu0 0.0
        %1882 = vmatpush1.msra.mxu0 0.0
        %1883 = vmatprep.subr.mxu0 0.0
        %1884 = vmatpush1.msra.mxu0 0.0
        %1885 = vmatprep.subr.mxu0 0.0
        %1886 = vmatpush1.msra.mxu0 0.0
        %1887 = vmatprep.subr.mxu0 0.0
        %1888 = vmatpush1.msra.mxu0 0.0
        %1889 = vmatprep.subr.mxu0 0.0
        %1890 = vmatpush1.msra.mxu0 0.0
        %1891 = vmatprep.subr.mxu0 0.0
        %1892 = vmatpush1.msra.mxu0 0.0
        %1893 = vmatprep.subr.mxu0 0.0
        %1894 = vmatpush1.msra.mxu0 0.0
        %1895 = vmatprep.subr.mxu0 0.0
        %1896 = vmatpush1.msra.mxu0 0.0
        %1897 = vmatprep.subr.mxu0 0.0
        %1898 = vmatpush1.msra.mxu0 0.0
        %1899 = vmatprep.subr.mxu0 0.0
        %1900 = vmatpush1.msra.mxu0 0.0
        %1901 = vmatprep.subr.mxu0 0.0
        %1902 = vmatpush1.msra.mxu0 0.0
        %1903 = vmatprep.subr.mxu0 0.0
        %1904 = vmatpush1.msra.mxu0 0.0
        %1905 = vmatprep.subr.mxu0 0.0
        %1906 = vmatpush1.msra.mxu0 0.0
        %1907 = vmatprep.subr.mxu0 0.0
        %1908 = vmatpush1.msra.mxu0 0.0
        %1909 = vmatprep.mubr.f32.mxu0 0.0
        %1910 = vmatmul.mubr.f32.gmra.mrb[0].mxu0 %v1772
        %v1911 = vpop.f32.mrb[0].mxu0
        %v1912 = vadd.f32 0.0, %v1911
        %v1913 = vpop.f32.mrb[0].mxu0
        %1914 = vdwg.mxu0
        %v1916 = vsel %vm599, %v1753, 0
        %1918 = vmatprep.subr.mxu0 %v1751
        %1919 = vmatpush1.msra.mxu0 %v1750
        %1920 = vmatprep.subr.mxu0 0.0
        %1921 = vmatpush1.msra.mxu0 0.0
        %1922 = vmatprep.subr.mxu0 0.0
        %1923 = vmatpush1.msra.mxu0 0.0
        %1924 = vmatprep.subr.mxu0 0.0
        %1925 = vmatpush1.msra.mxu0 0.0
        %1926 = vmatprep.subr.mxu0 0.0
        %1927 = vmatpush1.msra.mxu0 0.0
        %1928 = vmatprep.subr.mxu0 0.0
        %1929 = vmatpush1.msra.mxu0 0.0
        %1930 = vmatprep.subr.mxu0 0.0
        %1931 = vmatpush1.msra.mxu0 0.0
        %1932 = vmatprep.subr.mxu0 0.0
        %1933 = vmatpush1.msra.mxu0 0.0
        %1934 = vmatprep.subr.mxu0 0.0
        %1935 = vmatpush1.msra.mxu0 0.0
        %1936 = vmatprep.subr.mxu0 0.0
        %1937 = vmatpush1.msra.mxu0 0.0
        %1938 = vmatprep.subr.mxu0 0.0
        %1939 = vmatpush1.msra.mxu0 0.0
        %1940 = vmatprep.subr.mxu0 0.0
        %1941 = vmatpush1.msra.mxu0 0.0
        %1942 = vmatprep.subr.mxu0 0.0
        %1943 = vmatpush1.msra.mxu0 0.0
        %1944 = vmatprep.subr.mxu0 0.0
        %1945 = vmatpush1.msra.mxu0 0.0
        %1946 = vmatprep.subr.mxu0 0.0
        %1947 = vmatpush1.msra.mxu0 0.0
        %1948 = vmatprep.subr.mxu0 0.0
        %1949 = vmatpush1.msra.mxu0 0.0
        %1950 = vmatprep.subr.mxu0 0.0
        %1951 = vmatpush1.msra.mxu0 0.0
        %1952 = vmatprep.subr.mxu0 0.0
        %1953 = vmatpush1.msra.mxu0 0.0
        %1954 = vmatprep.subr.mxu0 0.0
        %1955 = vmatpush1.msra.mxu0 0.0
        %1956 = vmatprep.subr.mxu0 0.0
        %1957 = vmatpush1.msra.mxu0 0.0
        %1958 = vmatprep.subr.mxu0 0.0
        %1959 = vmatpush1.msra.mxu0 0.0
        %1960 = vmatprep.subr.mxu0 0.0
        %1961 = vmatpush1.msra.mxu0 0.0
        %1962 = vmatprep.subr.mxu0 0.0
        %1963 = vmatpush1.msra.mxu0 0.0
        %1964 = vmatprep.subr.mxu0 0.0
        %1965 = vmatpush1.msra.mxu0 0.0
        %1966 = vmatprep.subr.mxu0 0.0
        %1967 = vmatpush1.msra.mxu0 0.0
        %1968 = vmatprep.subr.mxu0 0.0
        %1969 = vmatpush1.msra.mxu0 0.0
        %1970 = vmatprep.subr.mxu0 0.0
        %1971 = vmatpush1.msra.mxu0 0.0
        %1972 = vmatprep.subr.mxu0 0.0
        %1973 = vmatpush1.msra.mxu0 0.0
        %1974 = vmatprep.subr.mxu0 0.0
        %1975 = vmatpush1.msra.mxu0 0.0
        %1976 = vmatprep.subr.mxu0 0.0
        %1977 = vmatpush1.msra.mxu0 0.0
        %1978 = vmatprep.subr.mxu0 0.0
        %1979 = vmatpush1.msra.mxu0 0.0
        %1980 = vmatprep.subr.mxu0 0.0
        %1981 = vmatpush1.msra.mxu0 0.0
        %1982 = vmatprep.mubr.f32.mxu0 0.0
        %1983 = vmatmul.mubr.f32.gmra.mrb[0].mxu0 %v1916
        %v1984 = vpop.f32.mrb[0].mxu0
        %v1985 = vadd.f32 %v1841, %v1984
        %v1986 = vpop.f32.mrb[0].mxu0
        %v1987 = vadd.f32 %v1843, %v1986
        %1988 = vdwg.mxu0
        %1989 = vmatprep.subr.mxu0 0.0
        %1990 = vmatpush1.msra.mxu0 %v1752
        %1991 = vmatprep.subr.mxu0 0.0
        %1992 = vmatpush1.msra.mxu0 0.0
        %1993 = vmatprep.subr.mxu0 0.0
        %1994 = vmatpush1.msra.mxu0 0.0
        %1995 = vmatprep.subr.mxu0 0.0
        %1996 = vmatpush1.msra.mxu0 0.0
        %1997 = vmatprep.subr.mxu0 0.0
        %1998 = vmatpush1.msra.mxu0 0.0
        %1999 = vmatprep.subr.mxu0 0.0
        %2000 = vmatpush1.msra.mxu0 0.0
        %2001 = vmatprep.subr.mxu0 0.0
        %2002 = vmatpush1.msra.mxu0 0.0
        %2003 = vmatprep.subr.mxu0 0.0
        %2004 = vmatpush1.msra.mxu0 0.0
        %2005 = vmatprep.subr.mxu0 0.0
        %2006 = vmatpush1.msra.mxu0 0.0
        %2007 = vmatprep.subr.mxu0 0.0
        %2008 = vmatpush1.msra.mxu0 0.0
        %2009 = vmatprep.subr.mxu0 0.0
        %2010 = vmatpush1.msra.mxu0 0.0
        %2011 = vmatprep.subr.mxu0 0.0
        %2012 = vmatpush1.msra.mxu0 0.0
        %2013 = vmatprep.subr.mxu0 0.0
        %2014 = vmatpush1.msra.mxu0 0.0
        %2015 = vmatprep.subr.mxu0 0.0
        %2016 = vmatpush1.msra.mxu0 0.0
        %2017 = vmatprep.subr.mxu0 0.0
        %2018 = vmatpush1.msra.mxu0 0.0
        %2019 = vmatprep.subr.mxu0 0.0
        %2020 = vmatpush1.msra.mxu0 0.0
        %2021 = vmatprep.subr.mxu0 0.0
        %2022 = vmatpush1.msra.mxu0 0.0
        %2023 = vmatprep.subr.mxu0 0.0
        %2024 = vmatpush1.msra.mxu0 0.0
        %2025 = vmatprep.subr.mxu0 0.0
        %2026 = vmatpush1.msra.mxu0 0.0
        %2027 = vmatprep.subr.mxu0 0.0
        %2028 = vmatpush1.msra.mxu0 0.0
        %2029 = vmatprep.subr.mxu0 0.0
        %2030 = vmatpush1.msra.mxu0 0.0
        %2031 = vmatprep.subr.mxu0 0.0
        %2032 = vmatpush1.msra.mxu0 0.0
        %2033 = vmatprep.subr.mxu0 0.0
        %2034 = vmatpush1.msra.mxu0 0.0
        %2035 = vmatprep.subr.mxu0 0.0
        %2036 = vmatpush1.msra.mxu0 0.0
        %2037 = vmatprep.subr.mxu0 0.0
        %2038 = vmatpush1.msra.mxu0 0.0
        %2039 = vmatprep.subr.mxu0 0.0
        %2040 = vmatpush1.msra.mxu0 0.0
        %2041 = vmatprep.subr.mxu0 0.0
        %2042 = vmatpush1.msra.mxu0 0.0
        %2043 = vmatprep.subr.mxu0 0.0
        %2044 = vmatpush1.msra.mxu0 0.0
        %2045 = vmatprep.subr.mxu0 0.0
        %2046 = vmatpush1.msra.mxu0 0.0
        %2047 = vmatprep.subr.mxu0 0.0
        %2048 = vmatpush1.msra.mxu0 0.0
        %2049 = vmatprep.subr.mxu0 0.0
        %2050 = vmatpush1.msra.mxu0 0.0
        %2051 = vmatprep.subr.mxu0 0.0
        %2052 = vmatpush1.msra.mxu0 0.0
        %2053 = vmatprep.mubr.f32.mxu0 0.0
        %2054 = vmatmul.mubr.f32.gmra.mrb[0].mxu0 %v1916
        %v2055 = vpop.f32.mrb[0].mxu0
        %v2056 = vadd.f32 %v1912, %v2055
        %v2057 = vpop.f32.mrb[0].mxu0
        %2058 = vdwg.mxu0
        %s2059 = scalar_lea.vmem %s6, 8
        %v2060 = vld [vmem:[%s2059] sm:$0xf]
        %2061 = vrot.lane.b32.xlu0 %v1750, 126
        %v2062 = vpop.permute.xlu0 %2061
        %2063 = vrot.lane.b32.xlu0 %v1751, 126
        %v2064 = vpop.permute.xlu0 %2063
        %2065 = vrot.lane.b32.xlu0 %v1752, 126
        %v2066 = vpop.permute.xlu0 %2065
        %vm2067 = vcmask 1031168
        %v2068 = vsel %vm2067, %v2062, %v2064
        %v2069 = vsel %vm2067, %v2064, %v2066
        %v2074 = vsel %vm599, %v2060, 0
        %2076 = vmatprep.subr.mxu0 %v2069
        %2077 = vmatpush1.msra.mxu0 %v2068
        %2078 = vmatprep.subr.mxu0 0.0
        %2079 = vmatpush1.msra.mxu0 0.0
        %2080 = vmatprep.subr.mxu0 0.0
        %2081 = vmatpush1.msra.mxu0 0.0
        %2082 = vmatprep.subr.mxu0 0.0
        %2083 = vmatpush1.msra.mxu0 0.0
        %2084 = vmatprep.subr.mxu0 0.0
        %2085 = vmatpush1.msra.mxu0 0.0
        %2086 = vmatprep.subr.mxu0 0.0
        %2087 = vmatpush1.msra.mxu0 0.0
        %2088 = vmatprep.subr.mxu0 0.0
        %2089 = vmatpush1.msra.mxu0 0.0
        %2090 = vmatprep.subr.mxu0 0.0
        %2091 = vmatpush1.msra.mxu0 0.0
        %2092 = vmatprep.subr.mxu0 0.0
        %2093 = vmatpush1.msra.mxu0 0.0
        %2094 = vmatprep.subr.mxu0 0.0
        %2095 = vmatpush1.msra.mxu0 0.0
        %2096 = vmatprep.subr.mxu0 0.0
        %2097 = vmatpush1.msra.mxu0 0.0
        %2098 = vmatprep.subr.mxu0 0.0
        %2099 = vmatpush1.msra.mxu0 0.0
        %2100 = vmatprep.subr.mxu0 0.0
        %2101 = vmatpush1.msra.mxu0 0.0
        %2102 = vmatprep.subr.mxu0 0.0
        %2103 = vmatpush1.msra.mxu0 0.0
        %2104 = vmatprep.subr.mxu0 0.0
        %2105 = vmatpush1.msra.mxu0 0.0
        %2106 = vmatprep.subr.mxu0 0.0
        %2107 = vmatpush1.msra.mxu0 0.0
        %2108 = vmatprep.subr.mxu0 0.0
        %2109 = vmatpush1.msra.mxu0 0.0
        %2110 = vmatprep.subr.mxu0 0.0
        %2111 = vmatpush1.msra.mxu0 0.0
        %2112 = vmatprep.subr.mxu0 0.0
        %2113 = vmatpush1.msra.mxu0 0.0
        %2114 = vmatprep.subr.mxu0 0.0
        %2115 = vmatpush1.msra.mxu0 0.0
        %2116 = vmatprep.subr.mxu0 0.0
        %2117 = vmatpush1.msra.mxu0 0.0
        %2118 = vmatprep.subr.mxu0 0.0
        %2119 = vmatpush1.msra.mxu0 0.0
        %2120 = vmatprep.subr.mxu0 0.0
        %2121 = vmatpush1.msra.mxu0 0.0
        %2122 = vmatprep.subr.mxu0 0.0
        %2123 = vmatpush1.msra.mxu0 0.0
        %2124 = vmatprep.subr.mxu0 0.0
        %2125 = vmatpush1.msra.mxu0 0.0
        %2126 = vmatprep.subr.mxu0 0.0
        %2127 = vmatpush1.msra.mxu0 0.0
        %2128 = vmatprep.subr.mxu0 0.0
        %2129 = vmatpush1.msra.mxu0 0.0
        %2130 = vmatprep.subr.mxu0 0.0
        %2131 = vmatpush1.msra.mxu0 0.0
        %2132 = vmatprep.subr.mxu0 0.0
        %2133 = vmatpush1.msra.mxu0 0.0
        %2134 = vmatprep.subr.mxu0 0.0
        %2135 = vmatpush1.msra.mxu0 0.0
        %2136 = vmatprep.subr.mxu0 0.0
        %2137 = vmatpush1.msra.mxu0 0.0
        %2138 = vmatprep.subr.mxu0 0.0
        %2139 = vmatpush1.msra.mxu0 0.0
        %2140 = vmatprep.mubr.f32.mxu0 0.0
        %2141 = vmatmul.mubr.f32.gmra.mrb[0].mxu0 %v2074
        %v2142 = vpop.f32.mrb[0].mxu0
        %v2143 = vadd.f32 0.0, %v2142
        %v2144 = vpop.f32.mrb[0].mxu0
        %v2145 = vadd.f32 0.0, %v2144
        %2146 = vdwg.mxu0
        %2147 = vmatprep.subr.mxu0 0.0
        %2148 = vmatpush1.msra.mxu0 %v2066
        %2149 = vmatprep.subr.mxu0 0.0
        %2150 = vmatpush1.msra.mxu0 0.0
        %2151 = vmatprep.subr.mxu0 0.0
        %2152 = vmatpush1.msra.mxu0 0.0
        %2153 = vmatprep.subr.mxu0 0.0
        %2154 = vmatpush1.msra.mxu0 0.0
        %2155 = vmatprep.subr.mxu0 0.0
        %2156 = vmatpush1.msra.mxu0 0.0
        %2157 = vmatprep.subr.mxu0 0.0
        %2158 = vmatpush1.msra.mxu0 0.0
        %2159 = vmatprep.subr.mxu0 0.0
        %2160 = vmatpush1.msra.mxu0 0.0
        %2161 = vmatprep.subr.mxu0 0.0
        %2162 = vmatpush1.msra.mxu0 0.0
        %2163 = vmatprep.subr.mxu0 0.0
        %2164 = vmatpush1.msra.mxu0 0.0
        %2165 = vmatprep.subr.mxu0 0.0
        %2166 = vmatpush1.msra.mxu0 0.0
        %2167 = vmatprep.subr.mxu0 0.0
        %2168 = vmatpush1.msra.mxu0 0.0
        %2169 = vmatprep.subr.mxu0 0.0
        %2170 = vmatpush1.msra.mxu0 0.0
        %2171 = vmatprep.subr.mxu0 0.0
        %2172 = vmatpush1.msra.mxu0 0.0
        %2173 = vmatprep.subr.mxu0 0.0
        %2174 = vmatpush1.msra.mxu0 0.0
        %2175 = vmatprep.subr.mxu0 0.0
        %2176 = vmatpush1.msra.mxu0 0.0
        %2177 = vmatprep.subr.mxu0 0.0
        %2178 = vmatpush1.msra.mxu0 0.0
        %2179 = vmatprep.subr.mxu0 0.0
        %2180 = vmatpush1.msra.mxu0 0.0
        %2181 = vmatprep.subr.mxu0 0.0
        %2182 = vmatpush1.msra.mxu0 0.0
        %2183 = vmatprep.subr.mxu0 0.0
        %2184 = vmatpush1.msra.mxu0 0.0
        %2185 = vmatprep.subr.mxu0 0.0
        %2186 = vmatpush1.msra.mxu0 0.0
        %2187 = vmatprep.subr.mxu0 0.0
        %2188 = vmatpush1.msra.mxu0 0.0
        %2189 = vmatprep.subr.mxu0 0.0
        %2190 = vmatpush1.msra.mxu0 0.0
        %2191 = vmatprep.subr.mxu0 0.0
        %2192 = vmatpush1.msra.mxu0 0.0
        %2193 = vmatprep.subr.mxu0 0.0
        %2194 = vmatpush1.msra.mxu0 0.0
        %2195 = vmatprep.subr.mxu0 0.0
        %2196 = vmatpush1.msra.mxu0 0.0
        %2197 = vmatprep.subr.mxu0 0.0
        %2198 = vmatpush1.msra.mxu0 0.0
        %2199 = vmatprep.subr.mxu0 0.0
        %2200 = vmatpush1.msra.mxu0 0.0
        %2201 = vmatprep.subr.mxu0 0.0
        %2202 = vmatpush1.msra.mxu0 0.0
        %2203 = vmatprep.subr.mxu0 0.0
        %2204 = vmatpush1.msra.mxu0 0.0
        %2205 = vmatprep.subr.mxu0 0.0
        %2206 = vmatpush1.msra.mxu0 0.0
        %2207 = vmatprep.subr.mxu0 0.0
        %2208 = vmatpush1.msra.mxu0 0.0
        %2209 = vmatprep.subr.mxu0 0.0
        %2210 = vmatpush1.msra.mxu0 0.0
        %2211 = vmatprep.mubr.f32.mxu0 0.0
        %2212 = vmatmul.mubr.f32.gmra.mrb[0].mxu0 %v2074
        %v2213 = vpop.f32.mrb[0].mxu0
        %v2214 = vadd.f32 0.0, %v2213
        %v2215 = vpop.f32.mrb[0].mxu0
        %2216 = vdwg.mxu0
        %v2217 = vadd.f32 %v1985, %v2143
        %v2218 = vadd.f32 %v1987, %v2145
        %v2219 = vadd.f32 %v2056, %v2214
        %s2220 = scalar_lea.vmem %s6, 12
        %v2221 = vld [vmem:[%s2220] sm:$0xf]
        %2222 = vrot.lane.b32.xlu0 %v1750, 110
        %v2223 = vpop.permute.xlu0 %2222
        %2224 = vrot.lane.b32.xlu0 %v1751, 110
        %v2225 = vpop.permute.xlu0 %2224
        %2226 = vrot.lane.b32.xlu0 %v1752, 110
        %v2227 = vpop.permute.xlu0 %2226
        %vm2228 = vcmask 900096
        %v2229 = vsel %vm2228, %v2223, %v2225
        %v2230 = vsel %vm2228, %v2225, %v2227
        %v2235 = vsel %vm599, %v2221, 0
        %2237 = vmatprep.subr.mxu0 %v2230
        %2238 = vmatpush1.msra.mxu0 %v2229
        %2239 = vmatprep.subr.mxu0 0.0
        %2240 = vmatpush1.msra.mxu0 0.0
        %2241 = vmatprep.subr.mxu0 0.0
        %2242 = vmatpush1.msra.mxu0 0.0
        %2243 = vmatprep.subr.mxu0 0.0
        %2244 = vmatpush1.msra.mxu0 0.0
        %2245 = vmatprep.subr.mxu0 0.0
        %2246 = vmatpush1.msra.mxu0 0.0
        %2247 = vmatprep.subr.mxu0 0.0
        %2248 = vmatpush1.msra.mxu0 0.0
        %2249 = vmatprep.subr.mxu0 0.0
        %2250 = vmatpush1.msra.mxu0 0.0
        %2251 = vmatprep.subr.mxu0 0.0
        %2252 = vmatpush1.msra.mxu0 0.0
        %2253 = vmatprep.subr.mxu0 0.0
        %2254 = vmatpush1.msra.mxu0 0.0
        %2255 = vmatprep.subr.mxu0 0.0
        %2256 = vmatpush1.msra.mxu0 0.0
        %2257 = vmatprep.subr.mxu0 0.0
        %2258 = vmatpush1.msra.mxu0 0.0
        %2259 = vmatprep.subr.mxu0 0.0
        %2260 = vmatpush1.msra.mxu0 0.0
        %2261 = vmatprep.subr.mxu0 0.0
        %2262 = vmatpush1.msra.mxu0 0.0
        %2263 = vmatprep.subr.mxu0 0.0
        %2264 = vmatpush1.msra.mxu0 0.0
        %2265 = vmatprep.subr.mxu0 0.0
        %2266 = vmatpush1.msra.mxu0 0.0
        %2267 = vmatprep.subr.mxu0 0.0
        %2268 = vmatpush1.msra.mxu0 0.0
        %2269 = vmatprep.subr.mxu0 0.0
        %2270 = vmatpush1.msra.mxu0 0.0
        %2271 = vmatprep.subr.mxu0 0.0
        %2272 = vmatpush1.msra.mxu0 0.0
        %2273 = vmatprep.subr.mxu0 0.0
        %2274 = vmatpush1.msra.mxu0 0.0
        %2275 = vmatprep.subr.mxu0 0.0
        %2276 = vmatpush1.msra.mxu0 0.0
        %2277 = vmatprep.subr.mxu0 0.0
        %2278 = vmatpush1.msra.mxu0 0.0
        %2279 = vmatprep.subr.mxu0 0.0
        %2280 = vmatpush1.msra.mxu0 0.0
        %2281 = vmatprep.subr.mxu0 0.0
        %2282 = vmatpush1.msra.mxu0 0.0
        %2283 = vmatprep.subr.mxu0 0.0
        %2284 = vmatpush1.msra.mxu0 0.0
        %2285 = vmatprep.subr.mxu0 0.0
        %2286 = vmatpush1.msra.mxu0 0.0
        %2287 = vmatprep.subr.mxu0 0.0
        %2288 = vmatpush1.msra.mxu0 0.0
        %2289 = vmatprep.subr.mxu0 0.0
        %2290 = vmatpush1.msra.mxu0 0.0
        %2291 = vmatprep.subr.mxu0 0.0
        %2292 = vmatpush1.msra.mxu0 0.0
        %2293 = vmatprep.subr.mxu0 0.0
        %2294 = vmatpush1.msra.mxu0 0.0
        %2295 = vmatprep.subr.mxu0 0.0
        %2296 = vmatpush1.msra.mxu0 0.0
        %2297 = vmatprep.subr.mxu0 0.0
        %2298 = vmatpush1.msra.mxu0 0.0
        %2299 = vmatprep.subr.mxu0 0.0
        %2300 = vmatpush1.msra.mxu0 0.0
        %2301 = vmatprep.mubr.f32.mxu0 0.0
        %2302 = vmatmul.mubr.f32.gmra.mrb[0].mxu0 %v2235
        %v2303 = vpop.f32.mrb[0].mxu0
        %v2304 = vadd.f32 0.0, %v2303
        %v2305 = vpop.f32.mrb[0].mxu0
        %v2306 = vadd.f32 0.0, %v2305
        %2307 = vdwg.mxu0
        %2308 = vmatprep.subr.mxu0 0.0
        %2309 = vmatpush1.msra.mxu0 %v2227
        %2310 = vmatprep.subr.mxu0 0.0
        %2311 = vmatpush1.msra.mxu0 0.0
        %2312 = vmatprep.subr.mxu0 0.0
        %2313 = vmatpush1.msra.mxu0 0.0
        %2314 = vmatprep.subr.mxu0 0.0
        %2315 = vmatpush1.msra.mxu0 0.0
        %2316 = vmatprep.subr.mxu0 0.0
        %2317 = vmatpush1.msra.mxu0 0.0
        %2318 = vmatprep.subr.mxu0 0.0
        %2319 = vmatpush1.msra.mxu0 0.0
        %2320 = vmatprep.subr.mxu0 0.0
        %2321 = vmatpush1.msra.mxu0 0.0
        %2322 = vmatprep.subr.mxu0 0.0
        %2323 = vmatpush1.msra.mxu0 0.0
        %2324 = vmatprep.subr.mxu0 0.0
        %2325 = vmatpush1.msra.mxu0 0.0
        %2326 = vmatprep.subr.mxu0 0.0
        %2327 = vmatpush1.msra.mxu0 0.0
        %2328 = vmatprep.subr.mxu0 0.0
        %2329 = vmatpush1.msra.mxu0 0.0
        %2330 = vmatprep.subr.mxu0 0.0
        %2331 = vmatpush1.msra.mxu0 0.0
        %2332 = vmatprep.subr.mxu0 0.0
        %2333 = vmatpush1.msra.mxu0 0.0
        %2334 = vmatprep.subr.mxu0 0.0
        %2335 = vmatpush1.msra.mxu0 0.0
        %2336 = vmatprep.subr.mxu0 0.0
        %2337 = vmatpush1.msra.mxu0 0.0
        %2338 = vmatprep.subr.mxu0 0.0
        %2339 = vmatpush1.msra.mxu0 0.0
        %2340 = vmatprep.subr.mxu0 0.0
        %2341 = vmatpush1.msra.mxu0 0.0
        %2342 = vmatprep.subr.mxu0 0.0
        %2343 = vmatpush1.msra.mxu0 0.0
        %2344 = vmatprep.subr.mxu0 0.0
        %2345 = vmatpush1.msra.mxu0 0.0
        %2346 = vmatprep.subr.mxu0 0.0
        %2347 = vmatpush1.msra.mxu0 0.0
        %2348 = vmatprep.subr.mxu0 0.0
        %2349 = vmatpush1.msra.mxu0 0.0
        %2350 = vmatprep.subr.mxu0 0.0
        %2351 = vmatpush1.msra.mxu0 0.0
        %2352 = vmatprep.subr.mxu0 0.0
        %2353 = vmatpush1.msra.mxu0 0.0
        %2354 = vmatprep.subr.mxu0 0.0
        %2355 = vmatpush1.msra.mxu0 0.0
        %2356 = vmatprep.subr.mxu0 0.0
        %2357 = vmatpush1.msra.mxu0 0.0
        %2358 = vmatprep.subr.mxu0 0.0
        %2359 = vmatpush1.msra.mxu0 0.0
        %2360 = vmatprep.subr.mxu0 0.0
        %2361 = vmatpush1.msra.mxu0 0.0
        %2362 = vmatprep.subr.mxu0 0.0
        %2363 = vmatpush1.msra.mxu0 0.0
        %2364 = vmatprep.subr.mxu0 0.0
        %2365 = vmatpush1.msra.mxu0 0.0
        %2366 = vmatprep.subr.mxu0 0.0
        %2367 = vmatpush1.msra.mxu0 0.0
        %2368 = vmatprep.subr.mxu0 0.0
        %2369 = vmatpush1.msra.mxu0 0.0
        %2370 = vmatprep.subr.mxu0 0.0
        %2371 = vmatpush1.msra.mxu0 0.0
        %2372 = vmatprep.mubr.f32.mxu0 0.0
        %2373 = vmatmul.mubr.f32.gmra.mrb[0].mxu0 %v2235
        %v2374 = vpop.f32.mrb[0].mxu0
        %v2375 = vadd.f32 0.0, %v2374
        %v2376 = vpop.f32.mrb[0].mxu0
        %2377 = vdwg.mxu0
        %v2378 = vadd.f32 %v2217, %v2304
        %v2379 = vadd.f32 %v2218, %v2306
        %v2380 = vadd.f32 %v2219, %v2375
        %s2381 = scalar_lea.vmem %s6, 16
        %v2382 = vld [vmem:[%s2381] sm:$0xf]
        %2383 = vrot.lane.b32.xlu0 %v1750, 109
        %v2384 = vpop.permute.xlu0 %2383
        %2385 = vrot.lane.b32.xlu0 %v1751, 109
        %v2386 = vpop.permute.xlu0 %2385
        %2387 = vrot.lane.b32.xlu0 %v1752, 109
        %v2388 = vpop.permute.xlu0 %2387
        %vm2389 = vcmask 891904
        %v2390 = vsel %vm2389, %v2384, %v2386
        %v2391 = vsel %vm2389, %v2386, %v2388
        %v2396 = vsel %vm599, %v2382, 0
        %2398 = vmatprep.subr.mxu0 %v2391
        %2399 = vmatpush1.msra.mxu0 %v2390
        %2400 = vmatprep.subr.mxu0 0.0
        %2401 = vmatpush1.msra.mxu0 0.0
        %2402 = vmatprep.subr.mxu0 0.0
        %2403 = vmatpush1.msra.mxu0 0.0
        %2404 = vmatprep.subr.mxu0 0.0
        %2405 = vmatpush1.msra.mxu0 0.0
        %2406 = vmatprep.subr.mxu0 0.0
        %2407 = vmatpush1.msra.mxu0 0.0
        %2408 = vmatprep.subr.mxu0 0.0
        %2409 = vmatpush1.msra.mxu0 0.0
        %2410 = vmatprep.subr.mxu0 0.0
        %2411 = vmatpush1.msra.mxu0 0.0
        %2412 = vmatprep.subr.mxu0 0.0
        %2413 = vmatpush1.msra.mxu0 0.0
        %2414 = vmatprep.subr.mxu0 0.0
        %2415 = vmatpush1.msra.mxu0 0.0
        %2416 = vmatprep.subr.mxu0 0.0
        %2417 = vmatpush1.msra.mxu0 0.0
        %2418 = vmatprep.subr.mxu0 0.0
        %2419 = vmatpush1.msra.mxu0 0.0
        %2420 = vmatprep.subr.mxu0 0.0
        %2421 = vmatpush1.msra.mxu0 0.0
        %2422 = vmatprep.subr.mxu0 0.0
        %2423 = vmatpush1.msra.mxu0 0.0
        %2424 = vmatprep.subr.mxu0 0.0
        %2425 = vmatpush1.msra.mxu0 0.0
        %2426 = vmatprep.subr.mxu0 0.0
        %2427 = vmatpush1.msra.mxu0 0.0
        %2428 = vmatprep.subr.mxu0 0.0
        %2429 = vmatpush1.msra.mxu0 0.0
        %2430 = vmatprep.subr.mxu0 0.0
        %2431 = vmatpush1.msra.mxu0 0.0
        %2432 = vmatprep.subr.mxu0 0.0
        %2433 = vmatpush1.msra.mxu0 0.0
        %2434 = vmatprep.subr.mxu0 0.0
        %2435 = vmatpush1.msra.mxu0 0.0
        %2436 = vmatprep.subr.mxu0 0.0
        %2437 = vmatpush1.msra.mxu0 0.0
        %2438 = vmatprep.subr.mxu0 0.0
        %2439 = vmatpush1.msra.mxu0 0.0
        %2440 = vmatprep.subr.mxu0 0.0
        %2441 = vmatpush1.msra.mxu0 0.0
        %2442 = vmatprep.subr.mxu0 0.0
        %2443 = vmatpush1.msra.mxu0 0.0
        %2444 = vmatprep.subr.mxu0 0.0
        %2445 = vmatpush1.msra.mxu0 0.0
        %2446 = vmatprep.subr.mxu0 0.0
        %2447 = vmatpush1.msra.mxu0 0.0
        %2448 = vmatprep.subr.mxu0 0.0
        %2449 = vmatpush1.msra.mxu0 0.0
        %2450 = vmatprep.subr.mxu0 0.0
        %2451 = vmatpush1.msra.mxu0 0.0
        %2452 = vmatprep.subr.mxu0 0.0
        %2453 = vmatpush1.msra.mxu0 0.0
        %2454 = vmatprep.subr.mxu0 0.0
        %2455 = vmatpush1.msra.mxu0 0.0
        %2456 = vmatprep.subr.mxu0 0.0
        %2457 = vmatpush1.msra.mxu0 0.0
        %2458 = vmatprep.subr.mxu0 0.0
        %2459 = vmatpush1.msra.mxu0 0.0
        %2460 = vmatprep.subr.mxu0 0.0
        %2461 = vmatpush1.msra.mxu0 0.0
        %2462 = vmatprep.mubr.f32.mxu0 0.0
        %2463 = vmatmul.mubr.f32.gmra.mrb[0].mxu0 %v2396
        %v2464 = vpop.f32.mrb[0].mxu0
        %v2465 = vadd.f32 0.0, %v2464
        %v2466 = vpop.f32.mrb[0].mxu0
        %v2467 = vadd.f32 0.0, %v2466
        %2468 = vdwg.mxu0
        %2469 = vmatprep.subr.mxu0 0.0
        %2470 = vmatpush1.msra.mxu0 %v2388
        %2471 = vmatprep.subr.mxu0 0.0
        %2472 = vmatpush1.msra.mxu0 0.0
        %2473 = vmatprep.subr.mxu0 0.0
        %2474 = vmatpush1.msra.mxu0 0.0
        %2475 = vmatprep.subr.mxu0 0.0
        %2476 = vmatpush1.msra.mxu0 0.0
        %2477 = vmatprep.subr.mxu0 0.0
        %2478 = vmatpush1.msra.mxu0 0.0
        %2479 = vmatprep.subr.mxu0 0.0
        %2480 = vmatpush1.msra.mxu0 0.0
        %2481 = vmatprep.subr.mxu0 0.0
        %2482 = vmatpush1.msra.mxu0 0.0
        %2483 = vmatprep.subr.mxu0 0.0
        %2484 = vmatpush1.msra.mxu0 0.0
        %2485 = vmatprep.subr.mxu0 0.0
        %2486 = vmatpush1.msra.mxu0 0.0
        %2487 = vmatprep.subr.mxu0 0.0
        %2488 = vmatpush1.msra.mxu0 0.0
        %2489 = vmatprep.subr.mxu0 0.0
        %2490 = vmatpush1.msra.mxu0 0.0
        %2491 = vmatprep.subr.mxu0 0.0
        %2492 = vmatpush1.msra.mxu0 0.0
        %2493 = vmatprep.subr.mxu0 0.0
        %2494 = vmatpush1.msra.mxu0 0.0
        %2495 = vmatprep.subr.mxu0 0.0
        %2496 = vmatpush1.msra.mxu0 0.0
        %2497 = vmatprep.subr.mxu0 0.0
        %2498 = vmatpush1.msra.mxu0 0.0
        %2499 = vmatprep.subr.mxu0 0.0
        %2500 = vmatpush1.msra.mxu0 0.0
        %2501 = vmatprep.subr.mxu0 0.0
        %2502 = vmatpush1.msra.mxu0 0.0
        %2503 = vmatprep.subr.mxu0 0.0
        %2504 = vmatpush1.msra.mxu0 0.0
        %2505 = vmatprep.subr.mxu0 0.0
        %2506 = vmatpush1.msra.mxu0 0.0
        %2507 = vmatprep.subr.mxu0 0.0
        %2508 = vmatpush1.msra.mxu0 0.0
        %2509 = vmatprep.subr.mxu0 0.0
        %2510 = vmatpush1.msra.mxu0 0.0
        %2511 = vmatprep.subr.mxu0 0.0
        %2512 = vmatpush1.msra.mxu0 0.0
        %2513 = vmatprep.subr.mxu0 0.0
        %2514 = vmatpush1.msra.mxu0 0.0
        %2515 = vmatprep.subr.mxu0 0.0
        %2516 = vmatpush1.msra.mxu0 0.0
        %2517 = vmatprep.subr.mxu0 0.0
        %2518 = vmatpush1.msra.mxu0 0.0
        %2519 = vmatprep.subr.mxu0 0.0
        %2520 = vmatpush1.msra.mxu0 0.0
        %2521 = vmatprep.subr.mxu0 0.0
        %2522 = vmatpush1.msra.mxu0 0.0
        %2523 = vmatprep.subr.mxu0 0.0
        %2524 = vmatpush1.msra.mxu0 0.0
        %2525 = vmatprep.subr.mxu0 0.0
        %2526 = vmatpush1.msra.mxu0 0.0
        %2527 = vmatprep.subr.mxu0 0.0
        %2528 = vmatpush1.msra.mxu0 0.0
        %2529 = vmatprep.subr.mxu0 0.0
        %2530 = vmatpush1.msra.mxu0 0.0
        %2531 = vmatprep.subr.mxu0 0.0
        %2532 = vmatpush1.msra.mxu0 0.0
        %2533 = vmatprep.mubr.f32.mxu0 0.0
        %2534 = vmatmul.mubr.f32.gmra.mrb[0].mxu0 %v2396
        %v2535 = vpop.f32.mrb[0].mxu0
        %v2536 = vadd.f32 0.0, %v2535
        %v2537 = vpop.f32.mrb[0].mxu0
        %2538 = vdwg.mxu0
        %v2539 = vadd.f32 %v2378, %v2465
        %v2540 = vadd.f32 %v2379, %v2467
        %v2541 = vadd.f32 %v2380, %v2536
        %s2542 = scalar_lea.vmem %s6, 20
        %v2543 = vld [vmem:[%s2542] sm:$0xf]
        %2544 = vrot.lane.b32.xlu0 %v1750, 108
        %v2545 = vpop.permute.xlu0 %2544
        %2546 = vrot.lane.b32.xlu0 %v1751, 108
        %v2547 = vpop.permute.xlu0 %2546
        %2548 = vrot.lane.b32.xlu0 %v1752, 108
        %v2549 = vpop.permute.xlu0 %2548
        %vm2550 = vcmask 883712
        %v2551 = vsel %vm2550, %v2545, %v2547
        %v2552 = vsel %vm2550, %v2547, %v2549
        %v2557 = vsel %vm599, %v2543, 0
        %2559 = vmatprep.subr.mxu0 %v2552
        %2560 = vmatpush1.msra.mxu0 %v2551
        %2561 = vmatprep.subr.mxu0 0.0
        %2562 = vmatpush1.msra.mxu0 0.0
        %2563 = vmatprep.subr.mxu0 0.0
        %2564 = vmatpush1.msra.mxu0 0.0
        %2565 = vmatprep.subr.mxu0 0.0
        %2566 = vmatpush1.msra.mxu0 0.0
        %2567 = vmatprep.subr.mxu0 0.0
        %2568 = vmatpush1.msra.mxu0 0.0
        %2569 = vmatprep.subr.mxu0 0.0
        %2570 = vmatpush1.msra.mxu0 0.0
        %2571 = vmatprep.subr.mxu0 0.0
        %2572 = vmatpush1.msra.mxu0 0.0
        %2573 = vmatprep.subr.mxu0 0.0
        %2574 = vmatpush1.msra.mxu0 0.0
        %2575 = vmatprep.subr.mxu0 0.0
        %2576 = vmatpush1.msra.mxu0 0.0
        %2577 = vmatprep.subr.mxu0 0.0
        %2578 = vmatpush1.msra.mxu0 0.0
        %2579 = vmatprep.subr.mxu0 0.0
        %2580 = vmatpush1.msra.mxu0 0.0
        %2581 = vmatprep.subr.mxu0 0.0
        %2582 = vmatpush1.msra.mxu0 0.0
        %2583 = vmatprep.subr.mxu0 0.0
        %2584 = vmatpush1.msra.mxu0 0.0
        %2585 = vmatprep.subr.mxu0 0.0
        %2586 = vmatpush1.msra.mxu0 0.0
        %2587 = vmatprep.subr.mxu0 0.0
        %2588 = vmatpush1.msra.mxu0 0.0
        %2589 = vmatprep.subr.mxu0 0.0
        %2590 = vmatpush1.msra.mxu0 0.0
        %2591 = vmatprep.subr.mxu0 0.0
        %2592 = vmatpush1.msra.mxu0 0.0
        %2593 = vmatprep.subr.mxu0 0.0
        %2594 = vmatpush1.msra.mxu0 0.0
        %2595 = vmatprep.subr.mxu0 0.0
        %2596 = vmatpush1.msra.mxu0 0.0
        %2597 = vmatprep.subr.mxu0 0.0
        %2598 = vmatpush1.msra.mxu0 0.0
        %2599 = vmatprep.subr.mxu0 0.0
        %2600 = vmatpush1.msra.mxu0 0.0
        %2601 = vmatprep.subr.mxu0 0.0
        %2602 = vmatpush1.msra.mxu0 0.0
        %2603 = vmatprep.subr.mxu0 0.0
        %2604 = vmatpush1.msra.mxu0 0.0
        %2605 = vmatprep.subr.mxu0 0.0
        %2606 = vmatpush1.msra.mxu0 0.0
        %2607 = vmatprep.subr.mxu0 0.0
        %2608 = vmatpush1.msra.mxu0 0.0
        %2609 = vmatprep.subr.mxu0 0.0
        %2610 = vmatpush1.msra.mxu0 0.0
        %2611 = vmatprep.subr.mxu0 0.0
        %2612 = vmatpush1.msra.mxu0 0.0
        %2613 = vmatprep.subr.mxu0 0.0
        %2614 = vmatpush1.msra.mxu0 0.0
        %2615 = vmatprep.subr.mxu0 0.0
        %2616 = vmatpush1.msra.mxu0 0.0
        %2617 = vmatprep.subr.mxu0 0.0
        %2618 = vmatpush1.msra.mxu0 0.0
        %2619 = vmatprep.subr.mxu0 0.0
        %2620 = vmatpush1.msra.mxu0 0.0
        %2621 = vmatprep.subr.mxu0 0.0
        %2622 = vmatpush1.msra.mxu0 0.0
        %2623 = vmatprep.mubr.f32.mxu0 0.0
        %2624 = vmatmul.mubr.f32.gmra.mrb[0].mxu0 %v2557
        %v2625 = vpop.f32.mrb[0].mxu0
        %v2626 = vadd.f32 0.0, %v2625
        %v2627 = vpop.f32.mrb[0].mxu0
        %v2628 = vadd.f32 0.0, %v2627
        %2629 = vdwg.mxu0
        %2630 = vmatprep.subr.mxu0 0.0
        %2631 = vmatpush1.msra.mxu0 %v2549
        %2632 = vmatprep.subr.mxu0 0.0
        %2633 = vmatpush1.msra.mxu0 0.0
        %2634 = vmatprep.subr.mxu0 0.0
        %2635 = vmatpush1.msra.mxu0 0.0
        %2636 = vmatprep.subr.mxu0 0.0
        %2637 = vmatpush1.msra.mxu0 0.0
        %2638 = vmatprep.subr.mxu0 0.0
        %2639 = vmatpush1.msra.mxu0 0.0
        %2640 = vmatprep.subr.mxu0 0.0
        %2641 = vmatpush1.msra.mxu0 0.0
        %2642 = vmatprep.subr.mxu0 0.0
        %2643 = vmatpush1.msra.mxu0 0.0
        %2644 = vmatprep.subr.mxu0 0.0
        %2645 = vmatpush1.msra.mxu0 0.0
        %2646 = vmatprep.subr.mxu0 0.0
        %2647 = vmatpush1.msra.mxu0 0.0
        %2648 = vmatprep.subr.mxu0 0.0
        %2649 = vmatpush1.msra.mxu0 0.0
        %2650 = vmatprep.subr.mxu0 0.0
        %2651 = vmatpush1.msra.mxu0 0.0
        %2652 = vmatprep.subr.mxu0 0.0
        %2653 = vmatpush1.msra.mxu0 0.0
        %2654 = vmatprep.subr.mxu0 0.0
        %2655 = vmatpush1.msra.mxu0 0.0
        %2656 = vmatprep.subr.mxu0 0.0
        %2657 = vmatpush1.msra.mxu0 0.0
        %2658 = vmatprep.subr.mxu0 0.0
        %2659 = vmatpush1.msra.mxu0 0.0
        %2660 = vmatprep.subr.mxu0 0.0
        %2661 = vmatpush1.msra.mxu0 0.0
        %2662 = vmatprep.subr.mxu0 0.0
        %2663 = vmatpush1.msra.mxu0 0.0
        %2664 = vmatprep.subr.mxu0 0.0
        %2665 = vmatpush1.msra.mxu0 0.0
        %2666 = vmatprep.subr.mxu0 0.0
        %2667 = vmatpush1.msra.mxu0 0.0
        %2668 = vmatprep.subr.mxu0 0.0
        %2669 = vmatpush1.msra.mxu0 0.0
        %2670 = vmatprep.subr.mxu0 0.0
        %2671 = vmatpush1.msra.mxu0 0.0
        %2672 = vmatprep.subr.mxu0 0.0
        %2673 = vmatpush1.msra.mxu0 0.0
        %2674 = vmatprep.subr.mxu0 0.0
        %2675 = vmatpush1.msra.mxu0 0.0
        %2676 = vmatprep.subr.mxu0 0.0
        %2677 = vmatpush1.msra.mxu0 0.0
        %2678 = vmatprep.subr.mxu0 0.0
        %2679 = vmatpush1.msra.mxu0 0.0
        %2680 = vmatprep.subr.mxu0 0.0
        %2681 = vmatpush1.msra.mxu0 0.0
        %2682 = vmatprep.subr.mxu0 0.0
        %2683 = vmatpush1.msra.mxu0 0.0
        %2684 = vmatprep.subr.mxu0 0.0
        %2685 = vmatpush1.msra.mxu0 0.0
        %2686 = vmatprep.subr.mxu0 0.0
        %2687 = vmatpush1.msra.mxu0 0.0
        %2688 = vmatprep.subr.mxu0 0.0
        %2689 = vmatpush1.msra.mxu0 0.0
        %2690 = vmatprep.subr.mxu0 0.0
        %2691 = vmatpush1.msra.mxu0 0.0
        %2692 = vmatprep.subr.mxu0 0.0
        %2693 = vmatpush1.msra.mxu0 0.0
        %2694 = vmatprep.mubr.f32.mxu0 0.0
        %2695 = vmatmul.mubr.f32.gmra.mrb[0].mxu0 %v2557
        %v2696 = vpop.f32.mrb[0].mxu0
        %v2697 = vadd.f32 0.0, %v2696
        %v2698 = vpop.f32.mrb[0].mxu0
        %2699 = vdwg.mxu0
        %v2700 = vadd.f32 %v2539, %v2626
        %v2701 = vadd.f32 %v2540, %v2628
        %v2702 = vadd.f32 %v2541, %v2697
        %s2703 = scalar_lea.vmem %s6, 24
        %v2704 = vld [vmem:[%s2703] sm:$0xf]
        %2705 = vrot.lane.b32.xlu0 %v1750, 92
        %v2706 = vpop.permute.xlu0 %2705
        %2707 = vrot.lane.b32.xlu0 %v1751, 92
        %v2708 = vpop.permute.xlu0 %2707
        %2709 = vrot.lane.b32.xlu0 %v1752, 92
        %v2710 = vpop.permute.xlu0 %2709
        %vm2711 = vcmask 752640
        %v2712 = vsel %vm2711, %v2706, %v2708
        %v2713 = vsel %vm2711, %v2708, %v2710
        %v2718 = vsel %vm599, %v2704, 0
        %2720 = vmatprep.subr.mxu0 %v2713
        %2721 = vmatpush1.msra.mxu0 %v2712
        %2722 = vmatprep.subr.mxu0 0.0
        %2723 = vmatpush1.msra.mxu0 0.0
        %2724 = vmatprep.subr.mxu0 0.0
        %2725 = vmatpush1.msra.mxu0 0.0
        %2726 = vmatprep.subr.mxu0 0.0
        %2727 = vmatpush1.msra.mxu0 0.0
        %2728 = vmatprep.subr.mxu0 0.0
        %2729 = vmatpush1.msra.mxu0 0.0
        %2730 = vmatprep.subr.mxu0 0.0
        %2731 = vmatpush1.msra.mxu0 0.0
        %2732 = vmatprep.subr.mxu0 0.0
        %2733 = vmatpush1.msra.mxu0 0.0
        %2734 = vmatprep.subr.mxu0 0.0
        %2735 = vmatpush1.msra.mxu0 0.0
        %2736 = vmatprep.subr.mxu0 0.0
        %2737 = vmatpush1.msra.mxu0 0.0
        %2738 = vmatprep.subr.mxu0 0.0
        %2739 = vmatpush1.msra.mxu0 0.0
        %2740 = vmatprep.subr.mxu0 0.0
        %2741 = vmatpush1.msra.mxu0 0.0
        %2742 = vmatprep.subr.mxu0 0.0
        %2743 = vmatpush1.msra.mxu0 0.0
        %2744 = vmatprep.subr.mxu0 0.0
        %2745 = vmatpush1.msra.mxu0 0.0
        %2746 = vmatprep.subr.mxu0 0.0
        %2747 = vmatpush1.msra.mxu0 0.0
        %2748 = vmatprep.subr.mxu0 0.0
        %2749 = vmatpush1.msra.mxu0 0.0
        %2750 = vmatprep.subr.mxu0 0.0
        %2751 = vmatpush1.msra.mxu0 0.0
        %2752 = vmatprep.subr.mxu0 0.0
        %2753 = vmatpush1.msra.mxu0 0.0
        %2754 = vmatprep.subr.mxu0 0.0
        %2755 = vmatpush1.msra.mxu0 0.0
        %2756 = vmatprep.subr.mxu0 0.0
        %2757 = vmatpush1.msra.mxu0 0.0
        %2758 = vmatprep.subr.mxu0 0.0
        %2759 = vmatpush1.msra.mxu0 0.0
        %2760 = vmatprep.subr.mxu0 0.0
        %2761 = vmatpush1.msra.mxu0 0.0
        %2762 = vmatprep.subr.mxu0 0.0
        %2763 = vmatpush1.msra.mxu0 0.0
        %2764 = vmatprep.subr.mxu0 0.0
        %2765 = vmatpush1.msra.mxu0 0.0
        %2766 = vmatprep.subr.mxu0 0.0
        %2767 = vmatpush1.msra.mxu0 0.0
        %2768 = vmatprep.subr.mxu0 0.0
        %2769 = vmatpush1.msra.mxu0 0.0
        %2770 = vmatprep.subr.mxu0 0.0
        %2771 = vmatpush1.msra.mxu0 0.0
        %2772 = vmatprep.subr.mxu0 0.0
        %2773 = vmatpush1.msra.mxu0 0.0
        %2774 = vmatprep.subr.mxu0 0.0
        %2775 = vmatpush1.msra.mxu0 0.0
        %2776 = vmatprep.subr.mxu0 0.0
        %2777 = vmatpush1.msra.mxu0 0.0
        %2778 = vmatprep.subr.mxu0 0.0
        %2779 = vmatpush1.msra.mxu0 0.0
        %2780 = vmatprep.subr.mxu0 0.0
        %2781 = vmatpush1.msra.mxu0 0.0
        %2782 = vmatprep.subr.mxu0 0.0
        %2783 = vmatpush1.msra.mxu0 0.0
        %2784 = vmatprep.mubr.f32.mxu0 0.0
        %2785 = vmatmul.mubr.f32.gmra.mrb[0].mxu0 %v2718
        %v2786 = vpop.f32.mrb[0].mxu0
        %v2787 = vadd.f32 0.0, %v2786
        %v2788 = vpop.f32.mrb[0].mxu0
        %v2789 = vadd.f32 0.0, %v2788
        %2790 = vdwg.mxu0
        %2791 = vmatprep.subr.mxu0 0.0
        %2792 = vmatpush1.msra.mxu0 %v2710
        %2793 = vmatprep.subr.mxu0 0.0
        %2794 = vmatpush1.msra.mxu0 0.0
        %2795 = vmatprep.subr.mxu0 0.0
        %2796 = vmatpush1.msra.mxu0 0.0
        %2797 = vmatprep.subr.mxu0 0.0
        %2798 = vmatpush1.msra.mxu0 0.0
        %2799 = vmatprep.subr.mxu0 0.0
        %2800 = vmatpush1.msra.mxu0 0.0
        %2801 = vmatprep.subr.mxu0 0.0
        %2802 = vmatpush1.msra.mxu0 0.0
        %2803 = vmatprep.subr.mxu0 0.0
        %2804 = vmatpush1.msra.mxu0 0.0
        %2805 = vmatprep.subr.mxu0 0.0
        %2806 = vmatpush1.msra.mxu0 0.0
        %2807 = vmatprep.subr.mxu0 0.0
        %2808 = vmatpush1.msra.mxu0 0.0
        %2809 = vmatprep.subr.mxu0 0.0
        %2810 = vmatpush1.msra.mxu0 0.0
        %2811 = vmatprep.subr.mxu0 0.0
        %2812 = vmatpush1.msra.mxu0 0.0
        %2813 = vmatprep.subr.mxu0 0.0
        %2814 = vmatpush1.msra.mxu0 0.0
        %2815 = vmatprep.subr.mxu0 0.0
        %2816 = vmatpush1.msra.mxu0 0.0
        %2817 = vmatprep.subr.mxu0 0.0
        %2818 = vmatpush1.msra.mxu0 0.0
        %2819 = vmatprep.subr.mxu0 0.0
        %2820 = vmatpush1.msra.mxu0 0.0
        %2821 = vmatprep.subr.mxu0 0.0
        %2822 = vmatpush1.msra.mxu0 0.0
        %2823 = vmatprep.subr.mxu0 0.0
        %2824 = vmatpush1.msra.mxu0 0.0
        %2825 = vmatprep.subr.mxu0 0.0
        %2826 = vmatpush1.msra.mxu0 0.0
        %2827 = vmatprep.subr.mxu0 0.0
        %2828 = vmatpush1.msra.mxu0 0.0
        %2829 = vmatprep.subr.mxu0 0.0
        %2830 = vmatpush1.msra.mxu0 0.0
        %2831 = vmatprep.subr.mxu0 0.0
        %2832 = vmatpush1.msra.mxu0 0.0
        %2833 = vmatprep.subr.mxu0 0.0
        %2834 = vmatpush1.msra.mxu0 0.0
        %2835 = vmatprep.subr.mxu0 0.0
        %2836 = vmatpush1.msra.mxu0 0.0
        %2837 = vmatprep.subr.mxu0 0.0
        %2838 = vmatpush1.msra.mxu0 0.0
        %2839 = vmatprep.subr.mxu0 0.0
        %2840 = vmatpush1.msra.mxu0 0.0
        %2841 = vmatprep.subr.mxu0 0.0
        %2842 = vmatpush1.msra.mxu0 0.0
        %2843 = vmatprep.subr.mxu0 0.0
        %2844 = vmatpush1.msra.mxu0 0.0
        %2845 = vmatprep.subr.mxu0 0.0
        %2846 = vmatpush1.msra.mxu0 0.0
        %2847 = vmatprep.subr.mxu0 0.0
        %2848 = vmatpush1.msra.mxu0 0.0
        %2849 = vmatprep.subr.mxu0 0.0
        %2850 = vmatpush1.msra.mxu0 0.0
        %2851 = vmatprep.subr.mxu0 0.0
        %2852 = vmatpush1.msra.mxu0 0.0
        %2853 = vmatprep.subr.mxu0 0.0
        %2854 = vmatpush1.msra.mxu0 0.0
        %2855 = vmatprep.mubr.f32.mxu0 0.0
        %2856 = vmatmul.mubr.f32.gmra.mrb[0].mxu0 %v2718
        %v2857 = vpop.f32.mrb[0].mxu0
        %v2858 = vadd.f32 0.0, %v2857
        %v2859 = vpop.f32.mrb[0].mxu0
        %2860 = vdwg.mxu0
        %v2861 = vadd.f32 %v2700, %v2787
        %v2862 = vadd.f32 %v2701, %v2789
        %v2863 = vadd.f32 %v2702, %v2858
        %s2864 = scalar_lea.vmem %s6, 28
        %v2865 = vld [vmem:[%s2864] sm:$0xf]
        %2866 = vrot.lane.b32.xlu0 %v1750, 91
        %v2867 = vpop.permute.xlu0 %2866
        %2868 = vrot.lane.b32.xlu0 %v1751, 91
        %v2869 = vpop.permute.xlu0 %2868
        %2870 = vrot.lane.b32.xlu0 %v1752, 91
        %v2871 = vpop.permute.xlu0 %2870
        %vm2872 = vcmask 744448
        %v2873 = vsel %vm2872, %v2867, %v2869
        %v2874 = vsel %vm2872, %v2869, %v2871
        %v2879 = vsel %vm599, %v2865, 0
        %2881 = vmatprep.subr.mxu0 %v2874
        %2882 = vmatpush1.msra.mxu0 %v2873
        %2883 = vmatprep.subr.mxu0 0.0
        %2884 = vmatpush1.msra.mxu0 0.0
        %2885 = vmatprep.subr.mxu0 0.0
        %2886 = vmatpush1.msra.mxu0 0.0
        %2887 = vmatprep.subr.mxu0 0.0
        %2888 = vmatpush1.msra.mxu0 0.0
        %2889 = vmatprep.subr.mxu0 0.0
        %2890 = vmatpush1.msra.mxu0 0.0
        %2891 = vmatprep.subr.mxu0 0.0
        %2892 = vmatpush1.msra.mxu0 0.0
        %2893 = vmatprep.subr.mxu0 0.0
        %2894 = vmatpush1.msra.mxu0 0.0
        %2895 = vmatprep.subr.mxu0 0.0
        %2896 = vmatpush1.msra.mxu0 0.0
        %2897 = vmatprep.subr.mxu0 0.0
        %2898 = vmatpush1.msra.mxu0 0.0
        %2899 = vmatprep.subr.mxu0 0.0
        %2900 = vmatpush1.msra.mxu0 0.0
        %2901 = vmatprep.subr.mxu0 0.0
        %2902 = vmatpush1.msra.mxu0 0.0
        %2903 = vmatprep.subr.mxu0 0.0
        %2904 = vmatpush1.msra.mxu0 0.0
        %2905 = vmatprep.subr.mxu0 0.0
        %2906 = vmatpush1.msra.mxu0 0.0
        %2907 = vmatprep.subr.mxu0 0.0
        %2908 = vmatpush1.msra.mxu0 0.0
        %2909 = vmatprep.subr.mxu0 0.0
        %2910 = vmatpush1.msra.mxu0 0.0
        %2911 = vmatprep.subr.mxu0 0.0
        %2912 = vmatpush1.msra.mxu0 0.0
        %2913 = vmatprep.subr.mxu0 0.0
        %2914 = vmatpush1.msra.mxu0 0.0
        %2915 = vmatprep.subr.mxu0 0.0
        %2916 = vmatpush1.msra.mxu0 0.0
        %2917 = vmatprep.subr.mxu0 0.0
        %2918 = vmatpush1.msra.mxu0 0.0
        %2919 = vmatprep.subr.mxu0 0.0
        %2920 = vmatpush1.msra.mxu0 0.0
        %2921 = vmatprep.subr.mxu0 0.0
        %2922 = vmatpush1.msra.mxu0 0.0
        %2923 = vmatprep.subr.mxu0 0.0
        %2924 = vmatpush1.msra.mxu0 0.0
        %2925 = vmatprep.subr.mxu0 0.0
        %2926 = vmatpush1.msra.mxu0 0.0
        %2927 = vmatprep.subr.mxu0 0.0
        %2928 = vmatpush1.msra.mxu0 0.0
        %2929 = vmatprep.subr.mxu0 0.0
        %2930 = vmatpush1.msra.mxu0 0.0
        %2931 = vmatprep.subr.mxu0 0.0
        %2932 = vmatpush1.msra.mxu0 0.0
        %2933 = vmatprep.subr.mxu0 0.0
        %2934 = vmatpush1.msra.mxu0 0.0
        %2935 = vmatprep.subr.mxu0 0.0
        %2936 = vmatpush1.msra.mxu0 0.0
        %2937 = vmatprep.subr.mxu0 0.0
        %2938 = vmatpush1.msra.mxu0 0.0
        %2939 = vmatprep.subr.mxu0 0.0
        %2940 = vmatpush1.msra.mxu0 0.0
        %2941 = vmatprep.subr.mxu0 0.0
        %2942 = vmatpush1.msra.mxu0 0.0
        %2943 = vmatprep.subr.mxu0 0.0
        %2944 = vmatpush1.msra.mxu0 0.0
        %2945 = vmatprep.mubr.f32.mxu0 0.0
        %2946 = vmatmul.mubr.f32.gmra.mrb[0].mxu0 %v2879
        %v2947 = vpop.f32.mrb[0].mxu0
        %v2948 = vadd.f32 0.0, %v2947
        %v2949 = vpop.f32.mrb[0].mxu0
        %v2950 = vadd.f32 0.0, %v2949
        %2951 = vdwg.mxu0
        %2952 = vmatprep.subr.mxu0 0.0
        %2953 = vmatpush1.msra.mxu0 %v2871
        %2954 = vmatprep.subr.mxu0 0.0
        %2955 = vmatpush1.msra.mxu0 0.0
        %2956 = vmatprep.subr.mxu0 0.0
        %2957 = vmatpush1.msra.mxu0 0.0
        %2958 = vmatprep.subr.mxu0 0.0
        %2959 = vmatpush1.msra.mxu0 0.0
        %2960 = vmatprep.subr.mxu0 0.0
        %2961 = vmatpush1.msra.mxu0 0.0
        %2962 = vmatprep.subr.mxu0 0.0
        %2963 = vmatpush1.msra.mxu0 0.0
        %2964 = vmatprep.subr.mxu0 0.0
        %2965 = vmatpush1.msra.mxu0 0.0
        %2966 = vmatprep.subr.mxu0 0.0
        %2967 = vmatpush1.msra.mxu0 0.0
        %2968 = vmatprep.subr.mxu0 0.0
        %2969 = vmatpush1.msra.mxu0 0.0
        %2970 = vmatprep.subr.mxu0 0.0
        %2971 = vmatpush1.msra.mxu0 0.0
        %2972 = vmatprep.subr.mxu0 0.0
        %2973 = vmatpush1.msra.mxu0 0.0
        %2974 = vmatprep.subr.mxu0 0.0
        %2975 = vmatpush1.msra.mxu0 0.0
        %2976 = vmatprep.subr.mxu0 0.0
        %2977 = vmatpush1.msra.mxu0 0.0
        %2978 = vmatprep.subr.mxu0 0.0
        %2979 = vmatpush1.msra.mxu0 0.0
        %2980 = vmatprep.subr.mxu0 0.0
        %2981 = vmatpush1.msra.mxu0 0.0
        %2982 = vmatprep.subr.mxu0 0.0
        %2983 = vmatpush1.msra.mxu0 0.0
        %2984 = vmatprep.subr.mxu0 0.0
        %2985 = vmatpush1.msra.mxu0 0.0
        %2986 = vmatprep.subr.mxu0 0.0
        %2987 = vmatpush1.msra.mxu0 0.0
        %2988 = vmatprep.subr.mxu0 0.0
        %2989 = vmatpush1.msra.mxu0 0.0
        %2990 = vmatprep.subr.mxu0 0.0
        %2991 = vmatpush1.msra.mxu0 0.0
        %2992 = vmatprep.subr.mxu0 0.0
        %2993 = vmatpush1.msra.mxu0 0.0
        %2994 = vmatprep.subr.mxu0 0.0
        %2995 = vmatpush1.msra.mxu0 0.0
        %2996 = vmatprep.subr.mxu0 0.0
        %2997 = vmatpush1.msra.mxu0 0.0
        %2998 = vmatprep.subr.mxu0 0.0
        %2999 = vmatpush1.msra.mxu0 0.0
        %3000 = vmatprep.subr.mxu0 0.0
        %3001 = vmatpush1.msra.mxu0 0.0
        %3002 = vmatprep.subr.mxu0 0.0
        %3003 = vmatpush1.msra.mxu0 0.0
        %3004 = vmatprep.subr.mxu0 0.0
        %3005 = vmatpush1.msra.mxu0 0.0
        %3006 = vmatprep.subr.mxu0 0.0
        %3007 = vmatpush1.msra.mxu0 0.0
        %3008 = vmatprep.subr.mxu0 0.0
        %3009 = vmatpush1.msra.mxu0 0.0
        %3010 = vmatprep.subr.mxu0 0.0
        %3011 = vmatpush1.msra.mxu0 0.0
        %3012 = vmatprep.subr.mxu0 0.0
        %3013 = vmatpush1.msra.mxu0 0.0
        %3014 = vmatprep.subr.mxu0 0.0
        %3015 = vmatpush1.msra.mxu0 0.0
        %3016 = vmatprep.mubr.f32.mxu0 0.0
        %3017 = vmatmul.mubr.f32.gmra.mrb[0].mxu0 %v2879
        %v3018 = vpop.f32.mrb[0].mxu0
        %v3019 = vadd.f32 0.0, %v3018
        %v3020 = vpop.f32.mrb[0].mxu0
        %3021 = vdwg.mxu0
        %v3022 = vadd.f32 %v2861, %v2948
        %v3023 = vadd.f32 %v2862, %v2950
        %v3024 = vadd.f32 %v2863, %v3019
        %s3025 = scalar_lea.vmem %s6, 32
        %v3026 = vld [vmem:[%s3025] sm:$0xf]
        %3027 = vrot.lane.b32.xlu0 %v1750, 90
        %v3028 = vpop.permute.xlu0 %3027
        %3029 = vrot.lane.b32.xlu0 %v1751, 90
        %v3030 = vpop.permute.xlu0 %3029
        %3031 = vrot.lane.b32.xlu0 %v1752, 90
        %v3032 = vpop.permute.xlu0 %3031
        %vm3033 = vcmask 736256
        %v3034 = vsel %vm3033, %v3028, %v3030
        %v3035 = vsel %vm3033, %v3030, %v3032
        %v3040 = vsel %vm599, %v3026, 0
        %3042 = vmatprep.subr.mxu0 %v3035
        %3043 = vmatpush1.msra.mxu0 %v3034
        %3044 = vmatprep.subr.mxu0 0.0
        %3045 = vmatpush1.msra.mxu0 0.0
        %3046 = vmatprep.subr.mxu0 0.0
        %3047 = vmatpush1.msra.mxu0 0.0
        %3048 = vmatprep.subr.mxu0 0.0
        %3049 = vmatpush1.msra.mxu0 0.0
        %3050 = vmatprep.subr.mxu0 0.0
        %3051 = vmatpush1.msra.mxu0 0.0
        %3052 = vmatprep.subr.mxu0 0.0
        %3053 = vmatpush1.msra.mxu0 0.0
        %3054 = vmatprep.subr.mxu0 0.0
        %3055 = vmatpush1.msra.mxu0 0.0
        %3056 = vmatprep.subr.mxu0 0.0
        %3057 = vmatpush1.msra.mxu0 0.0
        %3058 = vmatprep.subr.mxu0 0.0
        %3059 = vmatpush1.msra.mxu0 0.0
        %3060 = vmatprep.subr.mxu0 0.0
        %3061 = vmatpush1.msra.mxu0 0.0
        %3062 = vmatprep.subr.mxu0 0.0
        %3063 = vmatpush1.msra.mxu0 0.0
        %3064 = vmatprep.subr.mxu0 0.0
        %3065 = vmatpush1.msra.mxu0 0.0
        %3066 = vmatprep.subr.mxu0 0.0
        %3067 = vmatpush1.msra.mxu0 0.0
        %3068 = vmatprep.subr.mxu0 0.0
        %3069 = vmatpush1.msra.mxu0 0.0
        %3070 = vmatprep.subr.mxu0 0.0
        %3071 = vmatpush1.msra.mxu0 0.0
        %3072 = vmatprep.subr.mxu0 0.0
        %3073 = vmatpush1.msra.mxu0 0.0
        %3074 = vmatprep.subr.mxu0 0.0
        %3075 = vmatpush1.msra.mxu0 0.0
        %3076 = vmatprep.subr.mxu0 0.0
        %3077 = vmatpush1.msra.mxu0 0.0
        %3078 = vmatprep.subr.mxu0 0.0
        %3079 = vmatpush1.msra.mxu0 0.0
        %3080 = vmatprep.subr.mxu0 0.0
        %3081 = vmatpush1.msra.mxu0 0.0
        %3082 = vmatprep.subr.mxu0 0.0
        %3083 = vmatpush1.msra.mxu0 0.0
        %3084 = vmatprep.subr.mxu0 0.0
        %3085 = vmatpush1.msra.mxu0 0.0
        %3086 = vmatprep.subr.mxu0 0.0
        %3087 = vmatpush1.msra.mxu0 0.0
        %3088 = vmatprep.subr.mxu0 0.0
        %3089 = vmatpush1.msra.mxu0 0.0
        %3090 = vmatprep.subr.mxu0 0.0
        %3091 = vmatpush1.msra.mxu0 0.0
        %3092 = vmatprep.subr.mxu0 0.0
        %3093 = vmatpush1.msra.mxu0 0.0
        %3094 = vmatprep.subr.mxu0 0.0
        %3095 = vmatpush1.msra.mxu0 0.0
        %3096 = vmatprep.subr.mxu0 0.0
        %3097 = vmatpush1.msra.mxu0 0.0
        %3098 = vmatprep.subr.mxu0 0.0
        %3099 = vmatpush1.msra.mxu0 0.0
        %3100 = vmatprep.subr.mxu0 0.0
        %3101 = vmatpush1.msra.mxu0 0.0
        %3102 = vmatprep.subr.mxu0 0.0
        %3103 = vmatpush1.msra.mxu0 0.0
        %3104 = vmatprep.subr.mxu0 0.0
        %3105 = vmatpush1.msra.mxu0 0.0
        %3106 = vmatprep.mubr.f32.mxu0 0.0
        %3107 = vmatmul.mubr.f32.gmra.mrb[0].mxu0 %v3040
        %v3108 = vpop.f32.mrb[0].mxu0
        %v3109 = vadd.f32 0.0, %v3108
        %v3110 = vpop.f32.mrb[0].mxu0
        %v3111 = vadd.f32 0.0, %v3110
        %3112 = vdwg.mxu0
        %3113 = vmatprep.subr.mxu0 0.0
        %3114 = vmatpush1.msra.mxu0 %v3032
        %3115 = vmatprep.subr.mxu0 0.0
        %3116 = vmatpush1.msra.mxu0 0.0
        %3117 = vmatprep.subr.mxu0 0.0
        %3118 = vmatpush1.msra.mxu0 0.0
        %3119 = vmatprep.subr.mxu0 0.0
        %3120 = vmatpush1.msra.mxu0 0.0
        %3121 = vmatprep.subr.mxu0 0.0
        %3122 = vmatpush1.msra.mxu0 0.0
        %3123 = vmatprep.subr.mxu0 0.0
        %3124 = vmatpush1.msra.mxu0 0.0
        %3125 = vmatprep.subr.mxu0 0.0
        %3126 = vmatpush1.msra.mxu0 0.0
        %3127 = vmatprep.subr.mxu0 0.0
        %3128 = vmatpush1.msra.mxu0 0.0
        %3129 = vmatprep.subr.mxu0 0.0
        %3130 = vmatpush1.msra.mxu0 0.0
        %3131 = vmatprep.subr.mxu0 0.0
        %3132 = vmatpush1.msra.mxu0 0.0
        %3133 = vmatprep.subr.mxu0 0.0
        %3134 = vmatpush1.msra.mxu0 0.0
        %3135 = vmatprep.subr.mxu0 0.0
        %3136 = vmatpush1.msra.mxu0 0.0
        %3137 = vmatprep.subr.mxu0 0.0
        %3138 = vmatpush1.msra.mxu0 0.0
        %3139 = vmatprep.subr.mxu0 0.0
        %3140 = vmatpush1.msra.mxu0 0.0
        %3141 = vmatprep.subr.mxu0 0.0
        %3142 = vmatpush1.msra.mxu0 0.0
        %3143 = vmatprep.subr.mxu0 0.0
        %3144 = vmatpush1.msra.mxu0 0.0
        %3145 = vmatprep.subr.mxu0 0.0
        %3146 = vmatpush1.msra.mxu0 0.0
        %3147 = vmatprep.subr.mxu0 0.0
        %3148 = vmatpush1.msra.mxu0 0.0
        %3149 = vmatprep.subr.mxu0 0.0
        %3150 = vmatpush1.msra.mxu0 0.0
        %3151 = vmatprep.subr.mxu0 0.0
        %3152 = vmatpush1.msra.mxu0 0.0
        %3153 = vmatprep.subr.mxu0 0.0
        %3154 = vmatpush1.msra.mxu0 0.0
        %3155 = vmatprep.subr.mxu0 0.0
        %3156 = vmatpush1.msra.mxu0 0.0
        %3157 = vmatprep.subr.mxu0 0.0
        %3158 = vmatpush1.msra.mxu0 0.0
        %3159 = vmatprep.subr.mxu0 0.0
        %3160 = vmatpush1.msra.mxu0 0.0
        %3161 = vmatprep.subr.mxu0 0.0
        %3162 = vmatpush1.msra.mxu0 0.0
        %3163 = vmatprep.subr.mxu0 0.0
        %3164 = vmatpush1.msra.mxu0 0.0
        %3165 = vmatprep.subr.mxu0 0.0
        %3166 = vmatpush1.msra.mxu0 0.0
        %3167 = vmatprep.subr.mxu0 0.0
        %3168 = vmatpush1.msra.mxu0 0.0
        %3169 = vmatprep.subr.mxu0 0.0
        %3170 = vmatpush1.msra.mxu0 0.0
        %3171 = vmatprep.subr.mxu0 0.0
        %3172 = vmatpush1.msra.mxu0 0.0
        %3173 = vmatprep.subr.mxu0 0.0
        %3174 = vmatpush1.msra.mxu0 0.0
        %3175 = vmatprep.subr.mxu0 0.0
        %3176 = vmatpush1.msra.mxu0 0.0
        %3177 = vmatprep.mubr.f32.mxu0 0.0
        %3178 = vmatmul.mubr.f32.gmra.mrb[0].mxu0 %v3040
        %v3179 = vpop.f32.mrb[0].mxu0
        %v3180 = vadd.f32 0.0, %v3179
        %v3181 = vpop.f32.mrb[0].mxu0
        %3182 = vdwg.mxu0
        %v3183 = vadd.f32 %v3022, %v3109
        %v3184 = vadd.f32 %v3023, %v3111
        %v3185 = vadd.f32 %v3024, %v3180
        %v3186 = vld [vmem:[%s7] sm:$0xf]
        %3188 = vset.pattern.permute.xlu0 0
        %3189 = vperm.xlu0 %3188, %v3186
        %v3190 = vpop.permute.xlu0 %3189
        %v3192 = vmul.f32 %v3183, %v3190
        %v3193 = vmul.f32 %v3184, %v3190
        %v3194 = vmul.f32 %v3185, %v3190
        %v3195 = vld [vmem:[%s8] sm:$0xf]
        %3197 = vset.pattern.permute.xlu0 0
        %3198 = vperm.xlu0 %3197, %v3195
        %v3199 = vpop.permute.xlu0 %3198
        %v3201 = vadd.f32 %v3192, %v3199
        %v3202 = vadd.f32 %v3193, %v3199
        %v3203 = vadd.f32 %v3194, %v3199
        %v3204 = vmax.f32 %v3201, 0.0
        %v3205 = vmax.f32 %v3202, 0.0
        %v3206 = vmax.f32 %v3203, 0.0
        %v3207 = vld [vmem:[%s12] sm:$0x7]
        %v3209 = vlaneseq
        %v3210 = vshrl.u32 %v3209, 7
        %v3211 = vsub.s32 0, %v3210
        %v3212 = vrot.slane %v3207, %v3211
        %v3213 = vlaneseq
        %v3214 = vshrl.u32 %v3213, 7
        %v3215 = vsub.s32 1, %v3214
        %v3216 = vrot.slane %v3207, %v3215
        %v3217 = vlaneseq
        %v3218 = vshrl.u32 %v3217, 7
        %v3219 = vsub.s32 2, %v3218
        %v3220 = vrot.slane %v3207, %v3219
        %v3224 = vmul.f32 %v3204, %v3212
        %v3225 = vmul.f32 %v3205, %v3216
        %v3226 = vmul.f32 %v3206, %v3220
        %3227 = vst [vmem:[#allocation4] sm:$0xff] 0.0
        %vm3228 = vcmask 863232
        %3229 = vst.msk [vmem:[#allocation4 + $0x8] sm:$0xf] %vm3228, 0.0
        %v3233 = vcombine.low %v3224, %v3225
        %3234 = vrot.lane.b32.xlu0 %v3233, 19
        %v3235 = vpop.permute.xlu0 %3234
        %3236 = vrot.lane.b32.xlu0 %v3226, 19
        %v3237 = vpop.permute.xlu0 %3236
        %v3238 = vrot.slane %v3235, 4
        %vm3239 = vcmask 154624
        %v3240 = vsel %vm3239, %v3238, %v3235
        %v3241 = vsel %vm3239, %v3238, %v3237
        %vm3244 = vcmask 1043608
        %vm3245 = vcmask 1047556
        %vm3246 = vmor %vm3245, %vm3244
        %3247 = vst.msk [vmem:[#allocation4] sm:$0xff] %vm3246, %v3240
        %vm3248 = vcmask 707584
        %3249 = vst.msk [vmem:[#allocation4 + $0x8] sm:$0xf] %vm3248, %v3241
        %v3250 = vld [vmem:[#allocation4] sm:$0xff]
        %v3251 = vld [vmem:[#allocation4 + $0x8] sm:$0xf]
        %v3252 = vld [vmem:[%s9] sm:$0xf]
        %s3253 = scalar_lea.vmem %s9, 4
        %v3254 = vld [vmem:[%s3253] sm:$0xf]
        %v3257 = vcombine.high %v3250, %v3250
        %3258 = vrot.lane.b32.xlu0 %v3250, 127
        %v3259 = vpop.permute.xlu0 %3258
        %3260 = vrot.lane.b32.xlu0 %v3257, 127
        %v3261 = vpop.permute.xlu0 %3260
        %3262 = vrot.lane.b32.xlu0 %v3251, 127
        %v3263 = vpop.permute.xlu0 %3262
        %v3264 = vsel %vm1765, %v3259, %v3261
        %v3265 = vsel %vm1765, %v3261, %v3263
        %vm3266 = vcmask 31744
        %v3268 = vsel %vm3266, %v3254, 0
        %vm3270 = vcmask 1043456
        %v3271 = vsel %vm3270, %v3264, 0
        %v3273 = vsel %vm3270, %v3265, 0
        %v3275 = vsel %vm3270, %v3263, 0
        %3277 = vmatprep.subr.mxu0 %v3273
        %3278 = vmatpush1.msra.mxu0 %v3271
        %3279 = vmatprep.subr.mxu0 0.0
        %3280 = vmatpush1.msra.mxu0 0.0
        %3281 = vmatprep.subr.mxu0 0.0
        %3282 = vmatpush1.msra.mxu0 0.0
        %3283 = vmatprep.subr.mxu0 0.0
        %3284 = vmatpush1.msra.mxu0 0.0
        %3285 = vmatprep.subr.mxu0 0.0
        %3286 = vmatpush1.msra.mxu0 0.0
        %3287 = vmatprep.subr.mxu0 0.0
        %3288 = vmatpush1.msra.mxu0 0.0
        %3289 = vmatprep.subr.mxu0 0.0
        %3290 = vmatpush1.msra.mxu0 0.0
        %3291 = vmatprep.subr.mxu0 0.0
        %3292 = vmatpush1.msra.mxu0 0.0
        %3293 = vmatprep.subr.mxu0 0.0
        %3294 = vmatpush1.msra.mxu0 0.0
        %3295 = vmatprep.subr.mxu0 0.0
        %3296 = vmatpush1.msra.mxu0 0.0
        %3297 = vmatprep.subr.mxu0 0.0
        %3298 = vmatpush1.msra.mxu0 0.0
        %3299 = vmatprep.subr.mxu0 0.0
        %3300 = vmatpush1.msra.mxu0 0.0
        %3301 = vmatprep.subr.mxu0 0.0
        %3302 = vmatpush1.msra.mxu0 0.0
        %3303 = vmatprep.subr.mxu0 0.0
        %3304 = vmatpush1.msra.mxu0 0.0
        %3305 = vmatprep.subr.mxu0 0.0
        %3306 = vmatpush1.msra.mxu0 0.0
        %3307 = vmatprep.subr.mxu0 0.0
        %3308 = vmatpush1.msra.mxu0 0.0
        %3309 = vmatprep.subr.mxu0 0.0
        %3310 = vmatpush1.msra.mxu0 0.0
        %3311 = vmatprep.subr.mxu0 0.0
        %3312 = vmatpush1.msra.mxu0 0.0
        %3313 = vmatprep.subr.mxu0 0.0
        %3314 = vmatpush1.msra.mxu0 0.0
        %3315 = vmatprep.subr.mxu0 0.0
        %3316 = vmatpush1.msra.mxu0 0.0
        %3317 = vmatprep.subr.mxu0 0.0
        %3318 = vmatpush1.msra.mxu0 0.0
        %3319 = vmatprep.subr.mxu0 0.0
        %3320 = vmatpush1.msra.mxu0 0.0
        %3321 = vmatprep.subr.mxu0 0.0
        %3322 = vmatpush1.msra.mxu0 0.0
        %3323 = vmatprep.subr.mxu0 0.0
        %3324 = vmatpush1.msra.mxu0 0.0
        %3325 = vmatprep.subr.mxu0 0.0
        %3326 = vmatpush1.msra.mxu0 0.0
        %3327 = vmatprep.subr.mxu0 0.0
        %3328 = vmatpush1.msra.mxu0 0.0
        %3329 = vmatprep.subr.mxu0 0.0
        %3330 = vmatpush1.msra.mxu0 0.0
        %3331 = vmatprep.subr.mxu0 0.0
        %3332 = vmatpush1.msra.mxu0 0.0
        %3333 = vmatprep.subr.mxu0 0.0
        %3334 = vmatpush1.msra.mxu0 0.0
        %3335 = vmatprep.subr.mxu0 0.0
        %3336 = vmatpush1.msra.mxu0 0.0
        %3337 = vmatprep.subr.mxu0 0.0
        %3338 = vmatpush1.msra.mxu0 0.0
        %3339 = vmatprep.subr.mxu0 0.0
        %3340 = vmatpush1.msra.mxu0 0.0
        %3341 = vmatprep.mubr.f32.mxu0 0.0
        %3342 = vmatmul.mubr.f32.gmra.mrb[0].mxu0 %v3268
        %v3343 = vpop.f32.mrb[0].mxu0
        %v3344 = vadd.f32 0.0, %v3343
        %v3345 = vpop.f32.mrb[0].mxu0
        %v3346 = vadd.f32 0.0, %v3345
        %3347 = vdwg.mxu0
        %3348 = vmatprep.subr.mxu0 0.0
        %3349 = vmatpush1.msra.mxu0 %v3275
        %3350 = vmatprep.subr.mxu0 0.0
        %3351 = vmatpush1.msra.mxu0 0.0
        %3352 = vmatprep.subr.mxu0 0.0
        %3353 = vmatpush1.msra.mxu0 0.0
        %3354 = vmatprep.subr.mxu0 0.0
        %3355 = vmatpush1.msra.mxu0 0.0
        %3356 = vmatprep.subr.mxu0 0.0
        %3357 = vmatpush1.msra.mxu0 0.0
        %3358 = vmatprep.subr.mxu0 0.0
        %3359 = vmatpush1.msra.mxu0 0.0
        %3360 = vmatprep.subr.mxu0 0.0
        %3361 = vmatpush1.msra.mxu0 0.0
        %3362 = vmatprep.subr.mxu0 0.0
        %3363 = vmatpush1.msra.mxu0 0.0
        %3364 = vmatprep.subr.mxu0 0.0
        %3365 = vmatpush1.msra.mxu0 0.0
        %3366 = vmatprep.subr.mxu0 0.0
        %3367 = vmatpush1.msra.mxu0 0.0
        %3368 = vmatprep.subr.mxu0 0.0
        %3369 = vmatpush1.msra.mxu0 0.0
        %3370 = vmatprep.subr.mxu0 0.0
        %3371 = vmatpush1.msra.mxu0 0.0
        %3372 = vmatprep.subr.mxu0 0.0
        %3373 = vmatpush1.msra.mxu0 0.0
        %3374 = vmatprep.subr.mxu0 0.0
        %3375 = vmatpush1.msra.mxu0 0.0
        %3376 = vmatprep.subr.mxu0 0.0
        %3377 = vmatpush1.msra.mxu0 0.0
        %3378 = vmatprep.subr.mxu0 0.0
        %3379 = vmatpush1.msra.mxu0 0.0
        %3380 = vmatprep.subr.mxu0 0.0
        %3381 = vmatpush1.msra.mxu0 0.0
        %3382 = vmatprep.subr.mxu0 0.0
        %3383 = vmatpush1.msra.mxu0 0.0
        %3384 = vmatprep.subr.mxu0 0.0
        %3385 = vmatpush1.msra.mxu0 0.0
        %3386 = vmatprep.subr.mxu0 0.0
        %3387 = vmatpush1.msra.mxu0 0.0
        %3388 = vmatprep.subr.mxu0 0.0
        %3389 = vmatpush1.msra.mxu0 0.0
        %3390 = vmatprep.subr.mxu0 0.0
        %3391 = vmatpush1.msra.mxu0 0.0
        %3392 = vmatprep.subr.mxu0 0.0
        %3393 = vmatpush1.msra.mxu0 0.0
        %3394 = vmatprep.subr.mxu0 0.0
        %3395 = vmatpush1.msra.mxu0 0.0
        %3396 = vmatprep.subr.mxu0 0.0
        %3397 = vmatpush1.msra.mxu0 0.0
        %3398 = vmatprep.subr.mxu0 0.0
        %3399 = vmatpush1.msra.mxu0 0.0
        %3400 = vmatprep.subr.mxu0 0.0
        %3401 = vmatpush1.msra.mxu0 0.0
        %3402 = vmatprep.subr.mxu0 0.0
        %3403 = vmatpush1.msra.mxu0 0.0
        %3404 = vmatprep.subr.mxu0 0.0
        %3405 = vmatpush1.msra.mxu0 0.0
        %3406 = vmatprep.subr.mxu0 0.0
        %3407 = vmatpush1.msra.mxu0 0.0
        %3408 = vmatprep.subr.mxu0 0.0
        %3409 = vmatpush1.msra.mxu0 0.0
        %3410 = vmatprep.subr.mxu0 0.0
        %3411 = vmatpush1.msra.mxu0 0.0
        %3412 = vmatprep.mubr.f32.mxu0 0.0
        %3413 = vmatmul.mubr.f32.gmra.mrb[0].mxu0 %v3268
        %v3414 = vpop.f32.mrb[0].mxu0
        %v3415 = vadd.f32 0.0, %v3414
        %v3416 = vpop.f32.mrb[0].mxu0
        %3417 = vdwg.mxu0
        %v3419 = vsel %vm3266, %v3252, 0
        %v3421 = vsel %vm3270, %v3250, 0
        %v3423 = vsel %vm3270, %v3257, 0
        %v3425 = vsel %vm3270, %v3251, 0
        %3427 = vmatprep.subr.mxu0 %v3423
        %3428 = vmatpush1.msra.mxu0 %v3421
        %3429 = vmatprep.subr.mxu0 0.0
        %3430 = vmatpush1.msra.mxu0 0.0
        %3431 = vmatprep.subr.mxu0 0.0
        %3432 = vmatpush1.msra.mxu0 0.0
        %3433 = vmatprep.subr.mxu0 0.0
        %3434 = vmatpush1.msra.mxu0 0.0
        %3435 = vmatprep.subr.mxu0 0.0
        %3436 = vmatpush1.msra.mxu0 0.0
        %3437 = vmatprep.subr.mxu0 0.0
        %3438 = vmatpush1.msra.mxu0 0.0
        %3439 = vmatprep.subr.mxu0 0.0
        %3440 = vmatpush1.msra.mxu0 0.0
        %3441 = vmatprep.subr.mxu0 0.0
        %3442 = vmatpush1.msra.mxu0 0.0
        %3443 = vmatprep.subr.mxu0 0.0
        %3444 = vmatpush1.msra.mxu0 0.0
        %3445 = vmatprep.subr.mxu0 0.0
        %3446 = vmatpush1.msra.mxu0 0.0
        %3447 = vmatprep.subr.mxu0 0.0
        %3448 = vmatpush1.msra.mxu0 0.0
        %3449 = vmatprep.subr.mxu0 0.0
        %3450 = vmatpush1.msra.mxu0 0.0
        %3451 = vmatprep.subr.mxu0 0.0
        %3452 = vmatpush1.msra.mxu0 0.0
        %3453 = vmatprep.subr.mxu0 0.0
        %3454 = vmatpush1.msra.mxu0 0.0
        %3455 = vmatprep.subr.mxu0 0.0
        %3456 = vmatpush1.msra.mxu0 0.0
        %3457 = vmatprep.subr.mxu0 0.0
        %3458 = vmatpush1.msra.mxu0 0.0
        %3459 = vmatprep.subr.mxu0 0.0
        %3460 = vmatpush1.msra.mxu0 0.0
        %3461 = vmatprep.subr.mxu0 0.0
        %3462 = vmatpush1.msra.mxu0 0.0
        %3463 = vmatprep.subr.mxu0 0.0
        %3464 = vmatpush1.msra.mxu0 0.0
        %3465 = vmatprep.subr.mxu0 0.0
        %3466 = vmatpush1.msra.mxu0 0.0
        %3467 = vmatprep.subr.mxu0 0.0
        %3468 = vmatpush1.msra.mxu0 0.0
        %3469 = vmatprep.subr.mxu0 0.0
        %3470 = vmatpush1.msra.mxu0 0.0
        %3471 = vmatprep.subr.mxu0 0.0
        %3472 = vmatpush1.msra.mxu0 0.0
        %3473 = vmatprep.subr.mxu0 0.0
        %3474 = vmatpush1.msra.mxu0 0.0
        %3475 = vmatprep.subr.mxu0 0.0
        %3476 = vmatpush1.msra.mxu0 0.0
        %3477 = vmatprep.subr.mxu0 0.0
        %3478 = vmatpush1.msra.mxu0 0.0
        %3479 = vmatprep.subr.mxu0 0.0
        %3480 = vmatpush1.msra.mxu0 0.0
        %3481 = vmatprep.subr.mxu0 0.0
        %3482 = vmatpush1.msra.mxu0 0.0
        %3483 = vmatprep.subr.mxu0 0.0
        %3484 = vmatpush1.msra.mxu0 0.0
        %3485 = vmatprep.subr.mxu0 0.0
        %3486 = vmatpush1.msra.mxu0 0.0
        %3487 = vmatprep.subr.mxu0 0.0
        %3488 = vmatpush1.msra.mxu0 0.0
        %3489 = vmatprep.subr.mxu0 0.0
        %3490 = vmatpush1.msra.mxu0 0.0
        %3491 = vmatprep.mubr.f32.mxu0 0.0
        %3492 = vmatmul.mubr.f32.gmra.mrb[0].mxu0 %v3419
        %v3493 = vpop.f32.mrb[0].mxu0
        %v3494 = vadd.f32 %v3344, %v3493
        %v3495 = vpop.f32.mrb[0].mxu0
        %v3496 = vadd.f32 %v3346, %v3495
        %3497 = vdwg.mxu0
        %3498 = vmatprep.subr.mxu0 0.0
        %3499 = vmatpush1.msra.mxu0 %v3425
        %3500 = vmatprep.subr.mxu0 0.0
        %3501 = vmatpush1.msra.mxu0 0.0
        %3502 = vmatprep.subr.mxu0 0.0
        %3503 = vmatpush1.msra.mxu0 0.0
        %3504 = vmatprep.subr.mxu0 0.0
        %3505 = vmatpush1.msra.mxu0 0.0
        %3506 = vmatprep.subr.mxu0 0.0
        %3507 = vmatpush1.msra.mxu0 0.0
        %3508 = vmatprep.subr.mxu0 0.0
        %3509 = vmatpush1.msra.mxu0 0.0
        %3510 = vmatprep.subr.mxu0 0.0
        %3511 = vmatpush1.msra.mxu0 0.0
        %3512 = vmatprep.subr.mxu0 0.0
        %3513 = vmatpush1.msra.mxu0 0.0
        %3514 = vmatprep.subr.mxu0 0.0
        %3515 = vmatpush1.msra.mxu0 0.0
        %3516 = vmatprep.subr.mxu0 0.0
        %3517 = vmatpush1.msra.mxu0 0.0
        %3518 = vmatprep.subr.mxu0 0.0
        %3519 = vmatpush1.msra.mxu0 0.0
        %3520 = vmatprep.subr.mxu0 0.0
        %3521 = vmatpush1.msra.mxu0 0.0
        %3522 = vmatprep.subr.mxu0 0.0
        %3523 = vmatpush1.msra.mxu0 0.0
        %3524 = vmatprep.subr.mxu0 0.0
        %3525 = vmatpush1.msra.mxu0 0.0
        %3526 = vmatprep.subr.mxu0 0.0
        %3527 = vmatpush1.msra.mxu0 0.0
        %3528 = vmatprep.subr.mxu0 0.0
        %3529 = vmatpush1.msra.mxu0 0.0
        %3530 = vmatprep.subr.mxu0 0.0
        %3531 = vmatpush1.msra.mxu0 0.0
        %3532 = vmatprep.subr.mxu0 0.0
        %3533 = vmatpush1.msra.mxu0 0.0
        %3534 = vmatprep.subr.mxu0 0.0
        %3535 = vmatpush1.msra.mxu0 0.0
        %3536 = vmatprep.subr.mxu0 0.0
        %3537 = vmatpush1.msra.mxu0 0.0
        %3538 = vmatprep.subr.mxu0 0.0
        %3539 = vmatpush1.msra.mxu0 0.0
        %3540 = vmatprep.subr.mxu0 0.0
        %3541 = vmatpush1.msra.mxu0 0.0
        %3542 = vmatprep.subr.mxu0 0.0
        %3543 = vmatpush1.msra.mxu0 0.0
        %3544 = vmatprep.subr.mxu0 0.0
        %3545 = vmatpush1.msra.mxu0 0.0
        %3546 = vmatprep.subr.mxu0 0.0
        %3547 = vmatpush1.msra.mxu0 0.0
        %3548 = vmatprep.subr.mxu0 0.0
        %3549 = vmatpush1.msra.mxu0 0.0
        %3550 = vmatprep.subr.mxu0 0.0
        %3551 = vmatpush1.msra.mxu0 0.0
        %3552 = vmatprep.subr.mxu0 0.0
        %3553 = vmatpush1.msra.mxu0 0.0
        %3554 = vmatprep.subr.mxu0 0.0
        %3555 = vmatpush1.msra.mxu0 0.0
        %3556 = vmatprep.subr.mxu0 0.0
        %3557 = vmatpush1.msra.mxu0 0.0
        %3558 = vmatprep.subr.mxu0 0.0
        %3559 = vmatpush1.msra.mxu0 0.0
        %3560 = vmatprep.subr.mxu0 0.0
        %3561 = vmatpush1.msra.mxu0 0.0
        %3562 = vmatprep.mubr.f32.mxu0 0.0
        %3563 = vmatmul.mubr.f32.gmra.mrb[0].mxu0 %v3419
        %v3564 = vpop.f32.mrb[0].mxu0
        %v3565 = vadd.f32 %v3415, %v3564
        %v3566 = vpop.f32.mrb[0].mxu0
        %3567 = vdwg.mxu0
        %v3568 = vld [vmem:[#allocation4] sm:$0xff]
        %v3569 = vld [vmem:[#allocation4 + $0x8] sm:$0xf]
        %s3570 = scalar_lea.vmem %s9, 8
        %v3571 = vld [vmem:[%s3570] sm:$0xf]
        %v3574 = vcombine.high %v3568, %v3568
        %3575 = vrot.lane.b32.xlu0 %v3568, 126
        %v3576 = vpop.permute.xlu0 %3575
        %3577 = vrot.lane.b32.xlu0 %v3574, 126
        %v3578 = vpop.permute.xlu0 %3577
        %3579 = vrot.lane.b32.xlu0 %v3569, 126
        %v3580 = vpop.permute.xlu0 %3579
        %v3581 = vsel %vm2067, %v3576, %v3578
        %v3582 = vsel %vm2067, %v3578, %v3580
        %v3584 = vsel %vm3266, %v3571, 0
        %v3586 = vsel %vm3270, %v3581, 0
        %v3588 = vsel %vm3270, %v3582, 0
        %v3590 = vsel %vm3270, %v3580, 0
        %3592 = vmatprep.subr.mxu0 %v3588
        %3593 = vmatpush1.msra.mxu0 %v3586
        %3594 = vmatprep.subr.mxu0 0.0
        %3595 = vmatpush1.msra.mxu0 0.0
        %3596 = vmatprep.subr.mxu0 0.0
        %3597 = vmatpush1.msra.mxu0 0.0
        %3598 = vmatprep.subr.mxu0 0.0
        %3599 = vmatpush1.msra.mxu0 0.0
        %3600 = vmatprep.subr.mxu0 0.0
        %3601 = vmatpush1.msra.mxu0 0.0
        %3602 = vmatprep.subr.mxu0 0.0
        %3603 = vmatpush1.msra.mxu0 0.0
        %3604 = vmatprep.subr.mxu0 0.0
        %3605 = vmatpush1.msra.mxu0 0.0
        %3606 = vmatprep.subr.mxu0 0.0
        %3607 = vmatpush1.msra.mxu0 0.0
        %3608 = vmatprep.subr.mxu0 0.0
        %3609 = vmatpush1.msra.mxu0 0.0
        %3610 = vmatprep.subr.mxu0 0.0
        %3611 = vmatpush1.msra.mxu0 0.0
        %3612 = vmatprep.subr.mxu0 0.0
        %3613 = vmatpush1.msra.mxu0 0.0
        %3614 = vmatprep.subr.mxu0 0.0
        %3615 = vmatpush1.msra.mxu0 0.0
        %3616 = vmatprep.subr.mxu0 0.0
        %3617 = vmatpush1.msra.mxu0 0.0
        %3618 = vmatprep.subr.mxu0 0.0
        %3619 = vmatpush1.msra.mxu0 0.0
        %3620 = vmatprep.subr.mxu0 0.0
        %3621 = vmatpush1.msra.mxu0 0.0
        %3622 = vmatprep.subr.mxu0 0.0
        %3623 = vmatpush1.msra.mxu0 0.0
        %3624 = vmatprep.subr.mxu0 0.0
        %3625 = vmatpush1.msra.mxu0 0.0
        %3626 = vmatprep.subr.mxu0 0.0
        %3627 = vmatpush1.msra.mxu0 0.0
        %3628 = vmatprep.subr.mxu0 0.0
        %3629 = vmatpush1.msra.mxu0 0.0
        %3630 = vmatprep.subr.mxu0 0.0
        %3631 = vmatpush1.msra.mxu0 0.0
        %3632 = vmatprep.subr.mxu0 0.0
        %3633 = vmatpush1.msra.mxu0 0.0
        %3634 = vmatprep.subr.mxu0 0.0
        %3635 = vmatpush1.msra.mxu0 0.0
        %3636 = vmatprep.subr.mxu0 0.0
        %3637 = vmatpush1.msra.mxu0 0.0
        %3638 = vmatprep.subr.mxu0 0.0
        %3639 = vmatpush1.msra.mxu0 0.0
        %3640 = vmatprep.subr.mxu0 0.0
        %3641 = vmatpush1.msra.mxu0 0.0
        %3642 = vmatprep.subr.mxu0 0.0
        %3643 = vmatpush1.msra.mxu0 0.0
        %3644 = vmatprep.subr.mxu0 0.0
        %3645 = vmatpush1.msra.mxu0 0.0
        %3646 = vmatprep.subr.mxu0 0.0
        %3647 = vmatpush1.msra.mxu0 0.0
        %3648 = vmatprep.subr.mxu0 0.0
        %3649 = vmatpush1.msra.mxu0 0.0
        %3650 = vmatprep.subr.mxu0 0.0
        %3651 = vmatpush1.msra.mxu0 0.0
        %3652 = vmatprep.subr.mxu0 0.0
        %3653 = vmatpush1.msra.mxu0 0.0
        %3654 = vmatprep.subr.mxu0 0.0
        %3655 = vmatpush1.msra.mxu0 0.0
        %3656 = vmatprep.mubr.f32.mxu0 0.0
        %3657 = vmatmul.mubr.f32.gmra.mrb[0].mxu0 %v3584
        %v3658 = vpop.f32.mrb[0].mxu0
        %v3659 = vadd.f32 0.0, %v3658
        %v3660 = vpop.f32.mrb[0].mxu0
        %v3661 = vadd.f32 0.0, %v3660
        %3662 = vdwg.mxu0
        %3663 = vmatprep.subr.mxu0 0.0
        %3664 = vmatpush1.msra.mxu0 %v3590
        %3665 = vmatprep.subr.mxu0 0.0
        %3666 = vmatpush1.msra.mxu0 0.0
        %3667 = vmatprep.subr.mxu0 0.0
        %3668 = vmatpush1.msra.mxu0 0.0
        %3669 = vmatprep.subr.mxu0 0.0
        %3670 = vmatpush1.msra.mxu0 0.0
        %3671 = vmatprep.subr.mxu0 0.0
        %3672 = vmatpush1.msra.mxu0 0.0
        %3673 = vmatprep.subr.mxu0 0.0
        %3674 = vmatpush1.msra.mxu0 0.0
        %3675 = vmatprep.subr.mxu0 0.0
        %3676 = vmatpush1.msra.mxu0 0.0
        %3677 = vmatprep.subr.mxu0 0.0
        %3678 = vmatpush1.msra.mxu0 0.0
        %3679 = vmatprep.subr.mxu0 0.0
        %3680 = vmatpush1.msra.mxu0 0.0
        %3681 = vmatprep.subr.mxu0 0.0
        %3682 = vmatpush1.msra.mxu0 0.0
        %3683 = vmatprep.subr.mxu0 0.0
        %3684 = vmatpush1.msra.mxu0 0.0
        %3685 = vmatprep.subr.mxu0 0.0
        %3686 = vmatpush1.msra.mxu0 0.0
        %3687 = vmatprep.subr.mxu0 0.0
        %3688 = vmatpush1.msra.mxu0 0.0
        %3689 = vmatprep.subr.mxu0 0.0
        %3690 = vmatpush1.msra.mxu0 0.0
        %3691 = vmatprep.subr.mxu0 0.0
        %3692 = vmatpush1.msra.mxu0 0.0
        %3693 = vmatprep.subr.mxu0 0.0
        %3694 = vmatpush1.msra.mxu0 0.0
        %3695 = vmatprep.subr.mxu0 0.0
        %3696 = vmatpush1.msra.mxu0 0.0
        %3697 = vmatprep.subr.mxu0 0.0
        %3698 = vmatpush1.msra.mxu0 0.0
        %3699 = vmatprep.subr.mxu0 0.0
        %3700 = vmatpush1.msra.mxu0 0.0
        %3701 = vmatprep.subr.mxu0 0.0
        %3702 = vmatpush1.msra.mxu0 0.0
        %3703 = vmatprep.subr.mxu0 0.0
        %3704 = vmatpush1.msra.mxu0 0.0
        %3705 = vmatprep.subr.mxu0 0.0
        %3706 = vmatpush1.msra.mxu0 0.0
        %3707 = vmatprep.subr.mxu0 0.0
        %3708 = vmatpush1.msra.mxu0 0.0
        %3709 = vmatprep.subr.mxu0 0.0
        %3710 = vmatpush1.msra.mxu0 0.0
        %3711 = vmatprep.subr.mxu0 0.0
        %3712 = vmatpush1.msra.mxu0 0.0
        %3713 = vmatprep.subr.mxu0 0.0
        %3714 = vmatpush1.msra.mxu0 0.0
        %3715 = vmatprep.subr.mxu0 0.0
        %3716 = vmatpush1.msra.mxu0 0.0
        %3717 = vmatprep.subr.mxu0 0.0
        %3718 = vmatpush1.msra.mxu0 0.0
        %3719 = vmatprep.subr.mxu0 0.0
        %3720 = vmatpush1.msra.mxu0 0.0
        %3721 = vmatprep.subr.mxu0 0.0
        %3722 = vmatpush1.msra.mxu0 0.0
        %3723 = vmatprep.subr.mxu0 0.0
        %3724 = vmatpush1.msra.mxu0 0.0
        %3725 = vmatprep.subr.mxu0 0.0
        %3726 = vmatpush1.msra.mxu0 0.0
        %3727 = vmatprep.mubr.f32.mxu0 0.0
        %3728 = vmatmul.mubr.f32.gmra.mrb[0].mxu0 %v3584
        %v3729 = vpop.f32.mrb[0].mxu0
        %v3730 = vadd.f32 0.0, %v3729
        %v3731 = vpop.f32.mrb[0].mxu0
        %3732 = vdwg.mxu0
        %v3733 = vadd.f32 %v3494, %v3659
        %v3734 = vadd.f32 %v3496, %v3661
        %v3735 = vadd.f32 %v3565, %v3730
        %v3736 = vld [vmem:[#allocation4] sm:$0xff]
        %v3737 = vld [vmem:[#allocation4 + $0x8] sm:$0xf]
        %s3738 = scalar_lea.vmem %s9, 12
        %v3739 = vld [vmem:[%s3738] sm:$0xf]
        %v3742 = vcombine.high %v3736, %v3736
        %3743 = vrot.lane.b32.xlu0 %v3736, 110
        %v3744 = vpop.permute.xlu0 %3743
        %3745 = vrot.lane.b32.xlu0 %v3742, 110
        %v3746 = vpop.permute.xlu0 %3745
        %3747 = vrot.lane.b32.xlu0 %v3737, 110
        %v3748 = vpop.permute.xlu0 %3747
        %v3749 = vsel %vm2228, %v3744, %v3746
        %v3750 = vsel %vm2228, %v3746, %v3748
        %v3752 = vsel %vm3266, %v3739, 0
        %v3754 = vsel %vm3270, %v3749, 0
        %v3756 = vsel %vm3270, %v3750, 0
        %v3758 = vsel %vm3270, %v3748, 0
        %3760 = vmatprep.subr.mxu0 %v3756
        %3761 = vmatpush1.msra.mxu0 %v3754
        %3762 = vmatprep.subr.mxu0 0.0
        %3763 = vmatpush1.msra.mxu0 0.0
        %3764 = vmatprep.subr.mxu0 0.0
        %3765 = vmatpush1.msra.mxu0 0.0
        %3766 = vmatprep.subr.mxu0 0.0
        %3767 = vmatpush1.msra.mxu0 0.0
        %3768 = vmatprep.subr.mxu0 0.0
        %3769 = vmatpush1.msra.mxu0 0.0
        %3770 = vmatprep.subr.mxu0 0.0
        %3771 = vmatpush1.msra.mxu0 0.0
        %3772 = vmatprep.subr.mxu0 0.0
        %3773 = vmatpush1.msra.mxu0 0.0
        %3774 = vmatprep.subr.mxu0 0.0
        %3775 = vmatpush1.msra.mxu0 0.0
        %3776 = vmatprep.subr.mxu0 0.0
        %3777 = vmatpush1.msra.mxu0 0.0
        %3778 = vmatprep.subr.mxu0 0.0
        %3779 = vmatpush1.msra.mxu0 0.0
        %3780 = vmatprep.subr.mxu0 0.0
        %3781 = vmatpush1.msra.mxu0 0.0
        %3782 = vmatprep.subr.mxu0 0.0
        %3783 = vmatpush1.msra.mxu0 0.0
        %3784 = vmatprep.subr.mxu0 0.0
        %3785 = vmatpush1.msra.mxu0 0.0
        %3786 = vmatprep.subr.mxu0 0.0
        %3787 = vmatpush1.msra.mxu0 0.0
        %3788 = vmatprep.subr.mxu0 0.0
        %3789 = vmatpush1.msra.mxu0 0.0
        %3790 = vmatprep.subr.mxu0 0.0
        %3791 = vmatpush1.msra.mxu0 0.0
        %3792 = vmatprep.subr.mxu0 0.0
        %3793 = vmatpush1.msra.mxu0 0.0
        %3794 = vmatprep.subr.mxu0 0.0
        %3795 = vmatpush1.msra.mxu0 0.0
        %3796 = vmatprep.subr.mxu0 0.0
        %3797 = vmatpush1.msra.mxu0 0.0
        %3798 = vmatprep.subr.mxu0 0.0
        %3799 = vmatpush1.msra.mxu0 0.0
        %3800 = vmatprep.subr.mxu0 0.0
        %3801 = vmatpush1.msra.mxu0 0.0
        %3802 = vmatprep.subr.mxu0 0.0
        %3803 = vmatpush1.msra.mxu0 0.0
        %3804 = vmatprep.subr.mxu0 0.0
        %3805 = vmatpush1.msra.mxu0 0.0
        %3806 = vmatprep.subr.mxu0 0.0
        %3807 = vmatpush1.msra.mxu0 0.0
        %3808 = vmatprep.subr.mxu0 0.0
        %3809 = vmatpush1.msra.mxu0 0.0
        %3810 = vmatprep.subr.mxu0 0.0
        %3811 = vmatpush1.msra.mxu0 0.0
        %3812 = vmatprep.subr.mxu0 0.0
        %3813 = vmatpush1.msra.mxu0 0.0
        %3814 = vmatprep.subr.mxu0 0.0
        %3815 = vmatpush1.msra.mxu0 0.0
        %3816 = vmatprep.subr.mxu0 0.0
        %3817 = vmatpush1.msra.mxu0 0.0
        %3818 = vmatprep.subr.mxu0 0.0
        %3819 = vmatpush1.msra.mxu0 0.0
        %3820 = vmatprep.subr.mxu0 0.0
        %3821 = vmatpush1.msra.mxu0 0.0
        %3822 = vmatprep.subr.mxu0 0.0
        %3823 = vmatpush1.msra.mxu0 0.0
        %3824 = vmatprep.mubr.f32.mxu0 0.0
        %3825 = vmatmul.mubr.f32.gmra.mrb[0].mxu0 %v3752
        %v3826 = vpop.f32.mrb[0].mxu0
        %v3827 = vadd.f32 0.0, %v3826
        %v3828 = vpop.f32.mrb[0].mxu0
        %v3829 = vadd.f32 0.0, %v3828
        %3830 = vdwg.mxu0
        %3831 = vmatprep.subr.mxu0 0.0
        %3832 = vmatpush1.msra.mxu0 %v3758
        %3833 = vmatprep.subr.mxu0 0.0
        %3834 = vmatpush1.msra.mxu0 0.0
        %3835 = vmatprep.subr.mxu0 0.0
        %3836 = vmatpush1.msra.mxu0 0.0
        %3837 = vmatprep.subr.mxu0 0.0
        %3838 = vmatpush1.msra.mxu0 0.0
        %3839 = vmatprep.subr.mxu0 0.0
        %3840 = vmatpush1.msra.mxu0 0.0
        %3841 = vmatprep.subr.mxu0 0.0
        %3842 = vmatpush1.msra.mxu0 0.0
        %3843 = vmatprep.subr.mxu0 0.0
        %3844 = vmatpush1.msra.mxu0 0.0
        %3845 = vmatprep.subr.mxu0 0.0
        %3846 = vmatpush1.msra.mxu0 0.0
        %3847 = vmatprep.subr.mxu0 0.0
        %3848 = vmatpush1.msra.mxu0 0.0
        %3849 = vmatprep.subr.mxu0 0.0
        %3850 = vmatpush1.msra.mxu0 0.0
        %3851 = vmatprep.subr.mxu0 0.0
        %3852 = vmatpush1.msra.mxu0 0.0
        %3853 = vmatprep.subr.mxu0 0.0
        %3854 = vmatpush1.msra.mxu0 0.0
        %3855 = vmatprep.subr.mxu0 0.0
        %3856 = vmatpush1.msra.mxu0 0.0
        %3857 = vmatprep.subr.mxu0 0.0
        %3858 = vmatpush1.msra.mxu0 0.0
        %3859 = vmatprep.subr.mxu0 0.0
        %3860 = vmatpush1.msra.mxu0 0.0
        %3861 = vmatprep.subr.mxu0 0.0
        %3862 = vmatpush1.msra.mxu0 0.0
        %3863 = vmatprep.subr.mxu0 0.0
        %3864 = vmatpush1.msra.mxu0 0.0
        %3865 = vmatprep.subr.mxu0 0.0
        %3866 = vmatpush1.msra.mxu0 0.0
        %3867 = vmatprep.subr.mxu0 0.0
        %3868 = vmatpush1.msra.mxu0 0.0
        %3869 = vmatprep.subr.mxu0 0.0
        %3870 = vmatpush1.msra.mxu0 0.0
        %3871 = vmatprep.subr.mxu0 0.0
        %3872 = vmatpush1.msra.mxu0 0.0
        %3873 = vmatprep.subr.mxu0 0.0
        %3874 = vmatpush1.msra.mxu0 0.0
        %3875 = vmatprep.subr.mxu0 0.0
        %3876 = vmatpush1.msra.mxu0 0.0
        %3877 = vmatprep.subr.mxu0 0.0
        %3878 = vmatpush1.msra.mxu0 0.0
        %3879 = vmatprep.subr.mxu0 0.0
        %3880 = vmatpush1.msra.mxu0 0.0
        %3881 = vmatprep.subr.mxu0 0.0
        %3882 = vmatpush1.msra.mxu0 0.0
        %3883 = vmatprep.subr.mxu0 0.0
        %3884 = vmatpush1.msra.mxu0 0.0
        %3885 = vmatprep.subr.mxu0 0.0
        %3886 = vmatpush1.msra.mxu0 0.0
        %3887 = vmatprep.subr.mxu0 0.0
        %3888 = vmatpush1.msra.mxu0 0.0
        %3889 = vmatprep.subr.mxu0 0.0
        %3890 = vmatpush1.msra.mxu0 0.0
        %3891 = vmatprep.subr.mxu0 0.0
        %3892 = vmatpush1.msra.mxu0 0.0
        %3893 = vmatprep.subr.mxu0 0.0
        %3894 = vmatpush1.msra.mxu0 0.0
        %3895 = vmatprep.mubr.f32.mxu0 0.0
        %3896 = vmatmul.mubr.f32.gmra.mrb[0].mxu0 %v3752
        %v3897 = vpop.f32.mrb[0].mxu0
        %v3898 = vadd.f32 0.0, %v3897
        %v3899 = vpop.f32.mrb[0].mxu0
        %3900 = vdwg.mxu0
        %v3901 = vadd.f32 %v3733, %v3827
        %v3902 = vadd.f32 %v3734, %v3829
        %v3903 = vadd.f32 %v3735, %v3898
        %v3904 = vld [vmem:[#allocation4] sm:$0xff]
        %v3905 = vld [vmem:[#allocation4 + $0x8] sm:$0xf]
        %s3906 = scalar_lea.vmem %s9, 16
        %v3907 = vld [vmem:[%s3906] sm:$0xf]
        %v3910 = vcombine.high %v3904, %v3904
        %3911 = vrot.lane.b32.xlu0 %v3904, 109
        %v3912 = vpop.permute.xlu0 %3911
        %3913 = vrot.lane.b32.xlu0 %v3910, 109
        %v3914 = vpop.permute.xlu0 %3913
        %3915 = vrot.lane.b32.xlu0 %v3905, 109
        %v3916 = vpop.permute.xlu0 %3915
        %v3917 = vsel %vm2389, %v3912, %v3914
        %v3918 = vsel %vm2389, %v3914, %v3916
        %v3920 = vsel %vm3266, %v3907, 0
        %v3922 = vsel %vm3270, %v3917, 0
        %v3924 = vsel %vm3270, %v3918, 0
        %v3926 = vsel %vm3270, %v3916, 0
        %3928 = vmatprep.subr.mxu0 %v3924
        %3929 = vmatpush1.msra.mxu0 %v3922
        %3930 = vmatprep.subr.mxu0 0.0
        %3931 = vmatpush1.msra.mxu0 0.0
        %3932 = vmatprep.subr.mxu0 0.0
        %3933 = vmatpush1.msra.mxu0 0.0
        %3934 = vmatprep.subr.mxu0 0.0
        %3935 = vmatpush1.msra.mxu0 0.0
        %3936 = vmatprep.subr.mxu0 0.0
        %3937 = vmatpush1.msra.mxu0 0.0
        %3938 = vmatprep.subr.mxu0 0.0
        %3939 = vmatpush1.msra.mxu0 0.0
        %3940 = vmatprep.subr.mxu0 0.0
        %3941 = vmatpush1.msra.mxu0 0.0
        %3942 = vmatprep.subr.mxu0 0.0
        %3943 = vmatpush1.msra.mxu0 0.0
        %3944 = vmatprep.subr.mxu0 0.0
        %3945 = vmatpush1.msra.mxu0 0.0
        %3946 = vmatprep.subr.mxu0 0.0
        %3947 = vmatpush1.msra.mxu0 0.0
        %3948 = vmatprep.subr.mxu0 0.0
        %3949 = vmatpush1.msra.mxu0 0.0
        %3950 = vmatprep.subr.mxu0 0.0
        %3951 = vmatpush1.msra.mxu0 0.0
        %3952 = vmatprep.subr.mxu0 0.0
        %3953 = vmatpush1.msra.mxu0 0.0
        %3954 = vmatprep.subr.mxu0 0.0
        %3955 = vmatpush1.msra.mxu0 0.0
        %3956 = vmatprep.subr.mxu0 0.0
        %3957 = vmatpush1.msra.mxu0 0.0
        %3958 = vmatprep.subr.mxu0 0.0
        %3959 = vmatpush1.msra.mxu0 0.0
        %3960 = vmatprep.subr.mxu0 0.0
        %3961 = vmatpush1.msra.mxu0 0.0
        %3962 = vmatprep.subr.mxu0 0.0
        %3963 = vmatpush1.msra.mxu0 0.0
        %3964 = vmatprep.subr.mxu0 0.0
        %3965 = vmatpush1.msra.mxu0 0.0
        %3966 = vmatprep.subr.mxu0 0.0
        %3967 = vmatpush1.msra.mxu0 0.0
        %3968 = vmatprep.subr.mxu0 0.0
        %3969 = vmatpush1.msra.mxu0 0.0
        %3970 = vmatprep.subr.mxu0 0.0
        %3971 = vmatpush1.msra.mxu0 0.0
        %3972 = vmatprep.subr.mxu0 0.0
        %3973 = vmatpush1.msra.mxu0 0.0
        %3974 = vmatprep.subr.mxu0 0.0
        %3975 = vmatpush1.msra.mxu0 0.0
        %3976 = vmatprep.subr.mxu0 0.0
        %3977 = vmatpush1.msra.mxu0 0.0
        %3978 = vmatprep.subr.mxu0 0.0
        %3979 = vmatpush1.msra.mxu0 0.0
        %3980 = vmatprep.subr.mxu0 0.0
        %3981 = vmatpush1.msra.mxu0 0.0
        %3982 = vmatprep.subr.mxu0 0.0
        %3983 = vmatpush1.msra.mxu0 0.0
        %3984 = vmatprep.subr.mxu0 0.0
        %3985 = vmatpush1.msra.mxu0 0.0
        %3986 = vmatprep.subr.mxu0 0.0
        %3987 = vmatpush1.msra.mxu0 0.0
        %3988 = vmatprep.subr.mxu0 0.0
        %3989 = vmatpush1.msra.mxu0 0.0
        %3990 = vmatprep.subr.mxu0 0.0
        %3991 = vmatpush1.msra.mxu0 0.0
        %3992 = vmatprep.mubr.f32.mxu0 0.0
        %3993 = vmatmul.mubr.f32.gmra.mrb[0].mxu0 %v3920
        %v3994 = vpop.f32.mrb[0].mxu0
        %v3995 = vadd.f32 0.0, %v3994
        %v3996 = vpop.f32.mrb[0].mxu0
        %v3997 = vadd.f32 0.0, %v3996
        %3998 = vdwg.mxu0
        %3999 = vmatprep.subr.mxu0 0.0
        %4000 = vmatpush1.msra.mxu0 %v3926
        %4001 = vmatprep.subr.mxu0 0.0
        %4002 = vmatpush1.msra.mxu0 0.0
        %4003 = vmatprep.subr.mxu0 0.0
        %4004 = vmatpush1.msra.mxu0 0.0
        %4005 = vmatprep.subr.mxu0 0.0
        %4006 = vmatpush1.msra.mxu0 0.0
        %4007 = vmatprep.subr.mxu0 0.0
        %4008 = vmatpush1.msra.mxu0 0.0
        %4009 = vmatprep.subr.mxu0 0.0
        %4010 = vmatpush1.msra.mxu0 0.0
        %4011 = vmatprep.subr.mxu0 0.0
        %4012 = vmatpush1.msra.mxu0 0.0
        %4013 = vmatprep.subr.mxu0 0.0
        %4014 = vmatpush1.msra.mxu0 0.0
        %4015 = vmatprep.subr.mxu0 0.0
        %4016 = vmatpush1.msra.mxu0 0.0
        %4017 = vmatprep.subr.mxu0 0.0
        %4018 = vmatpush1.msra.mxu0 0.0
        %4019 = vmatprep.subr.mxu0 0.0
        %4020 = vmatpush1.msra.mxu0 0.0
        %4021 = vmatprep.subr.mxu0 0.0
        %4022 = vmatpush1.msra.mxu0 0.0
        %4023 = vmatprep.subr.mxu0 0.0
        %4024 = vmatpush1.msra.mxu0 0.0
        %4025 = vmatprep.subr.mxu0 0.0
        %4026 = vmatpush1.msra.mxu0 0.0
        %4027 = vmatprep.subr.mxu0 0.0
        %4028 = vmatpush1.msra.mxu0 0.0
        %4029 = vmatprep.subr.mxu0 0.0
        %4030 = vmatpush1.msra.mxu0 0.0
        %4031 = vmatprep.subr.mxu0 0.0
        %4032 = vmatpush1.msra.mxu0 0.0
        %4033 = vmatprep.subr.mxu0 0.0
        %4034 = vmatpush1.msra.mxu0 0.0
        %4035 = vmatprep.subr.mxu0 0.0
        %4036 = vmatpush1.msra.mxu0 0.0
        %4037 = vmatprep.subr.mxu0 0.0
        %4038 = vmatpush1.msra.mxu0 0.0
        %4039 = vmatprep.subr.mxu0 0.0
        %4040 = vmatpush1.msra.mxu0 0.0
        %4041 = vmatprep.subr.mxu0 0.0
        %4042 = vmatpush1.msra.mxu0 0.0
        %4043 = vmatprep.subr.mxu0 0.0
        %4044 = vmatpush1.msra.mxu0 0.0
        %4045 = vmatprep.subr.mxu0 0.0
        %4046 = vmatpush1.msra.mxu0 0.0
        %4047 = vmatprep.subr.mxu0 0.0
        %4048 = vmatpush1.msra.mxu0 0.0
        %4049 = vmatprep.subr.mxu0 0.0
        %4050 = vmatpush1.msra.mxu0 0.0
        %4051 = vmatprep.subr.mxu0 0.0
        %4052 = vmatpush1.msra.mxu0 0.0
        %4053 = vmatprep.subr.mxu0 0.0
        %4054 = vmatpush1.msra.mxu0 0.0
        %4055 = vmatprep.subr.mxu0 0.0
        %4056 = vmatpush1.msra.mxu0 0.0
        %4057 = vmatprep.subr.mxu0 0.0
        %4058 = vmatpush1.msra.mxu0 0.0
        %4059 = vmatprep.subr.mxu0 0.0
        %4060 = vmatpush1.msra.mxu0 0.0
        %4061 = vmatprep.subr.mxu0 0.0
        %4062 = vmatpush1.msra.mxu0 0.0
        %4063 = vmatprep.mubr.f32.mxu0 0.0
        %4064 = vmatmul.mubr.f32.gmra.mrb[0].mxu0 %v3920
        %v4065 = vpop.f32.mrb[0].mxu0
        %v4066 = vadd.f32 0.0, %v4065
        %v4067 = vpop.f32.mrb[0].mxu0
        %4068 = vdwg.mxu0
        %v4069 = vadd.f32 %v3901, %v3995
        %v4070 = vadd.f32 %v3902, %v3997
        %v4071 = vadd.f32 %v3903, %v4066
        %v4072 = vld [vmem:[#allocation4] sm:$0xff]
        %v4073 = vld [vmem:[#allocation4 + $0x8] sm:$0xf]
        %s4074 = scalar_lea.vmem %s9, 20
        %v4075 = vld [vmem:[%s4074] sm:$0xf]
        %v4078 = vcombine.high %v4072, %v4072
        %4079 = vrot.lane.b32.xlu0 %v4072, 108
        %v4080 = vpop.permute.xlu0 %4079
        %4081 = vrot.lane.b32.xlu0 %v4078, 108
        %v4082 = vpop.permute.xlu0 %4081
        %4083 = vrot.lane.b32.xlu0 %v4073, 108
        %v4084 = vpop.permute.xlu0 %4083
        %v4085 = vsel %vm2550, %v4080, %v4082
        %v4086 = vsel %vm2550, %v4082, %v4084
        %v4088 = vsel %vm3266, %v4075, 0
        %v4090 = vsel %vm3270, %v4085, 0
        %v4092 = vsel %vm3270, %v4086, 0
        %v4094 = vsel %vm3270, %v4084, 0
        %4096 = vmatprep.subr.mxu0 %v4092
        %4097 = vmatpush1.msra.mxu0 %v4090
        %4098 = vmatprep.subr.mxu0 0.0
        %4099 = vmatpush1.msra.mxu0 0.0
        %4100 = vmatprep.subr.mxu0 0.0
        %4101 = vmatpush1.msra.mxu0 0.0
        %4102 = vmatprep.subr.mxu0 0.0
        %4103 = vmatpush1.msra.mxu0 0.0
        %4104 = vmatprep.subr.mxu0 0.0
        %4105 = vmatpush1.msra.mxu0 0.0
        %4106 = vmatprep.subr.mxu0 0.0
        %4107 = vmatpush1.msra.mxu0 0.0
        %4108 = vmatprep.subr.mxu0 0.0
        %4109 = vmatpush1.msra.mxu0 0.0
        %4110 = vmatprep.subr.mxu0 0.0
        %4111 = vmatpush1.msra.mxu0 0.0
        %4112 = vmatprep.subr.mxu0 0.0
        %4113 = vmatpush1.msra.mxu0 0.0
        %4114 = vmatprep.subr.mxu0 0.0
        %4115 = vmatpush1.msra.mxu0 0.0
        %4116 = vmatprep.subr.mxu0 0.0
        %4117 = vmatpush1.msra.mxu0 0.0
        %4118 = vmatprep.subr.mxu0 0.0
        %4119 = vmatpush1.msra.mxu0 0.0
        %4120 = vmatprep.subr.mxu0 0.0
        %4121 = vmatpush1.msra.mxu0 0.0
        %4122 = vmatprep.subr.mxu0 0.0
        %4123 = vmatpush1.msra.mxu0 0.0
        %4124 = vmatprep.subr.mxu0 0.0
        %4125 = vmatpush1.msra.mxu0 0.0
        %4126 = vmatprep.subr.mxu0 0.0
        %4127 = vmatpush1.msra.mxu0 0.0
        %4128 = vmatprep.subr.mxu0 0.0
        %4129 = vmatpush1.msra.mxu0 0.0
        %4130 = vmatprep.subr.mxu0 0.0
        %4131 = vmatpush1.msra.mxu0 0.0
        %4132 = vmatprep.subr.mxu0 0.0
        %4133 = vmatpush1.msra.mxu0 0.0
        %4134 = vmatprep.subr.mxu0 0.0
        %4135 = vmatpush1.msra.mxu0 0.0
        %4136 = vmatprep.subr.mxu0 0.0
        %4137 = vmatpush1.msra.mxu0 0.0
        %4138 = vmatprep.subr.mxu0 0.0
        %4139 = vmatpush1.msra.mxu0 0.0
        %4140 = vmatprep.subr.mxu0 0.0
        %4141 = vmatpush1.msra.mxu0 0.0
        %4142 = vmatprep.subr.mxu0 0.0
        %4143 = vmatpush1.msra.mxu0 0.0
        %4144 = vmatprep.subr.mxu0 0.0
        %4145 = vmatpush1.msra.mxu0 0.0
        %4146 = vmatprep.subr.mxu0 0.0
        %4147 = vmatpush1.msra.mxu0 0.0
        %4148 = vmatprep.subr.mxu0 0.0
        %4149 = vmatpush1.msra.mxu0 0.0
        %4150 = vmatprep.subr.mxu0 0.0
        %4151 = vmatpush1.msra.mxu0 0.0
        %4152 = vmatprep.subr.mxu0 0.0
        %4153 = vmatpush1.msra.mxu0 0.0
        %4154 = vmatprep.subr.mxu0 0.0
        %4155 = vmatpush1.msra.mxu0 0.0
        %4156 = vmatprep.subr.mxu0 0.0
        %4157 = vmatpush1.msra.mxu0 0.0
        %4158 = vmatprep.subr.mxu0 0.0
        %4159 = vmatpush1.msra.mxu0 0.0
        %4160 = vmatprep.mubr.f32.mxu0 0.0
        %4161 = vmatmul.mubr.f32.gmra.mrb[0].mxu0 %v4088
        %v4162 = vpop.f32.mrb[0].mxu0
        %v4163 = vadd.f32 0.0, %v4162
        %v4164 = vpop.f32.mrb[0].mxu0
        %v4165 = vadd.f32 0.0, %v4164
        %4166 = vdwg.mxu0
        %4167 = vmatprep.subr.mxu0 0.0
        %4168 = vmatpush1.msra.mxu0 %v4094
        %4169 = vmatprep.subr.mxu0 0.0
        %4170 = vmatpush1.msra.mxu0 0.0
        %4171 = vmatprep.subr.mxu0 0.0
        %4172 = vmatpush1.msra.mxu0 0.0
        %4173 = vmatprep.subr.mxu0 0.0
        %4174 = vmatpush1.msra.mxu0 0.0
        %4175 = vmatprep.subr.mxu0 0.0
        %4176 = vmatpush1.msra.mxu0 0.0
        %4177 = vmatprep.subr.mxu0 0.0
        %4178 = vmatpush1.msra.mxu0 0.0
        %4179 = vmatprep.subr.mxu0 0.0
        %4180 = vmatpush1.msra.mxu0 0.0
        %4181 = vmatprep.subr.mxu0 0.0
        %4182 = vmatpush1.msra.mxu0 0.0
        %4183 = vmatprep.subr.mxu0 0.0
        %4184 = vmatpush1.msra.mxu0 0.0
        %4185 = vmatprep.subr.mxu0 0.0
        %4186 = vmatpush1.msra.mxu0 0.0
        %4187 = vmatprep.subr.mxu0 0.0
        %4188 = vmatpush1.msra.mxu0 0.0
        %4189 = vmatprep.subr.mxu0 0.0
        %4190 = vmatpush1.msra.mxu0 0.0
        %4191 = vmatprep.subr.mxu0 0.0
        %4192 = vmatpush1.msra.mxu0 0.0
        %4193 = vmatprep.subr.mxu0 0.0
        %4194 = vmatpush1.msra.mxu0 0.0
        %4195 = vmatprep.subr.mxu0 0.0
        %4196 = vmatpush1.msra.mxu0 0.0
        %4197 = vmatprep.subr.mxu0 0.0
        %4198 = vmatpush1.msra.mxu0 0.0
        %4199 = vmatprep.subr.mxu0 0.0
        %4200 = vmatpush1.msra.mxu0 0.0
        %4201 = vmatprep.subr.mxu0 0.0
        %4202 = vmatpush1.msra.mxu0 0.0
        %4203 = vmatprep.subr.mxu0 0.0
        %4204 = vmatpush1.msra.mxu0 0.0
        %4205 = vmatprep.subr.mxu0 0.0
        %4206 = vmatpush1.msra.mxu0 0.0
        %4207 = vmatprep.subr.mxu0 0.0
        %4208 = vmatpush1.msra.mxu0 0.0
        %4209 = vmatprep.subr.mxu0 0.0
        %4210 = vmatpush1.msra.mxu0 0.0
        %4211 = vmatprep.subr.mxu0 0.0
        %4212 = vmatpush1.msra.mxu0 0.0
        %4213 = vmatprep.subr.mxu0 0.0
        %4214 = vmatpush1.msra.mxu0 0.0
        %4215 = vmatprep.subr.mxu0 0.0
        %4216 = vmatpush1.msra.mxu0 0.0
        %4217 = vmatprep.subr.mxu0 0.0
        %4218 = vmatpush1.msra.mxu0 0.0
        %4219 = vmatprep.subr.mxu0 0.0
        %4220 = vmatpush1.msra.mxu0 0.0
        %4221 = vmatprep.subr.mxu0 0.0
        %4222 = vmatpush1.msra.mxu0 0.0
        %4223 = vmatprep.subr.mxu0 0.0
        %4224 = vmatpush1.msra.mxu0 0.0
        %4225 = vmatprep.subr.mxu0 0.0
        %4226 = vmatpush1.msra.mxu0 0.0
        %4227 = vmatprep.subr.mxu0 0.0
        %4228 = vmatpush1.msra.mxu0 0.0
        %4229 = vmatprep.subr.mxu0 0.0
        %4230 = vmatpush1.msra.mxu0 0.0
        %4231 = vmatprep.mubr.f32.mxu0 0.0
        %4232 = vmatmul.mubr.f32.gmra.mrb[0].mxu0 %v4088
        %v4233 = vpop.f32.mrb[0].mxu0
        %v4234 = vadd.f32 0.0, %v4233
        %v4235 = vpop.f32.mrb[0].mxu0
        %4236 = vdwg.mxu0
        %v4237 = vadd.f32 %v4069, %v4163
        %v4238 = vadd.f32 %v4070, %v4165
        %v4239 = vadd.f32 %v4071, %v4234
        %v4240 = vld [vmem:[#allocation4] sm:$0xff]
        %v4241 = vld [vmem:[#allocation4 + $0x8] sm:$0xf]
        %s4242 = scalar_lea.vmem %s9, 24
        %v4243 = vld [vmem:[%s4242] sm:$0xf]
        %v4246 = vcombine.high %v4240, %v4240
        %4247 = vrot.lane.b32.xlu0 %v4240, 92
        %v4248 = vpop.permute.xlu0 %4247
        %4249 = vrot.lane.b32.xlu0 %v4246, 92
        %v4250 = vpop.permute.xlu0 %4249
        %4251 = vrot.lane.b32.xlu0 %v4241, 92
        %v4252 = vpop.permute.xlu0 %4251
        %v4253 = vsel %vm2711, %v4248, %v4250
        %v4254 = vsel %vm2711, %v4250, %v4252
        %v4256 = vsel %vm3266, %v4243, 0
        %v4258 = vsel %vm3270, %v4253, 0
        %v4260 = vsel %vm3270, %v4254, 0
        %v4262 = vsel %vm3270, %v4252, 0
        %4264 = vmatprep.subr.mxu0 %v4260
        %4265 = vmatpush1.msra.mxu0 %v4258
        %4266 = vmatprep.subr.mxu0 0.0
        %4267 = vmatpush1.msra.mxu0 0.0
        %4268 = vmatprep.subr.mxu0 0.0
        %4269 = vmatpush1.msra.mxu0 0.0
        %4270 = vmatprep.subr.mxu0 0.0
        %4271 = vmatpush1.msra.mxu0 0.0
        %4272 = vmatprep.subr.mxu0 0.0
        %4273 = vmatpush1.msra.mxu0 0.0
        %4274 = vmatprep.subr.mxu0 0.0
        %4275 = vmatpush1.msra.mxu0 0.0
        %4276 = vmatprep.subr.mxu0 0.0
        %4277 = vmatpush1.msra.mxu0 0.0
        %4278 = vmatprep.subr.mxu0 0.0
        %4279 = vmatpush1.msra.mxu0 0.0
        %4280 = vmatprep.subr.mxu0 0.0
        %4281 = vmatpush1.msra.mxu0 0.0
        %4282 = vmatprep.subr.mxu0 0.0
        %4283 = vmatpush1.msra.mxu0 0.0
        %4284 = vmatprep.subr.mxu0 0.0
        %4285 = vmatpush1.msra.mxu0 0.0
        %4286 = vmatprep.subr.mxu0 0.0
        %4287 = vmatpush1.msra.mxu0 0.0
        %4288 = vmatprep.subr.mxu0 0.0
        %4289 = vmatpush1.msra.mxu0 0.0
        %4290 = vmatprep.subr.mxu0 0.0
        %4291 = vmatpush1.msra.mxu0 0.0
        %4292 = vmatprep.subr.mxu0 0.0
        %4293 = vmatpush1.msra.mxu0 0.0
        %4294 = vmatprep.subr.mxu0 0.0
        %4295 = vmatpush1.msra.mxu0 0.0
        %4296 = vmatprep.subr.mxu0 0.0
        %4297 = vmatpush1.msra.mxu0 0.0
        %4298 = vmatprep.subr.mxu0 0.0
        %4299 = vmatpush1.msra.mxu0 0.0
        %4300 = vmatprep.subr.mxu0 0.0
        %4301 = vmatpush1.msra.mxu0 0.0
        %4302 = vmatprep.subr.mxu0 0.0
        %4303 = vmatpush1.msra.mxu0 0.0
        %4304 = vmatprep.subr.mxu0 0.0
        %4305 = vmatpush1.msra.mxu0 0.0
        %4306 = vmatprep.subr.mxu0 0.0
        %4307 = vmatpush1.msra.mxu0 0.0
        %4308 = vmatprep.subr.mxu0 0.0
        %4309 = vmatpush1.msra.mxu0 0.0
        %4310 = vmatprep.subr.mxu0 0.0
        %4311 = vmatpush1.msra.mxu0 0.0
        %4312 = vmatprep.subr.mxu0 0.0
        %4313 = vmatpush1.msra.mxu0 0.0
        %4314 = vmatprep.subr.mxu0 0.0
        %4315 = vmatpush1.msra.mxu0 0.0
        %4316 = vmatprep.subr.mxu0 0.0
        %4317 = vmatpush1.msra.mxu0 0.0
        %4318 = vmatprep.subr.mxu0 0.0
        %4319 = vmatpush1.msra.mxu0 0.0
        %4320 = vmatprep.subr.mxu0 0.0
        %4321 = vmatpush1.msra.mxu0 0.0
        %4322 = vmatprep.subr.mxu0 0.0
        %4323 = vmatpush1.msra.mxu0 0.0
        %4324 = vmatprep.subr.mxu0 0.0
        %4325 = vmatpush1.msra.mxu0 0.0
        %4326 = vmatprep.subr.mxu0 0.0
        %4327 = vmatpush1.msra.mxu0 0.0
        %4328 = vmatprep.mubr.f32.mxu0 0.0
        %4329 = vmatmul.mubr.f32.gmra.mrb[0].mxu0 %v4256
        %v4330 = vpop.f32.mrb[0].mxu0
        %v4331 = vadd.f32 0.0, %v4330
        %v4332 = vpop.f32.mrb[0].mxu0
        %v4333 = vadd.f32 0.0, %v4332
        %4334 = vdwg.mxu0
        %4335 = vmatprep.subr.mxu0 0.0
        %4336 = vmatpush1.msra.mxu0 %v4262
        %4337 = vmatprep.subr.mxu0 0.0
        %4338 = vmatpush1.msra.mxu0 0.0
        %4339 = vmatprep.subr.mxu0 0.0
        %4340 = vmatpush1.msra.mxu0 0.0
        %4341 = vmatprep.subr.mxu0 0.0
        %4342 = vmatpush1.msra.mxu0 0.0
        %4343 = vmatprep.subr.mxu0 0.0
        %4344 = vmatpush1.msra.mxu0 0.0
        %4345 = vmatprep.subr.mxu0 0.0
        %4346 = vmatpush1.msra.mxu0 0.0
        %4347 = vmatprep.subr.mxu0 0.0
        %4348 = vmatpush1.msra.mxu0 0.0
        %4349 = vmatprep.subr.mxu0 0.0
        %4350 = vmatpush1.msra.mxu0 0.0
        %4351 = vmatprep.subr.mxu0 0.0
        %4352 = vmatpush1.msra.mxu0 0.0
        %4353 = vmatprep.subr.mxu0 0.0
        %4354 = vmatpush1.msra.mxu0 0.0
        %4355 = vmatprep.subr.mxu0 0.0
        %4356 = vmatpush1.msra.mxu0 0.0
        %4357 = vmatprep.subr.mxu0 0.0
        %4358 = vmatpush1.msra.mxu0 0.0
        %4359 = vmatprep.subr.mxu0 0.0
        %4360 = vmatpush1.msra.mxu0 0.0
        %4361 = vmatprep.subr.mxu0 0.0
        %4362 = vmatpush1.msra.mxu0 0.0
        %4363 = vmatprep.subr.mxu0 0.0
        %4364 = vmatpush1.msra.mxu0 0.0
        %4365 = vmatprep.subr.mxu0 0.0
        %4366 = vmatpush1.msra.mxu0 0.0
        %4367 = vmatprep.subr.mxu0 0.0
        %4368 = vmatpush1.msra.mxu0 0.0
        %4369 = vmatprep.subr.mxu0 0.0
        %4370 = vmatpush1.msra.mxu0 0.0
        %4371 = vmatprep.subr.mxu0 0.0
        %4372 = vmatpush1.msra.mxu0 0.0
        %4373 = vmatprep.subr.mxu0 0.0
        %4374 = vmatpush1.msra.mxu0 0.0
        %4375 = vmatprep.subr.mxu0 0.0
        %4376 = vmatpush1.msra.mxu0 0.0
        %4377 = vmatprep.subr.mxu0 0.0
        %4378 = vmatpush1.msra.mxu0 0.0
        %4379 = vmatprep.subr.mxu0 0.0
        %4380 = vmatpush1.msra.mxu0 0.0
        %4381 = vmatprep.subr.mxu0 0.0
        %4382 = vmatpush1.msra.mxu0 0.0
        %4383 = vmatprep.subr.mxu0 0.0
        %4384 = vmatpush1.msra.mxu0 0.0
        %4385 = vmatprep.subr.mxu0 0.0
        %4386 = vmatpush1.msra.mxu0 0.0
        %4387 = vmatprep.subr.mxu0 0.0
        %4388 = vmatpush1.msra.mxu0 0.0
        %4389 = vmatprep.subr.mxu0 0.0
        %4390 = vmatpush1.msra.mxu0 0.0
        %4391 = vmatprep.subr.mxu0 0.0
        %4392 = vmatpush1.msra.mxu0 0.0
        %4393 = vmatprep.subr.mxu0 0.0
        %4394 = vmatpush1.msra.mxu0 0.0
        %4395 = vmatprep.subr.mxu0 0.0
        %4396 = vmatpush1.msra.mxu0 0.0
        %4397 = vmatprep.subr.mxu0 0.0
        %4398 = vmatpush1.msra.mxu0 0.0
        %4399 = vmatprep.mubr.f32.mxu0 0.0
        %4400 = vmatmul.mubr.f32.gmra.mrb[0].mxu0 %v4256
        %v4401 = vpop.f32.mrb[0].mxu0
        %v4402 = vadd.f32 0.0, %v4401
        %v4403 = vpop.f32.mrb[0].mxu0
        %4404 = vdwg.mxu0
        %v4405 = vadd.f32 %v4237, %v4331
        %v4406 = vadd.f32 %v4238, %v4333
        %v4407 = vadd.f32 %v4239, %v4402
        %v4408 = vld [vmem:[#allocation4] sm:$0xff]
        %v4409 = vld [vmem:[#allocation4 + $0x8] sm:$0xf]
        %s4410 = scalar_lea.vmem %s9, 28
        %v4411 = vld [vmem:[%s4410] sm:$0xf]
        %v4414 = vcombine.high %v4408, %v4408
        %4415 = vrot.lane.b32.xlu0 %v4408, 91
        %v4416 = vpop.permute.xlu0 %4415
        %4417 = vrot.lane.b32.xlu0 %v4414, 91
        %v4418 = vpop.permute.xlu0 %4417
        %4419 = vrot.lane.b32.xlu0 %v4409, 91
        %v4420 = vpop.permute.xlu0 %4419
        %v4421 = vsel %vm2872, %v4416, %v4418
        %v4422 = vsel %vm2872, %v4418, %v4420
        %v4424 = vsel %vm3266, %v4411, 0
        %v4426 = vsel %vm3270, %v4421, 0
        %v4428 = vsel %vm3270, %v4422, 0
        %v4430 = vsel %vm3270, %v4420, 0
        %4432 = vmatprep.subr.mxu0 %v4428
        %4433 = vmatpush1.msra.mxu0 %v4426
        %4434 = vmatprep.subr.mxu0 0.0
        %4435 = vmatpush1.msra.mxu0 0.0
        %4436 = vmatprep.subr.mxu0 0.0
        %4437 = vmatpush1.msra.mxu0 0.0
        %4438 = vmatprep.subr.mxu0 0.0
        %4439 = vmatpush1.msra.mxu0 0.0
        %4440 = vmatprep.subr.mxu0 0.0
        %4441 = vmatpush1.msra.mxu0 0.0
        %4442 = vmatprep.subr.mxu0 0.0
        %4443 = vmatpush1.msra.mxu0 0.0
        %4444 = vmatprep.subr.mxu0 0.0
        %4445 = vmatpush1.msra.mxu0 0.0
        %4446 = vmatprep.subr.mxu0 0.0
        %4447 = vmatpush1.msra.mxu0 0.0
        %4448 = vmatprep.subr.mxu0 0.0
        %4449 = vmatpush1.msra.mxu0 0.0
        %4450 = vmatprep.subr.mxu0 0.0
        %4451 = vmatpush1.msra.mxu0 0.0
        %4452 = vmatprep.subr.mxu0 0.0
        %4453 = vmatpush1.msra.mxu0 0.0
        %4454 = vmatprep.subr.mxu0 0.0
        %4455 = vmatpush1.msra.mxu0 0.0
        %4456 = vmatprep.subr.mxu0 0.0
        %4457 = vmatpush1.msra.mxu0 0.0
        %4458 = vmatprep.subr.mxu0 0.0
        %4459 = vmatpush1.msra.mxu0 0.0
        %4460 = vmatprep.subr.mxu0 0.0
        %4461 = vmatpush1.msra.mxu0 0.0
        %4462 = vmatprep.subr.mxu0 0.0
        %4463 = vmatpush1.msra.mxu0 0.0
        %4464 = vmatprep.subr.mxu0 0.0
        %4465 = vmatpush1.msra.mxu0 0.0
        %4466 = vmatprep.subr.mxu0 0.0
        %4467 = vmatpush1.msra.mxu0 0.0
        %4468 = vmatprep.subr.mxu0 0.0
        %4469 = vmatpush1.msra.mxu0 0.0
        %4470 = vmatprep.subr.mxu0 0.0
        %4471 = vmatpush1.msra.mxu0 0.0
        %4472 = vmatprep.subr.mxu0 0.0
        %4473 = vmatpush1.msra.mxu0 0.0
        %4474 = vmatprep.subr.mxu0 0.0
        %4475 = vmatpush1.msra.mxu0 0.0
        %4476 = vmatprep.subr.mxu0 0.0
        %4477 = vmatpush1.msra.mxu0 0.0
        %4478 = vmatprep.subr.mxu0 0.0
        %4479 = vmatpush1.msra.mxu0 0.0
        %4480 = vmatprep.subr.mxu0 0.0
        %4481 = vmatpush1.msra.mxu0 0.0
        %4482 = vmatprep.subr.mxu0 0.0
        %4483 = vmatpush1.msra.mxu0 0.0
        %4484 = vmatprep.subr.mxu0 0.0
        %4485 = vmatpush1.msra.mxu0 0.0
        %4486 = vmatprep.subr.mxu0 0.0
        %4487 = vmatpush1.msra.mxu0 0.0
        %4488 = vmatprep.subr.mxu0 0.0
        %4489 = vmatpush1.msra.mxu0 0.0
        %4490 = vmatprep.subr.mxu0 0.0
        %4491 = vmatpush1.msra.mxu0 0.0
        %4492 = vmatprep.subr.mxu0 0.0
        %4493 = vmatpush1.msra.mxu0 0.0
        %4494 = vmatprep.subr.mxu0 0.0
        %4495 = vmatpush1.msra.mxu0 0.0
        %4496 = vmatprep.mubr.f32.mxu0 0.0
        %4497 = vmatmul.mubr.f32.gmra.mrb[0].mxu0 %v4424
        %v4498 = vpop.f32.mrb[0].mxu0
        %v4499 = vadd.f32 0.0, %v4498
        %v4500 = vpop.f32.mrb[0].mxu0
        %v4501 = vadd.f32 0.0, %v4500
        %4502 = vdwg.mxu0
        %4503 = vmatprep.subr.mxu0 0.0
        %4504 = vmatpush1.msra.mxu0 %v4430
        %4505 = vmatprep.subr.mxu0 0.0
        %4506 = vmatpush1.msra.mxu0 0.0
        %4507 = vmatprep.subr.mxu0 0.0
        %4508 = vmatpush1.msra.mxu0 0.0
        %4509 = vmatprep.subr.mxu0 0.0
        %4510 = vmatpush1.msra.mxu0 0.0
        %4511 = vmatprep.subr.mxu0 0.0
        %4512 = vmatpush1.msra.mxu0 0.0
        %4513 = vmatprep.subr.mxu0 0.0
        %4514 = vmatpush1.msra.mxu0 0.0
        %4515 = vmatprep.subr.mxu0 0.0
        %4516 = vmatpush1.msra.mxu0 0.0
        %4517 = vmatprep.subr.mxu0 0.0
        %4518 = vmatpush1.msra.mxu0 0.0
        %4519 = vmatprep.subr.mxu0 0.0
        %4520 = vmatpush1.msra.mxu0 0.0
        %4521 = vmatprep.subr.mxu0 0.0
        %4522 = vmatpush1.msra.mxu0 0.0
        %4523 = vmatprep.subr.mxu0 0.0
        %4524 = vmatpush1.msra.mxu0 0.0
        %4525 = vmatprep.subr.mxu0 0.0
        %4526 = vmatpush1.msra.mxu0 0.0
        %4527 = vmatprep.subr.mxu0 0.0
        %4528 = vmatpush1.msra.mxu0 0.0
        %4529 = vmatprep.subr.mxu0 0.0
        %4530 = vmatpush1.msra.mxu0 0.0
        %4531 = vmatprep.subr.mxu0 0.0
        %4532 = vmatpush1.msra.mxu0 0.0
        %4533 = vmatprep.subr.mxu0 0.0
        %4534 = vmatpush1.msra.mxu0 0.0
        %4535 = vmatprep.subr.mxu0 0.0
        %4536 = vmatpush1.msra.mxu0 0.0
        %4537 = vmatprep.subr.mxu0 0.0
        %4538 = vmatpush1.msra.mxu0 0.0
        %4539 = vmatprep.subr.mxu0 0.0
        %4540 = vmatpush1.msra.mxu0 0.0
        %4541 = vmatprep.subr.mxu0 0.0
        %4542 = vmatpush1.msra.mxu0 0.0
        %4543 = vmatprep.subr.mxu0 0.0
        %4544 = vmatpush1.msra.mxu0 0.0
        %4545 = vmatprep.subr.mxu0 0.0
        %4546 = vmatpush1.msra.mxu0 0.0
        %4547 = vmatprep.subr.mxu0 0.0
        %4548 = vmatpush1.msra.mxu0 0.0
        %4549 = vmatprep.subr.mxu0 0.0
        %4550 = vmatpush1.msra.mxu0 0.0
        %4551 = vmatprep.subr.mxu0 0.0
        %4552 = vmatpush1.msra.mxu0 0.0
        %4553 = vmatprep.subr.mxu0 0.0
        %4554 = vmatpush1.msra.mxu0 0.0
        %4555 = vmatprep.subr.mxu0 0.0
        %4556 = vmatpush1.msra.mxu0 0.0
        %4557 = vmatprep.subr.mxu0 0.0
        %4558 = vmatpush1.msra.mxu0 0.0
        %4559 = vmatprep.subr.mxu0 0.0
        %4560 = vmatpush1.msra.mxu0 0.0
        %4561 = vmatprep.subr.mxu0 0.0
        %4562 = vmatpush1.msra.mxu0 0.0
        %4563 = vmatprep.subr.mxu0 0.0
        %4564 = vmatpush1.msra.mxu0 0.0
        %4565 = vmatprep.subr.mxu0 0.0
        %4566 = vmatpush1.msra.mxu0 0.0
        %4567 = vmatprep.mubr.f32.mxu0 0.0
        %4568 = vmatmul.mubr.f32.gmra.mrb[0].mxu0 %v4424
        %v4569 = vpop.f32.mrb[0].mxu0
        %v4570 = vadd.f32 0.0, %v4569
        %v4571 = vpop.f32.mrb[0].mxu0
        %4572 = vdwg.mxu0
        %v4573 = vadd.f32 %v4405, %v4499
        %v4574 = vadd.f32 %v4406, %v4501
        %v4575 = vadd.f32 %v4407, %v4570
        %v4576 = vld [vmem:[#allocation4] sm:$0xff]
        %v4577 = vld [vmem:[#allocation4 + $0x8] sm:$0xf]
        %s4578 = scalar_lea.vmem %s9, 32
        %v4579 = vld [vmem:[%s4578] sm:$0xf]
        %v4582 = vcombine.high %v4576, %v4576
        %4583 = vrot.lane.b32.xlu0 %v4576, 90
        %v4584 = vpop.permute.xlu0 %4583
        %4585 = vrot.lane.b32.xlu0 %v4582, 90
        %v4586 = vpop.permute.xlu0 %4585
        %4587 = vrot.lane.b32.xlu0 %v4577, 90
        %v4588 = vpop.permute.xlu0 %4587
        %v4589 = vsel %vm3033, %v4584, %v4586
        %v4590 = vsel %vm3033, %v4586, %v4588
        %v4592 = vsel %vm3266, %v4579, 0
        %v4594 = vsel %vm3270, %v4589, 0
        %v4596 = vsel %vm3270, %v4590, 0
        %v4598 = vsel %vm3270, %v4588, 0
        %4600 = vmatprep.subr.mxu0 %v4596
        %4601 = vmatpush1.msra.mxu0 %v4594
        %4602 = vmatprep.subr.mxu0 0.0
        %4603 = vmatpush1.msra.mxu0 0.0
        %4604 = vmatprep.subr.mxu0 0.0
        %4605 = vmatpush1.msra.mxu0 0.0
        %4606 = vmatprep.subr.mxu0 0.0
        %4607 = vmatpush1.msra.mxu0 0.0
        %4608 = vmatprep.subr.mxu0 0.0
        %4609 = vmatpush1.msra.mxu0 0.0
        %4610 = vmatprep.subr.mxu0 0.0
        %4611 = vmatpush1.msra.mxu0 0.0
        %4612 = vmatprep.subr.mxu0 0.0
        %4613 = vmatpush1.msra.mxu0 0.0
        %4614 = vmatprep.subr.mxu0 0.0
        %4615 = vmatpush1.msra.mxu0 0.0
        %4616 = vmatprep.subr.mxu0 0.0
        %4617 = vmatpush1.msra.mxu0 0.0
        %4618 = vmatprep.subr.mxu0 0.0
        %4619 = vmatpush1.msra.mxu0 0.0
        %4620 = vmatprep.subr.mxu0 0.0
        %4621 = vmatpush1.msra.mxu0 0.0
        %4622 = vmatprep.subr.mxu0 0.0
        %4623 = vmatpush1.msra.mxu0 0.0
        %4624 = vmatprep.subr.mxu0 0.0
        %4625 = vmatpush1.msra.mxu0 0.0
        %4626 = vmatprep.subr.mxu0 0.0
        %4627 = vmatpush1.msra.mxu0 0.0
        %4628 = vmatprep.subr.mxu0 0.0
        %4629 = vmatpush1.msra.mxu0 0.0
        %4630 = vmatprep.subr.mxu0 0.0
        %4631 = vmatpush1.msra.mxu0 0.0
        %4632 = vmatprep.subr.mxu0 0.0
        %4633 = vmatpush1.msra.mxu0 0.0
        %4634 = vmatprep.subr.mxu0 0.0
        %4635 = vmatpush1.msra.mxu0 0.0
        %4636 = vmatprep.subr.mxu0 0.0
        %4637 = vmatpush1.msra.mxu0 0.0
        %4638 = vmatprep.subr.mxu0 0.0
        %4639 = vmatpush1.msra.mxu0 0.0
        %4640 = vmatprep.subr.mxu0 0.0
        %4641 = vmatpush1.msra.mxu0 0.0
        %4642 = vmatprep.subr.mxu0 0.0
        %4643 = vmatpush1.msra.mxu0 0.0
        %4644 = vmatprep.subr.mxu0 0.0
        %4645 = vmatpush1.msra.mxu0 0.0
        %4646 = vmatprep.subr.mxu0 0.0
        %4647 = vmatpush1.msra.mxu0 0.0
        %4648 = vmatprep.subr.mxu0 0.0
        %4649 = vmatpush1.msra.mxu0 0.0
        %4650 = vmatprep.subr.mxu0 0.0
        %4651 = vmatpush1.msra.mxu0 0.0
        %4652 = vmatprep.subr.mxu0 0.0
        %4653 = vmatpush1.msra.mxu0 0.0
        %4654 = vmatprep.subr.mxu0 0.0
        %4655 = vmatpush1.msra.mxu0 0.0
        %4656 = vmatprep.subr.mxu0 0.0
        %4657 = vmatpush1.msra.mxu0 0.0
        %4658 = vmatprep.subr.mxu0 0.0
        %4659 = vmatpush1.msra.mxu0 0.0
        %4660 = vmatprep.subr.mxu0 0.0
        %4661 = vmatpush1.msra.mxu0 0.0
        %4662 = vmatprep.subr.mxu0 0.0
        %4663 = vmatpush1.msra.mxu0 0.0
        %4664 = vmatprep.mubr.f32.mxu0 0.0
        %4665 = vmatmul.mubr.f32.gmra.mrb[0].mxu0 %v4592
        %v4666 = vpop.f32.mrb[0].mxu0
        %v4667 = vadd.f32 0.0, %v4666
        %v4668 = vpop.f32.mrb[0].mxu0
        %v4669 = vadd.f32 0.0, %v4668
        %4670 = vdwg.mxu0
        %4671 = vmatprep.subr.mxu0 0.0
        %4672 = vmatpush1.msra.mxu0 %v4598
        %4673 = vmatprep.subr.mxu0 0.0
        %4674 = vmatpush1.msra.mxu0 0.0
        %4675 = vmatprep.subr.mxu0 0.0
        %4676 = vmatpush1.msra.mxu0 0.0
        %4677 = vmatprep.subr.mxu0 0.0
        %4678 = vmatpush1.msra.mxu0 0.0
        %4679 = vmatprep.subr.mxu0 0.0
        %4680 = vmatpush1.msra.mxu0 0.0
        %4681 = vmatprep.subr.mxu0 0.0
        %4682 = vmatpush1.msra.mxu0 0.0
        %4683 = vmatprep.subr.mxu0 0.0
        %4684 = vmatpush1.msra.mxu0 0.0
        %4685 = vmatprep.subr.mxu0 0.0
        %4686 = vmatpush1.msra.mxu0 0.0
        %4687 = vmatprep.subr.mxu0 0.0
        %4688 = vmatpush1.msra.mxu0 0.0
        %4689 = vmatprep.subr.mxu0 0.0
        %4690 = vmatpush1.msra.mxu0 0.0
        %4691 = vmatprep.subr.mxu0 0.0
        %4692 = vmatpush1.msra.mxu0 0.0
        %4693 = vmatprep.subr.mxu0 0.0
        %4694 = vmatpush1.msra.mxu0 0.0
        %4695 = vmatprep.subr.mxu0 0.0
        %4696 = vmatpush1.msra.mxu0 0.0
        %4697 = vmatprep.subr.mxu0 0.0
        %4698 = vmatpush1.msra.mxu0 0.0
        %4699 = vmatprep.subr.mxu0 0.0
        %4700 = vmatpush1.msra.mxu0 0.0
        %4701 = vmatprep.subr.mxu0 0.0
        %4702 = vmatpush1.msra.mxu0 0.0
        %4703 = vmatprep.subr.mxu0 0.0
        %4704 = vmatpush1.msra.mxu0 0.0
        %4705 = vmatprep.subr.mxu0 0.0
        %4706 = vmatpush1.msra.mxu0 0.0
        %4707 = vmatprep.subr.mxu0 0.0
        %4708 = vmatpush1.msra.mxu0 0.0
        %4709 = vmatprep.subr.mxu0 0.0
        %4710 = vmatpush1.msra.mxu0 0.0
        %4711 = vmatprep.subr.mxu0 0.0
        %4712 = vmatpush1.msra.mxu0 0.0
        %4713 = vmatprep.subr.mxu0 0.0
        %4714 = vmatpush1.msra.mxu0 0.0
        %4715 = vmatprep.subr.mxu0 0.0
        %4716 = vmatpush1.msra.mxu0 0.0
        %4717 = vmatprep.subr.mxu0 0.0
        %4718 = vmatpush1.msra.mxu0 0.0
        %4719 = vmatprep.subr.mxu0 0.0
        %4720 = vmatpush1.msra.mxu0 0.0
        %4721 = vmatprep.subr.mxu0 0.0
        %4722 = vmatpush1.msra.mxu0 0.0
        %4723 = vmatprep.subr.mxu0 0.0
        %4724 = vmatpush1.msra.mxu0 0.0
        %4725 = vmatprep.subr.mxu0 0.0
        %4726 = vmatpush1.msra.mxu0 0.0
        %4727 = vmatprep.subr.mxu0 0.0
        %4728 = vmatpush1.msra.mxu0 0.0
        %4729 = vmatprep.subr.mxu0 0.0
        %4730 = vmatpush1.msra.mxu0 0.0
        %4731 = vmatprep.subr.mxu0 0.0
        %4732 = vmatpush1.msra.mxu0 0.0
        %4733 = vmatprep.subr.mxu0 0.0
        %4734 = vmatpush1.msra.mxu0 0.0
        %4735 = vmatprep.mubr.f32.mxu0 0.0
        %4736 = vmatmul.mubr.f32.gmra.mrb[0].mxu0 %v4592
        %v4737 = vpop.f32.mrb[0].mxu0
        %v4738 = vadd.f32 0.0, %v4737
        %v4739 = vpop.f32.mrb[0].mxu0
        %4740 = vdwg.mxu0
        %v4741 = vadd.f32 %v4573, %v4667
        %v4742 = vadd.f32 %v4574, %v4669
        %v4743 = vadd.f32 %v4575, %v4738
        %v4744 = vld [vmem:[%s10] sm:$0xf]
        %4746 = vset.pattern.permute.xlu0 0
        %4747 = vperm.xlu0 %4746, %v4744
        %v4748 = vpop.permute.xlu0 %4747
        %v4750 = vmul.f32 %v4741, %v4748
        %v4751 = vmul.f32 %v4742, %v4748
        %v4752 = vmul.f32 %v4743, %v4748
        %v4753 = vld [vmem:[%s11] sm:$0xf]
        %4755 = vset.pattern.permute.xlu0 0
        %4756 = vperm.xlu0 %4755, %v4753
        %v4757 = vpop.permute.xlu0 %4756
        %v4759 = vadd.f32 %v4750, %v4757
        %v4760 = vadd.f32 %v4751, %v4757
        %v4761 = vadd.f32 %v4752, %v4757
        %v4762 = vmax.f32 %v4759, 0.0
        %v4763 = vmax.f32 %v4760, 0.0
        %v4764 = vmax.f32 %v4761, 0.0
        %v4767 = vunpack.c.l.s4 1966171168
        %v4768 = vunpack.c.0.s8 %v4767
        %v4769 = vlaneseq
        %v4770 = vshrl.u32 %v4769, 7
        %v4771 = vsub.s32 %v4768, %v4770
        %v4772 = vrot.slane %v4762, %v4771
        %v4773 = vcombine.high %v4772, %v4772
        %v4775 = vunpack.c.l.s4 1966171168
        %v4776 = vunpack.c.0.s8 %v4775
        %v4777 = vlaneseq
        %v4778 = vshrl.u32 %v4777, 7
        %v4779 = vsub.s32 %v4776, %v4778
        %v4780 = vrot.slane %v4772, %v4779
        %v4782 = vunpack.c.l.s4 1966171168
        %v4783 = vunpack.c.0.s8 %v4782
        %v4784 = vlaneseq
        %v4785 = vshrl.u32 %v4784, 7
        %v4786 = vsub.s32 %v4783, %v4785
        %v4787 = vrot.slane %v4773, %v4786
        %v4788 = vcombine.high %v4780, %v4780
        %v4789 = vcombine.high %v4787, %v4787
        %v4790 = vlaneseq
        %v4791 = vshrl.u32 %v4790, 7
        %v4792 = vsub.s32 0, %v4791
        %v4793 = vrot.slane %v4780, %v4792
        %v4794 = vlaneseq
        %v4795 = vshrl.u32 %v4794, 7
        %v4796 = vsub.s32 0, %v4795
        %v4797 = vrot.slane %v4787, %v4796
        %v4798 = vlaneseq
        %v4799 = vshrl.u32 %v4798, 7
        %v4800 = vsub.s32 0, %v4799
        %v4801 = vrot.slane %v4788, %v4800
        %v4802 = vlaneseq
        %v4803 = vshrl.u32 %v4802, 7
        %v4804 = vsub.s32 0, %v4803
        %v4805 = vrot.slane %v4789, %v4804
        %4806 = vrot.lane.b32.xlu0 %v4793, 109
        %v4807 = vpop.permute.xlu0 %4806
        %4808 = vrot.lane.b32.xlu0 %v4797, 109
        %v4809 = vpop.permute.xlu0 %4808
        %4810 = vrot.lane.b32.xlu0 %v4801, 109
        %v4811 = vpop.permute.xlu0 %4810
        %4812 = vrot.lane.b32.xlu0 %v4805, 109
        %v4813 = vpop.permute.xlu0 %4812
        %vm4818 = vcmask 122880
        %4819 = vst.msk [vmem:[%s513] sm:$0x1] %vm4818, %v4807
        %4820 = vst.msk [vmem:[%s513 + $0x10] sm:$0x1] %vm4818, %v4809
        %4821 = vst.msk [vmem:[%s513 + $0x20] sm:$0x1] %vm4818, %v4811
        %4822 = vst.msk [vmem:[%s513 + $0x30] sm:$0x1] %vm4818, %v4813
        %4823 = vrot.lane.b32.xlu0 %v4793, 91
        %v4824 = vpop.permute.xlu0 %4823
        %4825 = vrot.lane.b32.xlu0 %v4797, 91
        %v4826 = vpop.permute.xlu0 %4825
        %4827 = vrot.lane.b32.xlu0 %v4801, 91
        %v4828 = vpop.permute.xlu0 %4827
        %4829 = vrot.lane.b32.xlu0 %v4805, 91
        %v4830 = vpop.permute.xlu0 %4829
        %4835 = vst.msk [vmem:[%s513 + $0x1] sm:$0x1] %vm4818, %v4824
        %4836 = vst.msk [vmem:[%s513 + $0x11] sm:$0x1] %vm4818, %v4826
        %4837 = vst.msk [vmem:[%s513 + $0x21] sm:$0x1] %vm4818, %v4828
        %4838 = vst.msk [vmem:[%s513 + $0x31] sm:$0x1] %vm4818, %v4830
        %4839 = vrot.lane.b32.xlu0 %v4793, 73
        %v4840 = vpop.permute.xlu0 %4839
        %4841 = vrot.lane.b32.xlu0 %v4797, 73
        %v4842 = vpop.permute.xlu0 %4841
        %4843 = vrot.lane.b32.xlu0 %v4801, 73
        %v4844 = vpop.permute.xlu0 %4843
        %4845 = vrot.lane.b32.xlu0 %v4805, 73
        %v4846 = vpop.permute.xlu0 %4845
        %4851 = vst.msk [vmem:[%s513 + $0x2] sm:$0x1] %vm4818, %v4840
        %4852 = vst.msk [vmem:[%s513 + $0x12] sm:$0x1] %vm4818, %v4842
        %4853 = vst.msk [vmem:[%s513 + $0x22] sm:$0x1] %vm4818, %v4844
        %4854 = vst.msk [vmem:[%s513 + $0x32] sm:$0x1] %vm4818, %v4846
        %4855 = vrot.lane.b32.xlu0 %v4793, 55
        %v4856 = vpop.permute.xlu0 %4855
        %4857 = vrot.lane.b32.xlu0 %v4797, 55
        %v4858 = vpop.permute.xlu0 %4857
        %4859 = vrot.lane.b32.xlu0 %v4801, 55
        %v4860 = vpop.permute.xlu0 %4859
        %4861 = vrot.lane.b32.xlu0 %v4805, 55
        %v4862 = vpop.permute.xlu0 %4861
        %4867 = vst.msk [vmem:[%s513 + $0x3] sm:$0x1] %vm4818, %v4856
        %4868 = vst.msk [vmem:[%s513 + $0x13] sm:$0x1] %vm4818, %v4858
        %4869 = vst.msk [vmem:[%s513 + $0x23] sm:$0x1] %vm4818, %v4860
        %4870 = vst.msk [vmem:[%s513 + $0x33] sm:$0x1] %vm4818, %v4862
        %4871 = vrot.lane.b32.xlu0 %v4793, 37
        %v4872 = vpop.permute.xlu0 %4871
        %4873 = vrot.lane.b32.xlu0 %v4797, 37
        %v4874 = vpop.permute.xlu0 %4873
        %4875 = vrot.lane.b32.xlu0 %v4801, 37
        %v4876 = vpop.permute.xlu0 %4875
        %4877 = vrot.lane.b32.xlu0 %v4805, 37
        %v4878 = vpop.permute.xlu0 %4877
        %4883 = vst.msk [vmem:[%s513 + $0x4] sm:$0x1] %vm4818, %v4872
        %4884 = vst.msk [vmem:[%s513 + $0x14] sm:$0x1] %vm4818, %v4874
        %4885 = vst.msk [vmem:[%s513 + $0x24] sm:$0x1] %vm4818, %v4876
        %4886 = vst.msk [vmem:[%s513 + $0x34] sm:$0x1] %vm4818, %v4878
        %4887 = vrot.lane.b32.xlu0 %v4793, 19
        %v4888 = vpop.permute.xlu0 %4887
        %4889 = vrot.lane.b32.xlu0 %v4797, 19
        %v4890 = vpop.permute.xlu0 %4889
        %4891 = vrot.lane.b32.xlu0 %v4801, 19
        %v4892 = vpop.permute.xlu0 %4891
        %4893 = vrot.lane.b32.xlu0 %v4805, 19
        %v4894 = vpop.permute.xlu0 %4893
        %4899 = vst.msk [vmem:[%s513 + $0x5] sm:$0x1] %vm4818, %v4888
        %4900 = vst.msk [vmem:[%s513 + $0x15] sm:$0x1] %vm4818, %v4890
        %4901 = vst.msk [vmem:[%s513 + $0x25] sm:$0x1] %vm4818, %v4892
        %4902 = vst.msk [vmem:[%s513 + $0x35] sm:$0x1] %vm4818, %v4894
        %v4904 = vcombine.low %v4762, %v4763
        %v4906 = vunpack.c.l.s4 1966171168
        %v4907 = vunpack.c.0.s8 %v4906
        %v4908 = vlaneseq
        %v4909 = vshrl.u32 %v4908, 7
        %v4910 = vsub.s32 %v4907, %v4909
        %v4911 = vrot.slane %v4904, %v4910
        %v4912 = vcombine.high %v4911, %v4911
        %v4914 = vunpack.c.l.s4 1966171168
        %v4915 = vunpack.c.0.s8 %v4914
        %v4916 = vlaneseq
        %v4917 = vshrl.u32 %v4916, 7
        %v4918 = vsub.s32 %v4915, %v4917
        %v4919 = vrot.slane %v4911, %v4918
        %v4921 = vunpack.c.l.s4 1966171168
        %v4922 = vunpack.c.0.s8 %v4921
        %v4923 = vlaneseq
        %v4924 = vshrl.u32 %v4923, 7
        %v4925 = vsub.s32 %v4922, %v4924
        %v4926 = vrot.slane %v4912, %v4925
        %v4927 = vcombine.high %v4919, %v4919
        %v4928 = vcombine.high %v4926, %v4926
        %v4929 = vlaneseq
        %v4930 = vshrl.u32 %v4929, 7
        %v4931 = vsub.s32 0, %v4930
        %v4932 = vrot.slane %v4919, %v4931
        %v4933 = vlaneseq
        %v4934 = vshrl.u32 %v4933, 7
        %v4935 = vsub.s32 1, %v4934
        %v4936 = vrot.slane %v4919, %v4935
        %v4937 = vlaneseq
        %v4938 = vshrl.u32 %v4937, 7
        %v4939 = vsub.s32 0, %v4938
        %v4940 = vrot.slane %v4926, %v4939
        %v4941 = vlaneseq
        %v4942 = vshrl.u32 %v4941, 7
        %v4943 = vsub.s32 1, %v4942
        %v4944 = vrot.slane %v4926, %v4943
        %v4945 = vlaneseq
        %v4946 = vshrl.u32 %v4945, 7
        %v4947 = vsub.s32 0, %v4946
        %v4948 = vrot.slane %v4927, %v4947
        %v4949 = vlaneseq
        %v4950 = vshrl.u32 %v4949, 7
        %v4951 = vsub.s32 1, %v4950
        %v4952 = vrot.slane %v4927, %v4951
        %v4953 = vlaneseq
        %v4954 = vshrl.u32 %v4953, 7
        %v4955 = vsub.s32 0, %v4954
        %v4956 = vrot.slane %v4928, %v4955
        %v4957 = vlaneseq
        %v4958 = vshrl.u32 %v4957, 7
        %v4959 = vsub.s32 1, %v4958
        %v4960 = vrot.slane %v4928, %v4959
        %4961 = vrot.lane.b32.xlu0 %v4932, 1
        %v4962 = vpop.permute.xlu0 %4961
        %4963 = vrot.lane.b32.xlu0 %v4936, 1
        %v4964 = vpop.permute.xlu0 %4963
        %4965 = vrot.lane.b32.xlu0 %v4940, 1
        %v4966 = vpop.permute.xlu0 %4965
        %4967 = vrot.lane.b32.xlu0 %v4944, 1
        %v4968 = vpop.permute.xlu0 %4967
        %4969 = vrot.lane.b32.xlu0 %v4948, 1
        %v4970 = vpop.permute.xlu0 %4969
        %4971 = vrot.lane.b32.xlu0 %v4952, 1
        %v4972 = vpop.permute.xlu0 %4971
        %4973 = vrot.lane.b32.xlu0 %v4956, 1
        %v4974 = vpop.permute.xlu0 %4973
        %4975 = vrot.lane.b32.xlu0 %v4960, 1
        %v4976 = vpop.permute.xlu0 %4975
        %vm4977 = vcmask 7168
        %v4978 = vsel %vm4977, %v4962, %v4964
        %v4979 = vsel %vm4977, %v4966, %v4968
        %v4980 = vsel %vm4977, %v4970, %v4972
        %v4981 = vsel %vm4977, %v4974, %v4976
        %4986 = vst.msk [vmem:[%s513 + $0x6] sm:$0x1] %vm4818, %v4978
        %4987 = vst.msk [vmem:[%s513 + $0x16] sm:$0x1] %vm4818, %v4979
        %4988 = vst.msk [vmem:[%s513 + $0x26] sm:$0x1] %vm4818, %v4980
        %4989 = vst.msk [vmem:[%s513 + $0x36] sm:$0x1] %vm4818, %v4981
        %v4991 = vunpack.c.l.s4 1966171168
        %v4992 = vunpack.c.0.s8 %v4991
        %v4993 = vlaneseq
        %v4994 = vshrl.u32 %v4993, 7
        %v4995 = vsub.s32 %v4992, %v4994
        %v4996 = vrot.slane %v4763, %v4995
        %v4997 = vcombine.high %v4996, %v4996
        %v4999 = vunpack.c.l.s4 1966171168
        %v5000 = vunpack.c.0.s8 %v4999
        %v5001 = vlaneseq
        %v5002 = vshrl.u32 %v5001, 7
        %v5003 = vsub.s32 %v5000, %v5002
        %v5004 = vrot.slane %v4996, %v5003
        %v5006 = vunpack.c.l.s4 1966171168
        %v5007 = vunpack.c.0.s8 %v5006
        %v5008 = vlaneseq
        %v5009 = vshrl.u32 %v5008, 7
        %v5010 = vsub.s32 %v5007, %v5009
        %v5011 = vrot.slane %v4997, %v5010
        %v5012 = vcombine.high %v5004, %v5004
        %v5013 = vcombine.high %v5011, %v5011
        %v5014 = vlaneseq
        %v5015 = vshrl.u32 %v5014, 7
        %v5016 = vsub.s32 0, %v5015
        %v5017 = vrot.slane %v5004, %v5016
        %v5018 = vlaneseq
        %v5019 = vshrl.u32 %v5018, 7
        %v5020 = vsub.s32 0, %v5019
        %v5021 = vrot.slane %v5011, %v5020
        %v5022 = vlaneseq
        %v5023 = vshrl.u32 %v5022, 7
        %v5024 = vsub.s32 0, %v5023
        %v5025 = vrot.slane %v5012, %v5024
        %v5026 = vlaneseq
        %v5027 = vshrl.u32 %v5026, 7
        %v5028 = vsub.s32 0, %v5027
        %v5029 = vrot.slane %v5013, %v5028
        %5030 = vrot.lane.b32.xlu0 %v5017, 111
        %v5031 = vpop.permute.xlu0 %5030
        %5032 = vrot.lane.b32.xlu0 %v5021, 111
        %v5033 = vpop.permute.xlu0 %5032
        %5034 = vrot.lane.b32.xlu0 %v5025, 111
        %v5035 = vpop.permute.xlu0 %5034
        %5036 = vrot.lane.b32.xlu0 %v5029, 111
        %v5037 = vpop.permute.xlu0 %5036
        %5042 = vst.msk [vmem:[%s513 + $0x7] sm:$0x1] %vm4818, %v5031
        %5043 = vst.msk [vmem:[%s513 + $0x17] sm:$0x1] %vm4818, %v5033
        %5044 = vst.msk [vmem:[%s513 + $0x27] sm:$0x1] %vm4818, %v5035
        %5045 = vst.msk [vmem:[%s513 + $0x37] sm:$0x1] %vm4818, %v5037
        %5046 = vrot.lane.b32.xlu0 %v5017, 93
        %v5047 = vpop.permute.xlu0 %5046
        %5048 = vrot.lane.b32.xlu0 %v5021, 93
        %v5049 = vpop.permute.xlu0 %5048
        %5050 = vrot.lane.b32.xlu0 %v5025, 93
        %v5051 = vpop.permute.xlu0 %5050
        %5052 = vrot.lane.b32.xlu0 %v5029, 93
        %v5053 = vpop.permute.xlu0 %5052
        %5058 = vst.msk [vmem:[%s513 + $0x8] sm:$0x1] %vm4818, %v5047
        %5059 = vst.msk [vmem:[%s513 + $0x18] sm:$0x1] %vm4818, %v5049
        %5060 = vst.msk [vmem:[%s513 + $0x28] sm:$0x1] %vm4818, %v5051
        %5061 = vst.msk [vmem:[%s513 + $0x38] sm:$0x1] %vm4818, %v5053
        %5062 = vrot.lane.b32.xlu0 %v5017, 75
        %v5063 = vpop.permute.xlu0 %5062
        %5064 = vrot.lane.b32.xlu0 %v5021, 75
        %v5065 = vpop.permute.xlu0 %5064
        %5066 = vrot.lane.b32.xlu0 %v5025, 75
        %v5067 = vpop.permute.xlu0 %5066
        %5068 = vrot.lane.b32.xlu0 %v5029, 75
        %v5069 = vpop.permute.xlu0 %5068
        %5074 = vst.msk [vmem:[%s513 + $0x9] sm:$0x1] %vm4818, %v5063
        %5075 = vst.msk [vmem:[%s513 + $0x19] sm:$0x1] %vm4818, %v5065
        %5076 = vst.msk [vmem:[%s513 + $0x29] sm:$0x1] %vm4818, %v5067
        %5077 = vst.msk [vmem:[%s513 + $0x39] sm:$0x1] %vm4818, %v5069
        %5078 = vrot.lane.b32.xlu0 %v5017, 57
        %v5079 = vpop.permute.xlu0 %5078
        %5080 = vrot.lane.b32.xlu0 %v5021, 57
        %v5081 = vpop.permute.xlu0 %5080
        %5082 = vrot.lane.b32.xlu0 %v5025, 57
        %v5083 = vpop.permute.xlu0 %5082
        %5084 = vrot.lane.b32.xlu0 %v5029, 57
        %v5085 = vpop.permute.xlu0 %5084
        %5090 = vst.msk [vmem:[%s513 + $0xa] sm:$0x1] %vm4818, %v5079
        %5091 = vst.msk [vmem:[%s513 + $0x1a] sm:$0x1] %vm4818, %v5081
        %5092 = vst.msk [vmem:[%s513 + $0x2a] sm:$0x1] %vm4818, %v5083
        %5093 = vst.msk [vmem:[%s513 + $0x3a] sm:$0x1] %vm4818, %v5085
        %5094 = vrot.lane.b32.xlu0 %v5017, 39
        %v5095 = vpop.permute.xlu0 %5094
        %5096 = vrot.lane.b32.xlu0 %v5021, 39
        %v5097 = vpop.permute.xlu0 %5096
        %5098 = vrot.lane.b32.xlu0 %v5025, 39
        %v5099 = vpop.permute.xlu0 %5098
        %5100 = vrot.lane.b32.xlu0 %v5029, 39
        %v5101 = vpop.permute.xlu0 %5100
        %5106 = vst.msk [vmem:[%s513 + $0xb] sm:$0x1] %vm4818, %v5095
        %5107 = vst.msk [vmem:[%s513 + $0x1b] sm:$0x1] %vm4818, %v5097
        %5108 = vst.msk [vmem:[%s513 + $0x2b] sm:$0x1] %vm4818, %v5099
        %5109 = vst.msk [vmem:[%s513 + $0x3b] sm:$0x1] %vm4818, %v5101
        %5110 = vrot.lane.b32.xlu0 %v5017, 21
        %v5111 = vpop.permute.xlu0 %5110
        %5112 = vrot.lane.b32.xlu0 %v5021, 21
        %v5113 = vpop.permute.xlu0 %5112
        %5114 = vrot.lane.b32.xlu0 %v5025, 21
        %v5115 = vpop.permute.xlu0 %5114
        %5116 = vrot.lane.b32.xlu0 %v5029, 21
        %v5117 = vpop.permute.xlu0 %5116
        %5122 = vst.msk [vmem:[%s513 + $0xc] sm:$0x1] %vm4818, %v5111
        %5123 = vst.msk [vmem:[%s513 + $0x1c] sm:$0x1] %vm4818, %v5113
        %5124 = vst.msk [vmem:[%s513 + $0x2c] sm:$0x1] %vm4818, %v5115
        %5125 = vst.msk [vmem:[%s513 + $0x3c] sm:$0x1] %vm4818, %v5117
        %v5127 = vcombine.low %v4763, %v4764
        %v5129 = vunpack.c.l.s4 1966171168
        %v5130 = vunpack.c.0.s8 %v5129
        %v5131 = vlaneseq
        %v5132 = vshrl.u32 %v5131, 7
        %v5133 = vsub.s32 %v5130, %v5132
        %v5134 = vrot.slane %v5127, %v5133
        %v5135 = vcombine.high %v5134, %v5134
        %v5137 = vunpack.c.l.s4 1966171168
        %v5138 = vunpack.c.0.s8 %v5137
        %v5139 = vlaneseq
        %v5140 = vshrl.u32 %v5139, 7
        %v5141 = vsub.s32 %v5138, %v5140
        %v5142 = vrot.slane %v5134, %v5141
        %v5144 = vunpack.c.l.s4 1966171168
        %v5145 = vunpack.c.0.s8 %v5144
        %v5146 = vlaneseq
        %v5147 = vshrl.u32 %v5146, 7
        %v5148 = vsub.s32 %v5145, %v5147
        %v5149 = vrot.slane %v5135, %v5148
        %v5150 = vcombine.high %v5142, %v5142
        %v5151 = vcombine.high %v5149, %v5149
        %v5152 = vlaneseq
        %v5153 = vshrl.u32 %v5152, 7
        %v5154 = vsub.s32 0, %v5153
        %v5155 = vrot.slane %v5142, %v5154
        %v5156 = vlaneseq
        %v5157 = vshrl.u32 %v5156, 7
        %v5158 = vsub.s32 1, %v5157
        %v5159 = vrot.slane %v5142, %v5158
        %v5160 = vlaneseq
        %v5161 = vshrl.u32 %v5160, 7
        %v5162 = vsub.s32 0, %v5161
        %v5163 = vrot.slane %v5149, %v5162
        %v5164 = vlaneseq
        %v5165 = vshrl.u32 %v5164, 7
        %v5166 = vsub.s32 1, %v5165
        %v5167 = vrot.slane %v5149, %v5166
        %v5168 = vlaneseq
        %v5169 = vshrl.u32 %v5168, 7
        %v5170 = vsub.s32 0, %v5169
        %v5171 = vrot.slane %v5150, %v5170
        %v5172 = vlaneseq
        %v5173 = vshrl.u32 %v5172, 7
        %v5174 = vsub.s32 1, %v5173
        %v5175 = vrot.slane %v5150, %v5174
        %v5176 = vlaneseq
        %v5177 = vshrl.u32 %v5176, 7
        %v5178 = vsub.s32 0, %v5177
        %v5179 = vrot.slane %v5151, %v5178
        %v5180 = vlaneseq
        %v5181 = vshrl.u32 %v5180, 7
        %v5182 = vsub.s32 1, %v5181
        %v5183 = vrot.slane %v5151, %v5182
        %5184 = vrot.lane.b32.xlu0 %v5155, 3
        %v5185 = vpop.permute.xlu0 %5184
        %5186 = vrot.lane.b32.xlu0 %v5159, 3
        %v5187 = vpop.permute.xlu0 %5186
        %5188 = vrot.lane.b32.xlu0 %v5163, 3
        %v5189 = vpop.permute.xlu0 %5188
        %5190 = vrot.lane.b32.xlu0 %v5167, 3
        %v5191 = vpop.permute.xlu0 %5190
        %5192 = vrot.lane.b32.xlu0 %v5171, 3
        %v5193 = vpop.permute.xlu0 %5192
        %5194 = vrot.lane.b32.xlu0 %v5175, 3
        %v5195 = vpop.permute.xlu0 %5194
        %5196 = vrot.lane.b32.xlu0 %v5179, 3
        %v5197 = vpop.permute.xlu0 %5196
        %5198 = vrot.lane.b32.xlu0 %v5183, 3
        %v5199 = vpop.permute.xlu0 %5198
        %vm5200 = vcmask 23552
        %v5201 = vsel %vm5200, %v5185, %v5187
        %v5202 = vsel %vm5200, %v5189, %v5191
        %v5203 = vsel %vm5200, %v5193, %v5195
        %v5204 = vsel %vm5200, %v5197, %v5199
        %5209 = vst.msk [vmem:[%s513 + $0xd] sm:$0x1] %vm4818, %v5201
        %5210 = vst.msk [vmem:[%s513 + $0x1d] sm:$0x1] %vm4818, %v5202
        %5211 = vst.msk [vmem:[%s513 + $0x2d] sm:$0x1] %vm4818, %v5203
        %5212 = vst.msk [vmem:[%s513 + $0x3d] sm:$0x1] %vm4818, %v5204
        %v5214 = vunpack.c.l.s4 1966171168
        %v5215 = vunpack.c.0.s8 %v5214
        %v5216 = vlaneseq
        %v5217 = vshrl.u32 %v5216, 7
        %v5218 = vsub.s32 %v5215, %v5217
        %v5219 = vrot.slane %v4764, %v5218
        %v5220 = vcombine.high %v5219, %v5219
        %v5222 = vunpack.c.l.s4 1966171168
        %v5223 = vunpack.c.0.s8 %v5222
        %v5224 = vlaneseq
        %v5225 = vshrl.u32 %v5224, 7
        %v5226 = vsub.s32 %v5223, %v5225
        %v5227 = vrot.slane %v5219, %v5226
        %v5229 = vunpack.c.l.s4 1966171168
        %v5230 = vunpack.c.0.s8 %v5229
        %v5231 = vlaneseq
        %v5232 = vshrl.u32 %v5231, 7
        %v5233 = vsub.s32 %v5230, %v5232
        %v5234 = vrot.slane %v5220, %v5233
        %v5235 = vcombine.high %v5227, %v5227
        %v5236 = vcombine.high %v5234, %v5234
        %v5237 = vlaneseq
        %v5238 = vshrl.u32 %v5237, 7
        %v5239 = vsub.s32 0, %v5238
        %v5240 = vrot.slane %v5227, %v5239
        %v5241 = vlaneseq
        %v5242 = vshrl.u32 %v5241, 7
        %v5243 = vsub.s32 0, %v5242
        %v5244 = vrot.slane %v5234, %v5243
        %v5245 = vlaneseq
        %v5246 = vshrl.u32 %v5245, 7
        %v5247 = vsub.s32 0, %v5246
        %v5248 = vrot.slane %v5235, %v5247
        %v5249 = vlaneseq
        %v5250 = vshrl.u32 %v5249, 7
        %v5251 = vsub.s32 0, %v5250
        %v5252 = vrot.slane %v5236, %v5251
        %5253 = vrot.lane.b32.xlu0 %v5240, 113
        %v5254 = vpop.permute.xlu0 %5253
        %5255 = vrot.lane.b32.xlu0 %v5244, 113
        %v5256 = vpop.permute.xlu0 %5255
        %5257 = vrot.lane.b32.xlu0 %v5248, 113
        %v5258 = vpop.permute.xlu0 %5257
        %5259 = vrot.lane.b32.xlu0 %v5252, 113
        %v5260 = vpop.permute.xlu0 %5259
        %5265 = vst.msk [vmem:[%s513 + $0xe] sm:$0x1] %vm4818, %v5254
        %5266 = vst.msk [vmem:[%s513 + $0x1e] sm:$0x1] %vm4818, %v5256
        %5267 = vst.msk [vmem:[%s513 + $0x2e] sm:$0x1] %vm4818, %v5258
        %5268 = vst.msk [vmem:[%s513 + $0x3e] sm:$0x1] %vm4818, %v5260
        %5269 = vrot.lane.b32.xlu0 %v5240, 95
        %v5270 = vpop.permute.xlu0 %5269
        %5271 = vrot.lane.b32.xlu0 %v5244, 95
        %v5272 = vpop.permute.xlu0 %5271
        %5273 = vrot.lane.b32.xlu0 %v5248, 95
        %v5274 = vpop.permute.xlu0 %5273
        %5275 = vrot.lane.b32.xlu0 %v5252, 95
        %v5276 = vpop.permute.xlu0 %5275
        %5281 = vst.msk [vmem:[%s513 + $0xf] sm:$0x1] %vm4818, %v5270
        %5282 = vst.msk [vmem:[%s513 + $0x1f] sm:$0x1] %vm4818, %v5272
        %5283 = vst.msk [vmem:[%s513 + $0x2f] sm:$0x1] %vm4818, %v5274
        %5284 = vst.msk [vmem:[%s513 + $0x3f] sm:$0x1] %vm4818, %v5276
        %s5285 = sand.u32 %s324, 1
        %s5286 = scalar_lea.sflag [#allocation7], %s5285
        %s5287 = sand.u32 %s324, 1
        %s5288 = smul.addr %s5287, 64
        %s5289 = scalar_lea.vmem [#allocation14], %s5288
        // Predicated region
        $region89: #{upscale_pcd_forward.1} parent=71 // pred_check
          %p5290 = pneg %p334
        $region90: #{upscale_pcd_forward.1} parent=71 // pred_check_branch
          %5292 = sbr.rel (%p5290) target = $region92
        $region91: #{upscale_pcd_forward.1} parent=71 // pred_region
          %s5294 = ssub.s32 1024, 1024
          %5295 = vsyncadd %s5286, %s5294
          %s5296 = smul.addr %s33, 8
          %s5297 = smul.addr %s5296, 128
          %s5298 = scalar_lea.hbm %s13, %s5297
          %s5299 = sshll.u32 %s5289, 4
          %s5300 = int_to_ptr.vmem [resolvable:$true] %s5299
          %5305 = dma.vmem_to_hbm [thread:$0]  %s5300, 1024, %s5298, %s5286, 128, 128, 8
        $region92: #{upscale_pcd_forward.1} parent=71 // pred_fallthru
          _
      $region72: #{upscale_pcd_forward.1} parent=5 // pred_fallthru
        _
      %p5306 = scmp.le.s32.totalorder 2, %s28
      // Predicated region
      $region93: #{upscale_pcd_forward.1} parent=5 // pred_check
        %p5307 = pneg %p5306
      $region94: #{upscale_pcd_forward.1} parent=5 // pred_check_branch
        %5309 = sbr.rel (%p5307) target = $region96
      $region95: #{upscale_pcd_forward.1} parent=5 // pred_region
        %s5310 = ssub.s32 %s28, 2
        // Predicated region
        $region97: #{upscale_pcd_forward.1} parent=95 // pred_check
          %p5311 = pneg %p340
        $region98: #{upscale_pcd_forward.1} parent=95 // pred_check_branch
          %5313 = sbr.rel (%p5311) target = $region100
        $region99: #{upscale_pcd_forward.1} parent=95 // pred_region
          %s5314 = sand.u32 %s325, 1
          %s5315 = scalar_lea.sflag [#allocation7], %s5314
          %s5316 = sand.u32 %s325, 1
          %s5317 = smul.addr %s5316, 64
          %s5318 = scalar_lea.vmem [#allocation14], %s5317
          %5319 = dma.done %s5315, 1024
        $region100: #{upscale_pcd_forward.1} parent=95 // pred_fallthru
          _
      $region96: #{upscale_pcd_forward.1} parent=5 // pred_fallthru
        _
    $region6: #{upscale_pcd_forward.1} parent=1 // loop_footer
      %s32 = sadd.s32 1, %s28
    $region7: #{upscale_pcd_forward.1} parent=1 // loop_footer_branch
      %27 = sbr.rel target = $region3
    $region8: #{upscale_pcd_forward.1} parent=1 // loop_exit
      _
    %5320 = vsyncpa [#allocation6], 1
    %s5321 = scalar_lea.sflag [#allocation6], 1
    %5322 = vsyncpa %s5321, 1
    %5323 = vsyncpa [#allocation10], 1
    %5324 = vsyncpa [#allocation7], 1
    %s5325 = scalar_lea.sflag [#allocation7], 1
    %5326 = vsyncpa %s5325, 1
    %5327 = vsyncpa [#allocation8], 1
    %s5328 = scalar_lea.sflag [#allocation8], 1
    %5329 = vsyncpa %s5328, 1
    %5330 = vsyncpa [#allocation13], 1

</llo_original>
